<compile_context>
chip_gen: v7x
topology: tpu7x:2x2x1
jax: 0.10.0
libtpu: 0.0.40
codegen_flags: <defaults>
</compile_context>

<pallas_src>
import functools

import jax
import jax.numpy as jnp
from jax.experimental import pallas as pl
from jax.experimental.pallas import tpu as pltpu


# ------------------------------ in-kernel helpers --------------------------- #

def _sigmoid(x):
    return 1.0 / (1.0 + jnp.exp(-x))


def _pad1_hw(x_hwc):
    """Zero-pad H and W by 1 on each side: (H, W, C) -> (H+2, W+2, C)."""
    h, w, c = x_hwc.shape
    zw = jnp.zeros((h, 1, c), x_hwc.dtype)
    x = jnp.concatenate([zw, x_hwc, zw], axis=1)
    zh = jnp.zeros((1, w + 2, c), x_hwc.dtype)
    return jnp.concatenate([zh, x, zh], axis=0)


def _im2col_3x3(xp, h, w):
    """Padded (H+2, W+2, C) -> (H*W, 9*C) tap matrix; column order (ky, kx, c)."""
    c = xp.shape[-1]
    taps = []
    for ky in range(3):
        for kx in range(3):
            taps.append(xp[ky:ky + h, kx:kx + w, :].reshape(h * w, c))
    return jnp.concatenate(taps, axis=-1)


# --------------------------------- kernel ----------------------------------- #

def _decoder_cbam_kernel(xpad_ref, w1_ref, b1_ref, w2_ref, b2_ref,
                         fc1w_ref, fc1b_ref, fc2w_ref, fc2b_ref,
                         saw_ref, sab_ref, bn2s_ref, bn2b_ref,
                         o_ref, *, H, W):
    M = H * W

    # conv3x3 #1 (+ folded BN1) + ReLU  ---- single matmul, K = 9*Cin
    xp = xpad_ref[0]                                           # (H+2, W+2, Cin)
    t1 = _im2col_3x3(xp, H, W)                                 # (M, 9*Cin)
    h1 = jnp.dot(t1, w1_ref[...], preferred_element_type=jnp.float32)
    h1 = jnp.maximum(h1 + b1_ref[...], 0.0)                    # (M, Cmid)
    Cmid = h1.shape[-1]

    # conv3x3 #2 (bias only; BN2 is applied after CBAM, as in the reference)
    t2 = _im2col_3x3(_pad1_hw(h1.reshape(H, W, Cmid)), H, W)   # (M, 9*Cmid)
    u = jnp.dot(t2, w2_ref[...], preferred_element_type=jnp.float32) + b2_ref[...]

    # ---- CBAM channel attention: shared MLP over global max & avg pools -----
    mx = jnp.max(u, axis=0, keepdims=True)                     # (1, Cmid)
    av = jnp.mean(u, axis=0, keepdims=True)                    # (1, Cmid)
    pooled = jnp.concatenate([mx, av], axis=0)                 # (2, Cmid)
    z = jnp.maximum(
        jnp.dot(pooled, fc1w_ref[...], preferred_element_type=jnp.float32)
        + fc1b_ref[...], 0.0)
    z = jnp.dot(z, fc2w_ref[...], preferred_element_type=jnp.float32) + fc2b_ref[...]
    ca = _sigmoid(z[0:1, :] + z[1:2, :])                       # (1, Cmid)
    x1 = u * ca                                                # (M, Cmid)

    # ---- CBAM spatial attention: 3x3 conv over [channel-max, channel-mean] --
    cmax = jnp.max(x1, axis=-1, keepdims=True)                 # (M, 1)
    cmean = jnp.mean(x1, axis=-1, keepdims=True)               # (M, 1)
    smap = jnp.concatenate([cmax, cmean], axis=-1)             # (M, 2)
    st = _im2col_3x3(_pad1_hw(smap.reshape(H, W, 2)), H, W)    # (M, 18)
    sa = _sigmoid(jnp.sum(st * saw_ref[...], axis=-1, keepdims=True)
                  + sab_ref[...])                              # (M, 1)
    x2 = x1 * sa

    # ---- BN2 + ReLU ----------------------------------------------------------
    o_ref[0] = jnp.maximum(x2 * bn2s_ref[...] + bn2b_ref[...], 0.0).astype(o_ref.dtype)


# ------------------------------- wrapper ------------------------------------ #

def decoder_basic_cbam_block(x_nchw, params, skip_nchw=None, scale_factor=2):
    """Forward of DecoderBasicCbamBlock: upsample [+skip cat] + fused block."""
    # JAX glue: nearest upsample, skip concat, NHWC transpose, 1-px zero-pad.
    x = jnp.repeat(jnp.repeat(x_nchw, scale_factor, axis=2), scale_factor, axis=3)
    if skip_nchw is not None:
        x = jnp.concatenate([x, skip_nchw], axis=1)
    N, Cin, H, W = x.shape
    assert W % 8 == 0, "W must be a multiple of 8 (layout-neutral in-kernel reshape)"
    xpad = jnp.pad(jnp.transpose(x, (0, 2, 3, 1)), ((0, 0), (1, 1), (1, 1), (0, 0)))
    Hp, Wp = H + 2, W + 2
    M = H * W
    Cmid = params["w2"].shape[-1]

    def full(a):
        return pl.BlockSpec(a.shape, lambda n: (0,) * a.ndim)

    out = pl.pallas_call(
        functools.partial(_decoder_cbam_kernel, H=H, W=W),
        out_shape=jax.ShapeDtypeStruct((N, M, Cmid), x.dtype),
        grid=(N,),
        in_specs=[
            pl.BlockSpec((1, Hp, Wp, Cin), lambda n: (n, 0, 0, 0)),
            full(params["w1"]), full(params["b1"]),
            full(params["w2"]), full(params["b2"]),
            full(params["fc1w"]), full(params["fc1b"]),
            full(params["fc2w"]), full(params["fc2b"]),
            full(params["saw"]), full(params["sab"]),
            full(params["bn2s"]), full(params["bn2b"]),
        ],
        out_specs=pl.BlockSpec((1, M, Cmid), lambda n: (n, 0, 0)),
        compiler_params=pltpu.CompilerParams(dimension_semantics=("parallel",)),
    )(xpad, params["w1"], params["b1"], params["w2"], params["b2"],
      params["fc1w"], params["fc1b"], params["fc2w"], params["fc2b"],
      params["saw"], params["sab"], params["bn2s"], params["bn2b"])

    # (N, H*W, Cmid) -> NCHW (tiny at these sizes).
    return jnp.transpose(out.reshape(N, H, W, Cmid), (0, 3, 1, 2))


# --------------------------- parameter preparation -------------------------- #

def _conv3x3_to_mat(w):
    """(Cout, Cin, 3, 3) PyTorch layout -> (9*Cin, Cout), row order (ky, kx, cin)."""
    cout, cin, kh, kw = w.shape
    return jnp.transpose(w, (2, 3, 1, 0)).reshape(kh * kw * cin, cout)


def _bn_scale_shift(gamma, beta, mean, var, eps=1e-5):
    scale = gamma / jnp.sqrt(var + eps)
    return scale, beta - mean * scale


def prepare_kernel_params(raw, eps=1e-5):
    s1, sh1 = _bn_scale_shift(raw["bn1_gamma"], raw["bn1_beta"],
                              raw["bn1_mean"], raw["bn1_var"], eps)
    s2, sh2 = _bn_scale_shift(raw["bn2_gamma"], raw["bn2_beta"],
                              raw["bn2_mean"], raw["bn2_var"], eps)
    return {
        # conv1 with BN1 folded in (nothing sits between conv1 and BN1)
        "w1": _conv3x3_to_mat(raw["conv1_w"]) * s1[None, :],
        "b1": (raw["conv1_b"] * s1 + sh1)[None, :],
        # conv2 left un-folded: CBAM consumes the raw conv2 output
        "w2": _conv3x3_to_mat(raw["conv2_w"]),
        "b2": raw["conv2_b"][None, :],
        "fc1w": jnp.transpose(raw["fc1_w"][:, :, 0, 0]),
        "fc1b": raw["fc1_b"][None, :],
        "fc2w": jnp.transpose(raw["fc2_w"][:, :, 0, 0]),
        "fc2b": raw["fc2_b"][None, :],
        "saw": jnp.transpose(raw["sa_w"][0], (1, 2, 0)).reshape(1, 18),
        "sab": raw["sa_b"].reshape(1, 1),
        "bn2s": s2[None, :],
        "bn2b": sh2[None, :],
    }


# ------------------------- pure-XLA reference (check) ------------------------ #

def _reference_forward(x, skip, raw, scale_factor=2, eps=1e-5):
    def conv(z, w, b, pad):
        y = jax.lax.conv_general_dilated(
            z, w, (1, 1), [(pad, pad), (pad, pad)],
            dimension_numbers=("NCHW", "OIHW", "NCHW"),
            precision=jax.lax.Precision.HIGHEST)
        return y + b.reshape(1, -1, 1, 1)

    def bn(z, gamma, beta, mean, var):
        s = gamma / jnp.sqrt(var + eps)
        return z * s.reshape(1, -1, 1, 1) + (beta - mean * s).reshape(1, -1, 1, 1)

    x = jnp.repeat(jnp.repeat(x, scale_factor, axis=2), scale_factor, axis=3)
    if skip is not None:
        x = jnp.concatenate([x, skip], axis=1)
    h = jnp.maximum(bn(conv(x, raw["conv1_w"], raw["conv1_b"], 1),
                       raw["bn1_gamma"], raw["bn1_beta"],
                       raw["bn1_mean"], raw["bn1_var"]), 0.0)
    u = conv(h, raw["conv2_w"], raw["conv2_b"], 1)

    def fc(z):
        z = jnp.maximum(conv(z, raw["fc1_w"], raw["fc1_b"], 0), 0.0)
        return conv(z, raw["fc2_w"], raw["fc2_b"], 0)

    mx = jnp.max(u, axis=(2, 3), keepdims=True)
    av = jnp.mean(u, axis=(2, 3), keepdims=True)
    ca = jax.nn.sigmoid(fc(mx) + fc(av))
    x1 = u * ca
    smap = jnp.concatenate([jnp.max(x1, axis=1, keepdims=True),
                            jnp.mean(x1, axis=1, keepdims=True)], axis=1)
    sa = jax.nn.sigmoid(conv(smap, raw["sa_w"], raw["sa_b"], 1))
    x2 = x1 * sa
    return jnp.maximum(bn(x2, raw["bn2_gamma"], raw["bn2_beta"],
                          raw["bn2_mean"], raw["bn2_var"]), 0.0)


# ---------------------------------- main ------------------------------------ #

if __name__ == "__main__":
    N, C_x, H0, W0 = 2, 16, 8, 8
    C_skip = 16
    scale = 2
    in_channels = C_x + C_skip          # channels seen by conv1 after cat
    out_channels = 32
    reduction = 16

    key = jax.random.PRNGKey(0)
    ks = list(jax.random.split(key, 12))
    x = jax.random.normal(ks[0], (N, C_x, H0, W0), jnp.float32)
    skip = jax.random.normal(ks[1], (N, C_skip, scale * H0, scale * W0), jnp.float32)

    def kaiming(k, shape):
        fan_in = shape[1] * shape[2] * shape[3]
        return jnp.sqrt(2.0 / fan_in) * jax.random.normal(k, shape, jnp.float32)

    def bias(k, n):
        return 0.1 * jax.random.normal(k, (n,), jnp.float32)

    ones = lambda: jnp.ones((out_channels,), jnp.float32)
    zeros = lambda: jnp.zeros((out_channels,), jnp.float32)
    raw = {
        "conv1_w": kaiming(ks[2], (out_channels, in_channels, 3, 3)),
        "conv1_b": bias(ks[3], out_channels),
        "conv2_w": kaiming(ks[4], (out_channels, out_channels, 3, 3)),
        "conv2_b": bias(ks[5], out_channels),
        "fc1_w": kaiming(ks[6], (out_channels // reduction, out_channels, 1, 1)),
        "fc1_b": bias(ks[7], out_channels // reduction),
        "fc2_w": kaiming(ks[8], (out_channels, out_channels // reduction, 1, 1)),
        "fc2_b": bias(ks[9], out_channels),
        "sa_w": kaiming(ks[10], (1, 2, 3, 3)),
        "sa_b": bias(ks[11], 1),
        # BatchNorm2d, eval mode with fresh running stats
        "bn1_gamma": ones(), "bn1_beta": zeros(), "bn1_mean": zeros(), "bn1_var": ones(),
        "bn2_gamma": ones(), "bn2_beta": zeros(), "bn2_mean": zeros(), "bn2_var": ones(),
    }

    params = prepare_kernel_params(raw)
    out = decoder_basic_cbam_block(x, params, skip_nchw=skip, scale_factor=scale)
    out = jax.block_until_ready(out)

    assert out.shape == (N, out_channels, scale * H0, scale * W0), out.shape
    assert bool(jnp.all(jnp.isfinite(out)))

    ref = _reference_forward(x, skip, raw, scale_factor=scale)
    err = float(jnp.max(jnp.abs(out - ref)))
    assert err < 2e-2, f"mismatch vs XLA reference: max abs err {err}"
    print("KERNEL_OK")
</pallas_src>

<mosaic_0001>
module attributes {stable_mosaic.version = 11 : i64} {
  func.func @_decoder_cbam_kernel(%arg0: i32, %arg1: memref<1x18x18x32xf32, #tpu.memory_space<vmem>>, %arg2: memref<288x32xf32, #tpu.memory_space<vmem>>, %arg3: memref<1x32xf32, #tpu.memory_space<vmem>>, %arg4: memref<288x32xf32, #tpu.memory_space<vmem>>, %arg5: memref<1x32xf32, #tpu.memory_space<vmem>>, %arg6: memref<32x2xf32, #tpu.memory_space<vmem>>, %arg7: memref<1x2xf32, #tpu.memory_space<vmem>>, %arg8: memref<2x32xf32, #tpu.memory_space<vmem>>, %arg9: memref<1x32xf32, #tpu.memory_space<vmem>>, %arg10: memref<1x18xf32, #tpu.memory_space<vmem>>, %arg11: memref<1x1xf32, #tpu.memory_space<vmem>>, %arg12: memref<1x32xf32, #tpu.memory_space<vmem>>, %arg13: memref<1x32xf32, #tpu.memory_space<vmem>>, %arg14: memref<1x256x32xf32, #tpu.memory_space<vmem>>) attributes {dimension_semantics = [#tpu.dimension_semantics<parallel>], iteration_bounds = array<i64: 2>, scalar_prefetch = 0 : i64, scratch_operands = 0 : i64, tpu.core_type = #tpu.core_type<tc>, window_params = [{transform_indices = @transform_0, window_bounds = array<i64: 1, 18, 18, 32>}, {pipeline_mode = #tpu.pipeline_mode<synchronous>, transform_indices = @transform_1, window_bounds = array<i64: 288, 32>}, {pipeline_mode = #tpu.pipeline_mode<synchronous>, transform_indices = @transform_2, window_bounds = array<i64: 1, 32>}, {pipeline_mode = #tpu.pipeline_mode<synchronous>, transform_indices = @transform_3, window_bounds = array<i64: 288, 32>}, {pipeline_mode = #tpu.pipeline_mode<synchronous>, transform_indices = @transform_4, window_bounds = array<i64: 1, 32>}, {pipeline_mode = #tpu.pipeline_mode<synchronous>, transform_indices = @transform_5, window_bounds = array<i64: 32, 2>}, {pipeline_mode = #tpu.pipeline_mode<synchronous>, transform_indices = @transform_6, window_bounds = array<i64: 1, 2>}, {pipeline_mode = #tpu.pipeline_mode<synchronous>, transform_indices = @transform_7, window_bounds = array<i64: 2, 32>}, {pipeline_mode = #tpu.pipeline_mode<synchronous>, transform_indices = @transform_8, window_bounds = array<i64: 1, 32>}, {pipeline_mode = #tpu.pipeline_mode<synchronous>, transform_indices = @transform_9, window_bounds = array<i64: 1, 18>}, {pipeline_mode = #tpu.pipeline_mode<synchronous>, transform_indices = @transform_10, window_bounds = array<i64: 1, 1>}, {pipeline_mode = #tpu.pipeline_mode<synchronous>, transform_indices = @transform_11, window_bounds = array<i64: 1, 32>}, {pipeline_mode = #tpu.pipeline_mode<synchronous>, transform_indices = @transform_12, window_bounds = array<i64: 1, 32>}, {transform_indices = @transform_13, window_bounds = array<i64: 1, 256, 32>}]} {
    %c0 = arith.constant 0 : index
    %c0_0 = arith.constant 0 : index
    %c0_1 = arith.constant 0 : index
    %c0_2 = arith.constant 0 : index
    %0 = vector.load %arg1[%c0, %c0_0, %c0_1, %c0_2] : memref<1x18x18x32xf32, #tpu.memory_space<vmem>>, vector<1x18x18x32xf32>
    %1 = vector.shape_cast %0 : vector<1x18x18x32xf32> to vector<18x18x32xf32>
    %2 = vector.extract_strided_slice %1 {offsets = [0, 0, 0], sizes = [16, 16, 32], strides = [1, 1, 1]} : vector<18x18x32xf32> to vector<16x16x32xf32>
    %3 = vector.shape_cast %2 : vector<16x16x32xf32> to vector<256x32xf32>
    %4 = vector.extract_strided_slice %1 {offsets = [0, 1, 0], sizes = [16, 16, 32], strides = [1, 1, 1]} : vector<18x18x32xf32> to vector<16x16x32xf32>
    %5 = vector.shape_cast %4 : vector<16x16x32xf32> to vector<256x32xf32>
    %6 = vector.extract_strided_slice %1 {offsets = [0, 2, 0], sizes = [16, 16, 32], strides = [1, 1, 1]} : vector<18x18x32xf32> to vector<16x16x32xf32>
    %7 = vector.shape_cast %6 : vector<16x16x32xf32> to vector<256x32xf32>
    %8 = vector.extract_strided_slice %1 {offsets = [1, 0, 0], sizes = [16, 16, 32], strides = [1, 1, 1]} : vector<18x18x32xf32> to vector<16x16x32xf32>
    %9 = vector.shape_cast %8 : vector<16x16x32xf32> to vector<256x32xf32>
    %10 = vector.extract_strided_slice %1 {offsets = [1, 1, 0], sizes = [16, 16, 32], strides = [1, 1, 1]} : vector<18x18x32xf32> to vector<16x16x32xf32>
    %11 = vector.shape_cast %10 : vector<16x16x32xf32> to vector<256x32xf32>
    %12 = vector.extract_strided_slice %1 {offsets = [1, 2, 0], sizes = [16, 16, 32], strides = [1, 1, 1]} : vector<18x18x32xf32> to vector<16x16x32xf32>
    %13 = vector.shape_cast %12 : vector<16x16x32xf32> to vector<256x32xf32>
    %14 = vector.extract_strided_slice %1 {offsets = [2, 0, 0], sizes = [16, 16, 32], strides = [1, 1, 1]} : vector<18x18x32xf32> to vector<16x16x32xf32>
    %15 = vector.shape_cast %14 : vector<16x16x32xf32> to vector<256x32xf32>
    %16 = vector.extract_strided_slice %1 {offsets = [2, 1, 0], sizes = [16, 16, 32], strides = [1, 1, 1]} : vector<18x18x32xf32> to vector<16x16x32xf32>
    %17 = vector.shape_cast %16 : vector<16x16x32xf32> to vector<256x32xf32>
    %18 = vector.extract_strided_slice %1 {offsets = [2, 2, 0], sizes = [16, 16, 32], strides = [1, 1, 1]} : vector<18x18x32xf32> to vector<16x16x32xf32>
    %19 = vector.shape_cast %18 : vector<16x16x32xf32> to vector<256x32xf32>
    %20 = tpu.concatenate %3, %5, %7, %9, %11, %13, %15, %17, %19 in 1 : vector<256x32xf32>, vector<256x32xf32>, vector<256x32xf32>, vector<256x32xf32>, vector<256x32xf32>, vector<256x32xf32>, vector<256x32xf32>, vector<256x32xf32>, vector<256x32xf32> -> vector<256x288xf32>
    %c0_3 = arith.constant 0 : index
    %c0_4 = arith.constant 0 : index
    %21 = vector.load %arg2[%c0_3, %c0_4] : memref<288x32xf32, #tpu.memory_space<vmem>>, vector<288x32xf32>
    %cst = arith.constant dense<0.000000e+00> : vector<256x32xf32>
    %22 = tpu.matmul %20, %21, %cst {dimension_numbers = #tpu.dot_dimension_numbers<[1], [0], [0], [1], [0, 0, 1, 1], [], []>} : vector<256x288xf32>, vector<288x32xf32>, vector<256x32xf32> -> vector<256x32xf32>
    %c0_5 = arith.constant 0 : index
    %c0_6 = arith.constant 0 : index
    %23 = vector.load %arg3[%c0_5, %c0_6] : memref<1x32xf32, #tpu.memory_space<vmem>>, vector<1x32xf32>
    %24 = vector.broadcast %23 : vector<1x32xf32> to vector<256x32xf32>
    %25 = arith.addf %22, %24 : vector<256x32xf32>
    %cst_7 = arith.constant 0.000000e+00 : f32
    %26 = vector.broadcast %cst_7 : f32 to vector<256x32xf32>
    %27 = arith.maximumf %25, %26 : vector<256x32xf32>
    %28 = vector.shape_cast %27 : vector<256x32xf32> to vector<16x16x32xf32>
    %cst_8 = arith.constant 0.000000e+00 : f32
    %29 = vector.broadcast %cst_8 : f32 to vector<16x1x32xf32>
    %30 = tpu.concatenate %29, %28, %29 in 1 : vector<16x1x32xf32>, vector<16x16x32xf32>, vector<16x1x32xf32> -> vector<16x18x32xf32>
    %cst_9 = arith.constant 0.000000e+00 : f32
    %31 = vector.broadcast %cst_9 : f32 to vector<1x18x32xf32>
    %32 = tpu.concatenate %31, %30, %31 in 0 : vector<1x18x32xf32>, vector<16x18x32xf32>, vector<1x18x32xf32> -> vector<18x18x32xf32>
    %33 = vector.extract_strided_slice %32 {offsets = [0, 0, 0], sizes = [16, 16, 32], strides = [1, 1, 1]} : vector<18x18x32xf32> to vector<16x16x32xf32>
    %34 = vector.shape_cast %33 : vector<16x16x32xf32> to vector<256x32xf32>
    %35 = vector.extract_strided_slice %32 {offsets = [0, 1, 0], sizes = [16, 16, 32], strides = [1, 1, 1]} : vector<18x18x32xf32> to vector<16x16x32xf32>
    %36 = vector.shape_cast %35 : vector<16x16x32xf32> to vector<256x32xf32>
    %37 = vector.extract_strided_slice %32 {offsets = [0, 2, 0], sizes = [16, 16, 32], strides = [1, 1, 1]} : vector<18x18x32xf32> to vector<16x16x32xf32>
    %38 = vector.shape_cast %37 : vector<16x16x32xf32> to vector<256x32xf32>
    %39 = vector.extract_strided_slice %32 {offsets = [1, 0, 0], sizes = [16, 16, 32], strides = [1, 1, 1]} : vector<18x18x32xf32> to vector<16x16x32xf32>
    %40 = vector.shape_cast %39 : vector<16x16x32xf32> to vector<256x32xf32>
    %41 = vector.extract_strided_slice %32 {offsets = [1, 1, 0], sizes = [16, 16, 32], strides = [1, 1, 1]} : vector<18x18x32xf32> to vector<16x16x32xf32>
    %42 = vector.shape_cast %41 : vector<16x16x32xf32> to vector<256x32xf32>
    %43 = vector.extract_strided_slice %32 {offsets = [1, 2, 0], sizes = [16, 16, 32], strides = [1, 1, 1]} : vector<18x18x32xf32> to vector<16x16x32xf32>
    %44 = vector.shape_cast %43 : vector<16x16x32xf32> to vector<256x32xf32>
    %45 = vector.extract_strided_slice %32 {offsets = [2, 0, 0], sizes = [16, 16, 32], strides = [1, 1, 1]} : vector<18x18x32xf32> to vector<16x16x32xf32>
    %46 = vector.shape_cast %45 : vector<16x16x32xf32> to vector<256x32xf32>
    %47 = vector.extract_strided_slice %32 {offsets = [2, 1, 0], sizes = [16, 16, 32], strides = [1, 1, 1]} : vector<18x18x32xf32> to vector<16x16x32xf32>
    %48 = vector.shape_cast %47 : vector<16x16x32xf32> to vector<256x32xf32>
    %49 = vector.extract_strided_slice %32 {offsets = [2, 2, 0], sizes = [16, 16, 32], strides = [1, 1, 1]} : vector<18x18x32xf32> to vector<16x16x32xf32>
    %50 = vector.shape_cast %49 : vector<16x16x32xf32> to vector<256x32xf32>
    %51 = tpu.concatenate %34, %36, %38, %40, %42, %44, %46, %48, %50 in 1 : vector<256x32xf32>, vector<256x32xf32>, vector<256x32xf32>, vector<256x32xf32>, vector<256x32xf32>, vector<256x32xf32>, vector<256x32xf32>, vector<256x32xf32>, vector<256x32xf32> -> vector<256x288xf32>
    %c0_10 = arith.constant 0 : index
    %c0_11 = arith.constant 0 : index
    %52 = vector.load %arg4[%c0_10, %c0_11] : memref<288x32xf32, #tpu.memory_space<vmem>>, vector<288x32xf32>
    %cst_12 = arith.constant dense<0.000000e+00> : vector<256x32xf32>
    %53 = tpu.matmul %51, %52, %cst_12 {dimension_numbers = #tpu.dot_dimension_numbers<[1], [0], [0], [1], [0, 0, 1, 1], [], []>} : vector<256x288xf32>, vector<288x32xf32>, vector<256x32xf32> -> vector<256x32xf32>
    %c0_13 = arith.constant 0 : index
    %c0_14 = arith.constant 0 : index
    %54 = vector.load %arg5[%c0_13, %c0_14] : memref<1x32xf32, #tpu.memory_space<vmem>>, vector<1x32xf32>
    %55 = vector.broadcast %54 : vector<1x32xf32> to vector<256x32xf32>
    %56 = arith.addf %53, %55 : vector<256x32xf32>
    %cst_15 = arith.constant dense<0xFF800000> : vector<32xf32>
    %57 = vector.multi_reduction <maximumf>, %56, %cst_15 [0] : vector<256x32xf32> to vector<32xf32>
    %58 = vector.shape_cast %57 : vector<32xf32> to vector<1x32xf32>
    %cst_16 = arith.constant dense<0.000000e+00> : vector<32xf32>
    %59 = vector.multi_reduction <add>, %56, %cst_16 [0] : vector<256x32xf32> to vector<32xf32>
    %60 = vector.shape_cast %59 : vector<32xf32> to vector<1x32xf32>
    %cst_17 = arith.constant 2.560000e+02 : f32
    %61 = vector.broadcast %cst_17 : f32 to vector<1x32xf32>
    %62 = arith.divf %60, %61 : vector<1x32xf32>
    %63 = tpu.concatenate %58, %62 in 0 : vector<1x32xf32>, vector<1x32xf32> -> vector<2x32xf32>
    %c0_18 = arith.constant 0 : index
    %c0_19 = arith.constant 0 : index
    %64 = vector.load %arg6[%c0_18, %c0_19] : memref<32x2xf32, #tpu.memory_space<vmem>>, vector<32x2xf32>
    %cst_20 = arith.constant dense<0.000000e+00> : vector<2x2xf32>
    %65 = tpu.matmul %63, %64, %cst_20 {dimension_numbers = #tpu.dot_dimension_numbers<[1], [0], [0], [1], [0, 0, 1, 1], [], []>} : vector<2x32xf32>, vector<32x2xf32>, vector<2x2xf32> -> vector<2x2xf32>
    %c0_21 = arith.constant 0 : index
    %c0_22 = arith.constant 0 : index
    %66 = vector.load %arg7[%c0_21, %c0_22] : memref<1x2xf32, #tpu.memory_space<vmem>>, vector<1x2xf32>
    %67 = vector.broadcast %66 : vector<1x2xf32> to vector<2x2xf32>
    %68 = arith.addf %65, %67 : vector<2x2xf32>
    %cst_23 = arith.constant 0.000000e+00 : f32
    %69 = vector.broadcast %cst_23 : f32 to vector<2x2xf32>
    %70 = arith.maximumf %68, %69 : vector<2x2xf32>
    %c0_24 = arith.constant 0 : index
    %c0_25 = arith.constant 0 : index
    %71 = vector.load %arg8[%c0_24, %c0_25] : memref<2x32xf32, #tpu.memory_space<vmem>>, vector<2x32xf32>
    %cst_26 = arith.constant dense<0.000000e+00> : vector<2x32xf32>
    %72 = tpu.matmul %70, %71, %cst_26 {dimension_numbers = #tpu.dot_dimension_numbers<[1], [0], [0], [1], [0, 0, 1, 1], [], []>} : vector<2x2xf32>, vector<2x32xf32>, vector<2x32xf32> -> vector<2x32xf32>
    %c0_27 = arith.constant 0 : index
    %c0_28 = arith.constant 0 : index
    %73 = vector.load %arg9[%c0_27, %c0_28] : memref<1x32xf32, #tpu.memory_space<vmem>>, vector<1x32xf32>
    %74 = vector.broadcast %73 : vector<1x32xf32> to vector<2x32xf32>
    %75 = arith.addf %72, %74 : vector<2x32xf32>
    %76 = vector.extract_strided_slice %75 {offsets = [0, 0], sizes = [1, 32], strides = [1, 1]} : vector<2x32xf32> to vector<1x32xf32>
    %77 = vector.extract_strided_slice %75 {offsets = [1, 0], sizes = [1, 32], strides = [1, 1]} : vector<2x32xf32> to vector<1x32xf32>
    %78 = arith.addf %76, %77 : vector<1x32xf32>
    %cst_29 = arith.constant 0.000000e+00 : f32
    %79 = vector.broadcast %cst_29 : f32 to vector<1x32xf32>
    %80 = arith.subf %79, %78 : vector<1x32xf32>
    %81 = math.exp %80 : vector<1x32xf32>
    %cst_30 = arith.constant 1.000000e+00 : f32
    %82 = vector.broadcast %cst_30 : f32 to vector<1x32xf32>
    %83 = arith.addf %82, %81 : vector<1x32xf32>
    %cst_31 = arith.constant 1.000000e+00 : f32
    %84 = vector.broadcast %cst_31 : f32 to vector<1x32xf32>
    %85 = arith.divf %84, %83 : vector<1x32xf32>
    %86 = vector.broadcast %85 : vector<1x32xf32> to vector<256x32xf32>
    %87 = arith.mulf %56, %86 : vector<256x32xf32>
    %cst_32 = arith.constant dense<0xFF800000> : vector<256xf32>
    %88 = vector.multi_reduction <maximumf>, %87, %cst_32 [1] : vector<256x32xf32> to vector<256xf32>
    %89 = vector.shape_cast %88 : vector<256xf32> to vector<256x1xf32>
    %cst_33 = arith.constant dense<0.000000e+00> : vector<256xf32>
    %90 = vector.multi_reduction <add>, %87, %cst_33 [1] : vector<256x32xf32> to vector<256xf32>
    %91 = vector.shape_cast %90 : vector<256xf32> to vector<256x1xf32>
    %cst_34 = arith.constant 3.200000e+01 : f32
    %92 = vector.broadcast %cst_34 : f32 to vector<256x1xf32>
    %93 = arith.divf %91, %92 : vector<256x1xf32>
    %94 = tpu.concatenate %89, %93 in 1 : vector<256x1xf32>, vector<256x1xf32> -> vector<256x2xf32>
    %95 = vector.shape_cast %94 : vector<256x2xf32> to vector<16x16x2xf32>
    %cst_35 = arith.constant 0.000000e+00 : f32
    %96 = vector.broadcast %cst_35 : f32 to vector<16x1x2xf32>
    %97 = tpu.concatenate %96, %95, %96 in 1 : vector<16x1x2xf32>, vector<16x16x2xf32>, vector<16x1x2xf32> -> vector<16x18x2xf32>
    %cst_36 = arith.constant 0.000000e+00 : f32
    %98 = vector.broadcast %cst_36 : f32 to vector<1x18x2xf32>
    %99 = tpu.concatenate %98, %97, %98 in 0 : vector<1x18x2xf32>, vector<16x18x2xf32>, vector<1x18x2xf32> -> vector<18x18x2xf32>
    %100 = vector.extract_strided_slice %99 {offsets = [0, 0, 0], sizes = [16, 16, 2], strides = [1, 1, 1]} : vector<18x18x2xf32> to vector<16x16x2xf32>
    %101 = vector.shape_cast %100 : vector<16x16x2xf32> to vector<256x2xf32>
    %102 = vector.extract_strided_slice %99 {offsets = [0, 1, 0], sizes = [16, 16, 2], strides = [1, 1, 1]} : vector<18x18x2xf32> to vector<16x16x2xf32>
    %103 = vector.shape_cast %102 : vector<16x16x2xf32> to vector<256x2xf32>
    %104 = vector.extract_strided_slice %99 {offsets = [0, 2, 0], sizes = [16, 16, 2], strides = [1, 1, 1]} : vector<18x18x2xf32> to vector<16x16x2xf32>
    %105 = vector.shape_cast %104 : vector<16x16x2xf32> to vector<256x2xf32>
    %106 = vector.extract_strided_slice %99 {offsets = [1, 0, 0], sizes = [16, 16, 2], strides = [1, 1, 1]} : vector<18x18x2xf32> to vector<16x16x2xf32>
    %107 = vector.shape_cast %106 : vector<16x16x2xf32> to vector<256x2xf32>
    %108 = vector.extract_strided_slice %99 {offsets = [1, 1, 0], sizes = [16, 16, 2], strides = [1, 1, 1]} : vector<18x18x2xf32> to vector<16x16x2xf32>
    %109 = vector.shape_cast %108 : vector<16x16x2xf32> to vector<256x2xf32>
    %110 = vector.extract_strided_slice %99 {offsets = [1, 2, 0], sizes = [16, 16, 2], strides = [1, 1, 1]} : vector<18x18x2xf32> to vector<16x16x2xf32>
    %111 = vector.shape_cast %110 : vector<16x16x2xf32> to vector<256x2xf32>
    %112 = vector.extract_strided_slice %99 {offsets = [2, 0, 0], sizes = [16, 16, 2], strides = [1, 1, 1]} : vector<18x18x2xf32> to vector<16x16x2xf32>
    %113 = vector.shape_cast %112 : vector<16x16x2xf32> to vector<256x2xf32>
    %114 = vector.extract_strided_slice %99 {offsets = [2, 1, 0], sizes = [16, 16, 2], strides = [1, 1, 1]} : vector<18x18x2xf32> to vector<16x16x2xf32>
    %115 = vector.shape_cast %114 : vector<16x16x2xf32> to vector<256x2xf32>
    %116 = vector.extract_strided_slice %99 {offsets = [2, 2, 0], sizes = [16, 16, 2], strides = [1, 1, 1]} : vector<18x18x2xf32> to vector<16x16x2xf32>
    %117 = vector.shape_cast %116 : vector<16x16x2xf32> to vector<256x2xf32>
    %118 = tpu.concatenate %101, %103, %105, %107, %109, %111, %113, %115, %117 in 1 : vector<256x2xf32>, vector<256x2xf32>, vector<256x2xf32>, vector<256x2xf32>, vector<256x2xf32>, vector<256x2xf32>, vector<256x2xf32>, vector<256x2xf32>, vector<256x2xf32> -> vector<256x18xf32>
    %c0_37 = arith.constant 0 : index
    %c0_38 = arith.constant 0 : index
    %119 = vector.load %arg10[%c0_37, %c0_38] : memref<1x18xf32, #tpu.memory_space<vmem>>, vector<1x18xf32>
    %120 = vector.broadcast %119 : vector<1x18xf32> to vector<256x18xf32>
    %121 = arith.mulf %118, %120 : vector<256x18xf32>
    %cst_39 = arith.constant dense<0.000000e+00> : vector<256xf32>
    %122 = vector.multi_reduction <add>, %121, %cst_39 [1] : vector<256x18xf32> to vector<256xf32>
    %123 = vector.shape_cast %122 : vector<256xf32> to vector<256x1xf32>
    %c0_40 = arith.constant 0 : index
    %c0_41 = arith.constant 0 : index
    %124 = vector.load %arg11[%c0_40, %c0_41] : memref<1x1xf32, #tpu.memory_space<vmem>>, vector<1x1xf32>
    %125 = vector.broadcast %124 : vector<1x1xf32> to vector<256x1xf32>
    %126 = arith.addf %123, %125 : vector<256x1xf32>
    %cst_42 = arith.constant 0.000000e+00 : f32
    %127 = vector.broadcast %cst_42 : f32 to vector<256x1xf32>
    %128 = arith.subf %127, %126 : vector<256x1xf32>
    %129 = math.exp %128 : vector<256x1xf32>
    %cst_43 = arith.constant 1.000000e+00 : f32
    %130 = vector.broadcast %cst_43 : f32 to vector<256x1xf32>
    %131 = arith.addf %130, %129 : vector<256x1xf32>
    %cst_44 = arith.constant 1.000000e+00 : f32
    %132 = vector.broadcast %cst_44 : f32 to vector<256x1xf32>
    %133 = arith.divf %132, %131 : vector<256x1xf32>
    %134 = vector.broadcast %133 : vector<256x1xf32> to vector<256x32xf32>
    %135 = arith.mulf %87, %134 : vector<256x32xf32>
    %c0_45 = arith.constant 0 : index
    %c0_46 = arith.constant 0 : index
    %136 = vector.load %arg12[%c0_45, %c0_46] : memref<1x32xf32, #tpu.memory_space<vmem>>, vector<1x32xf32>
    %137 = vector.broadcast %136 : vector<1x32xf32> to vector<256x32xf32>
    %138 = arith.mulf %135, %137 : vector<256x32xf32>
    %c0_47 = arith.constant 0 : index
    %c0_48 = arith.constant 0 : index
    %139 = vector.load %arg13[%c0_47, %c0_48] : memref<1x32xf32, #tpu.memory_space<vmem>>, vector<1x32xf32>
    %140 = vector.broadcast %139 : vector<1x32xf32> to vector<256x32xf32>
    %141 = arith.addf %138, %140 : vector<256x32xf32>
    %cst_49 = arith.constant 0.000000e+00 : f32
    %142 = vector.broadcast %cst_49 : f32 to vector<256x32xf32>
    %143 = arith.maximumf %141, %142 : vector<256x32xf32>
    %c0_50 = arith.constant 0 : index
    %c0_51 = arith.constant 0 : index
    %c0_52 = arith.constant 0 : index
    %144 = vector.load %arg14[%c0_50, %c0_51, %c0_52] : memref<1x256x32xf32, #tpu.memory_space<vmem>>, vector<1x256x32xf32>
    %145 = vector.shape_cast %144 : vector<1x256x32xf32> to vector<256x32xf32>
    %146 = vector.shape_cast %143 : vector<256x32xf32> to vector<1x256x32xf32>
    tpu.vector_store %arg14[%c0_50, %c0_51, %c0_52], %146 {strides = array<i32>} : memref<1x256x32xf32, #tpu.memory_space<vmem>>, vector<1x256x32xf32>,
    return
  }
  func.func @transform_0(%arg0: i32) -> (i32, i32, i32, i32) {
    %c0_i32 = arith.constant 0 : i32
    %c0_i32_0 = arith.constant 0 : i32
    %c0_i32_1 = arith.constant 0 : i32
    %c0_i32_2 = arith.constant 0 : i32
    return %arg0, %c0_i32, %c0_i32_0, %c0_i32_1 : i32, i32, i32, i32
  }
  func.func @transform_1(%arg0: i32) -> (i32, i32) {
    %c0_i32 = arith.constant 0 : i32
    %c0_i32_0 = arith.constant 0 : i32
    %c0_i32_1 = arith.constant 0 : i32
    return %c0_i32, %c0_i32_0 : i32, i32
  }
  func.func @transform_2(%arg0: i32) -> (i32, i32) {
    %c0_i32 = arith.constant 0 : i32
    %c0_i32_0 = arith.constant 0 : i32
    %c0_i32_1 = arith.constant 0 : i32
    return %c0_i32, %c0_i32_0 : i32, i32
  }
  func.func @transform_3(%arg0: i32) -> (i32, i32) {
    %c0_i32 = arith.constant 0 : i32
    %c0_i32_0 = arith.constant 0 : i32
    %c0_i32_1 = arith.constant 0 : i32
    return %c0_i32, %c0_i32_0 : i32, i32
  }
  func.func @transform_4(%arg0: i32) -> (i32, i32) {
    %c0_i32 = arith.constant 0 : i32
    %c0_i32_0 = arith.constant 0 : i32
    %c0_i32_1 = arith.constant 0 : i32
    return %c0_i32, %c0_i32_0 : i32, i32
  }
  func.func @transform_5(%arg0: i32) -> (i32, i32) {
    %c0_i32 = arith.constant 0 : i32
    %c0_i32_0 = arith.constant 0 : i32
    %c0_i32_1 = arith.constant 0 : i32
    return %c0_i32, %c0_i32_0 : i32, i32
  }
  func.func @transform_6(%arg0: i32) -> (i32, i32) {
    %c0_i32 = arith.constant 0 : i32
    %c0_i32_0 = arith.constant 0 : i32
    %c0_i32_1 = arith.constant 0 : i32
    return %c0_i32, %c0_i32_0 : i32, i32
  }
  func.func @transform_7(%arg0: i32) -> (i32, i32) {
    %c0_i32 = arith.constant 0 : i32
    %c0_i32_0 = arith.constant 0 : i32
    %c0_i32_1 = arith.constant 0 : i32
    return %c0_i32, %c0_i32_0 : i32, i32
  }
  func.func @transform_8(%arg0: i32) -> (i32, i32) {
    %c0_i32 = arith.constant 0 : i32
    %c0_i32_0 = arith.constant 0 : i32
    %c0_i32_1 = arith.constant 0 : i32
    return %c0_i32, %c0_i32_0 : i32, i32
  }
  func.func @transform_9(%arg0: i32) -> (i32, i32) {
    %c0_i32 = arith.constant 0 : i32
    %c0_i32_0 = arith.constant 0 : i32
    %c0_i32_1 = arith.constant 0 : i32
    return %c0_i32, %c0_i32_0 : i32, i32
  }
  func.func @transform_10(%arg0: i32) -> (i32, i32) {
    %c0_i32 = arith.constant 0 : i32
    %c0_i32_0 = arith.constant 0 : i32
    %c0_i32_1 = arith.constant 0 : i32
    return %c0_i32, %c0_i32_0 : i32, i32
  }
  func.func @transform_11(%arg0: i32) -> (i32, i32) {
    %c0_i32 = arith.constant 0 : i32
    %c0_i32_0 = arith.constant 0 : i32
    %c0_i32_1 = arith.constant 0 : i32
    return %c0_i32, %c0_i32_0 : i32, i32
  }
  func.func @transform_12(%arg0: i32) -> (i32, i32) {
    %c0_i32 = arith.constant 0 : i32
    %c0_i32_0 = arith.constant 0 : i32
    %c0_i32_1 = arith.constant 0 : i32
    return %c0_i32, %c0_i32_0 : i32, i32
  }
  func.func @transform_13(%arg0: i32) -> (i32, i32, i32) {
    %c0_i32 = arith.constant 0 : i32
    %c0_i32_0 = arith.constant 0 : i32
    %c0_i32_1 = arith.constant 0 : i32
    return %arg0, %c0_i32, %c0_i32_0 : i32, i32, i32
  }
}

</mosaic_0001>

<llo_original>
// kernel: tpu_custom_call.1
$region0: #{tpu_custom_call.1}
  #allocation0 [shape = 'u32[]', space=smem, size = 0x4, offset = 0x4, fixed_abs, tag = 'smem constant byte address 0x4 - core index']
  #allocation1 [shape = 'u32[144,128]{1,0:T(1,128)}', space=vmem, size = 0x12000, scoped, tag = 'internal scratch']
  #allocation2 [shape = 'f32[1,1]{1,0:T(1,128)S(1)}', space=vmem, size = 0x200, scoped, tag = 'scoped memory for tpu_custom_call.1']
  %s0 = inlined_call_operand.vmem [shape: f32[2,18,18,32], index: 0, kind: input, shape index: {}]
  %s1 = inlined_call_operand.vmem [shape: f32[288,32], index: 1, kind: input, shape index: {}]
  %s2 = inlined_call_operand.vmem [shape: f32[1,32], index: 2, kind: input, shape index: {}]
  %s3 = inlined_call_operand.vmem [shape: f32[288,32], index: 3, kind: input, shape index: {}]
  %s4 = inlined_call_operand.vmem [shape: f32[1,32], index: 4, kind: input, shape index: {}]
  %s5 = inlined_call_operand.vmem [shape: f32[32,2], index: 5, kind: input, shape index: {}]
  %s6 = inlined_call_operand.vmem [shape: f32[1,2], index: 6, kind: input, shape index: {}]
  %s7 = inlined_call_operand.vmem [shape: f32[2,32], index: 7, kind: input, shape index: {}]
  %s8 = inlined_call_operand.vmem [shape: f32[1,32], index: 8, kind: input, shape index: {}]
  %s9 = inlined_call_operand.vmem [shape: f32[1,18], index: 9, kind: input, shape index: {}]
  %s10 = inlined_call_operand.<no memory space> [shape: f32[1,1], index: 10, kind: input, shape index: {}]
  %s11 = inlined_call_operand.vmem [shape: f32[1,32], index: 11, kind: input, shape index: {}]
  %s12 = inlined_call_operand.vmem [shape: f32[1,32], index: 12, kind: input, shape index: {}]
  %s13 = inlined_call_operand.vmem [shape: f32[2,256,32], index: 13, kind: output, shape index: {}]
  %s14 = sld [smem:[#allocation0]]
  $region85: #{tpu_custom_call.1} parent=0
    _
  %s16 = ssub.s32 1, %s14
  %s17 = scalar_select 0, %s16, %s14
  %v18 = vstv %s10
  %19 = vst [vmem:[#allocation2] sm:$0x1] %v18
  loop: start=0, step=1, limit=4
  $region2: #{tpu_custom_call.1} parent=0 // loop_pre_header
    _
  $region3: #{tpu_custom_call.1} parent=0 // loop_header
    %s21 = sphi 0, %s25
    %p22 = scmp.ge.s32.totalorder %s21, 4
    %s31 = sphi 0, %s33
    %s34 = sphi 0, %s31
    %s35 = sphi 0, %s34
    %s51 = sphi 0, %s35
    %s55 = sphi 0, %s55
    %s57 = sphi 0, %s55
    %s58 = sphi 0, %s57
    %s72 = sphi 0, %s58
    %s76 = sphi 0, %s76
    %s78 = sphi 0, %s76
    %s79 = sphi 0, %s78
    %s93 = sphi 0, %s79
    %s97 = sphi 0, %s97
    %s99 = sphi 0, %s97
    %s100 = sphi 0, %s99
    %s114 = sphi 0, %s100
    %s118 = sphi 0, %s118
    %s120 = sphi 0, %s118
    %s121 = sphi 0, %s120
    %s135 = sphi 0, %s121
    %s139 = sphi 0, %s139
    %s141 = sphi 0, %s139
    %s142 = sphi 0, %s141
    %s156 = sphi 0, %s142
    %s160 = sphi 0, %s160
    %s162 = sphi 0, %s160
    %s163 = sphi 0, %s162
    %s177 = sphi 0, %s163
    %s181 = sphi 0, %s181
    %s183 = sphi 0, %s181
    %s184 = sphi 0, %s183
    %s198 = sphi 0, %s184
    %s202 = sphi 0, %s202
    %s204 = sphi 0, %s202
    %s205 = sphi 0, %s204
    %s219 = sphi 0, %s205
    %s223 = sphi 0, %s223
    %s225 = sphi 0, %s223
    %s226 = sphi 0, %s225
    %s240 = sphi 0, %s226
    %s244 = sphi 0, %s244
    %s246 = sphi 0, %s244
    %s247 = sphi 0, %s246
    %s261 = sphi 0, %s247
    %s265 = sphi 0, %s265
    %s267 = sphi 0, %s265
    %s268 = sphi 0, %s267
    %s282 = sphi 0, %s268
    %s286 = sphi 0, %s286
    %s288 = sphi 0, %s286
    %s289 = sphi 0, %s288
    %s303 = sphi 0, %s289
    %s309 = sphi 0, %s311
    %s312 = sphi 0, %s309
    %s313 = sphi 0, %s312
    %s329 = sphi 0, %s313
  $region4: #{tpu_custom_call.1} parent=0 // loop_header_branch
    %24 = sbr.rel (%p22) target = $region8
  $region5: #{tpu_custom_call.1} parent=0 // loop_body
    %s26 = ssub.s32 %s21, 1
    %s27 = ssub.s32 %s21, 2
    %s28 = sadd.s32 %s21, 1
    %s29 = ssub.s32 %s21, %s28
    %p30 = scmp.eq.s32.totalorder %s29, 0
    %s32 = sadd.s32 %s31, 1
    %s33 = scalar_select %p30, %s31, %s32
    %p36 = pneg %p30
    %p37 = scmp.eq.s32.totalorder %s21, 1
    %p38 = por %p36, %p37
    %p39 = scmp.ne.s32.totalorder %s31, %s34
    %p40 = scmp.eq.s32.totalorder %s21, 0
    %p41 = por %p39, %p40
    %p42 = scmp.ne.s32.totalorder %s31, %s34
    %p43 = scmp.eq.s32.totalorder %s26, 1
    %p44 = por %p42, %p43
    %p45 = scmp.ne.s32.totalorder %s34, %s35
    %p46 = scmp.eq.s32.totalorder %s26, 0
    %p47 = por %p45, %p46
    %p48 = scmp.ne.s32.totalorder %s34, %s35
    %p49 = scmp.eq.s32.totalorder %s27, 1
    %p50 = por %p48, %p49
    %p52 = scmp.ne.s32.totalorder %s35, %s51
    %p53 = scmp.eq.s32.totalorder %s27, 0
    %p54 = por %p52, %p53
    %s56 = sadd.s32 %s55, 1
    %p59 = scmp.eq.s32.totalorder %s21, 1
    %p60 = scmp.ne.s32.totalorder %s55, %s57
    %p61 = scmp.eq.s32.totalorder %s21, 0
    %p62 = por %p60, %p61
    %p63 = scmp.ne.s32.totalorder %s55, %s57
    %p64 = scmp.eq.s32.totalorder %s26, 1
    %p65 = por %p63, %p64
    %p66 = scmp.ne.s32.totalorder %s57, %s58
    %p67 = scmp.eq.s32.totalorder %s26, 0
    %p68 = por %p66, %p67
    %p69 = scmp.ne.s32.totalorder %s57, %s58
    %p70 = scmp.eq.s32.totalorder %s27, 1
    %p71 = por %p69, %p70
    %p73 = scmp.ne.s32.totalorder %s58, %s72
    %p74 = scmp.eq.s32.totalorder %s27, 0
    %p75 = por %p73, %p74
    %s77 = sadd.s32 %s76, 1
    %p80 = scmp.eq.s32.totalorder %s21, 1
    %p81 = scmp.ne.s32.totalorder %s76, %s78
    %p82 = scmp.eq.s32.totalorder %s21, 0
    %p83 = por %p81, %p82
    %p84 = scmp.ne.s32.totalorder %s76, %s78
    %p85 = scmp.eq.s32.totalorder %s26, 1
    %p86 = por %p84, %p85
    %p87 = scmp.ne.s32.totalorder %s78, %s79
    %p88 = scmp.eq.s32.totalorder %s26, 0
    %p89 = por %p87, %p88
    %p90 = scmp.ne.s32.totalorder %s78, %s79
    %p91 = scmp.eq.s32.totalorder %s27, 1
    %p92 = por %p90, %p91
    %p94 = scmp.ne.s32.totalorder %s79, %s93
    %p95 = scmp.eq.s32.totalorder %s27, 0
    %p96 = por %p94, %p95
    %s98 = sadd.s32 %s97, 1
    %p101 = scmp.eq.s32.totalorder %s21, 1
    %p102 = scmp.ne.s32.totalorder %s97, %s99
    %p103 = scmp.eq.s32.totalorder %s21, 0
    %p104 = por %p102, %p103
    %p105 = scmp.ne.s32.totalorder %s97, %s99
    %p106 = scmp.eq.s32.totalorder %s26, 1
    %p107 = por %p105, %p106
    %p108 = scmp.ne.s32.totalorder %s99, %s100
    %p109 = scmp.eq.s32.totalorder %s26, 0
    %p110 = por %p108, %p109
    %p111 = scmp.ne.s32.totalorder %s99, %s100
    %p112 = scmp.eq.s32.totalorder %s27, 1
    %p113 = por %p111, %p112
    %p115 = scmp.ne.s32.totalorder %s100, %s114
    %p116 = scmp.eq.s32.totalorder %s27, 0
    %p117 = por %p115, %p116
    %s119 = sadd.s32 %s118, 1
    %p122 = scmp.eq.s32.totalorder %s21, 1
    %p123 = scmp.ne.s32.totalorder %s118, %s120
    %p124 = scmp.eq.s32.totalorder %s21, 0
    %p125 = por %p123, %p124
    %p126 = scmp.ne.s32.totalorder %s118, %s120
    %p127 = scmp.eq.s32.totalorder %s26, 1
    %p128 = por %p126, %p127
    %p129 = scmp.ne.s32.totalorder %s120, %s121
    %p130 = scmp.eq.s32.totalorder %s26, 0
    %p131 = por %p129, %p130
    %p132 = scmp.ne.s32.totalorder %s120, %s121
    %p133 = scmp.eq.s32.totalorder %s27, 1
    %p134 = por %p132, %p133
    %p136 = scmp.ne.s32.totalorder %s121, %s135
    %p137 = scmp.eq.s32.totalorder %s27, 0
    %p138 = por %p136, %p137
    %s140 = sadd.s32 %s139, 1
    %p143 = scmp.eq.s32.totalorder %s21, 1
    %p144 = scmp.ne.s32.totalorder %s139, %s141
    %p145 = scmp.eq.s32.totalorder %s21, 0
    %p146 = por %p144, %p145
    %p147 = scmp.ne.s32.totalorder %s139, %s141
    %p148 = scmp.eq.s32.totalorder %s26, 1
    %p149 = por %p147, %p148
    %p150 = scmp.ne.s32.totalorder %s141, %s142
    %p151 = scmp.eq.s32.totalorder %s26, 0
    %p152 = por %p150, %p151
    %p153 = scmp.ne.s32.totalorder %s141, %s142
    %p154 = scmp.eq.s32.totalorder %s27, 1
    %p155 = por %p153, %p154
    %p157 = scmp.ne.s32.totalorder %s142, %s156
    %p158 = scmp.eq.s32.totalorder %s27, 0
    %p159 = por %p157, %p158
    %s161 = sadd.s32 %s160, 1
    %p164 = scmp.eq.s32.totalorder %s21, 1
    %p165 = scmp.ne.s32.totalorder %s160, %s162
    %p166 = scmp.eq.s32.totalorder %s21, 0
    %p167 = por %p165, %p166
    %p168 = scmp.ne.s32.totalorder %s160, %s162
    %p169 = scmp.eq.s32.totalorder %s26, 1
    %p170 = por %p168, %p169
    %p171 = scmp.ne.s32.totalorder %s162, %s163
    %p172 = scmp.eq.s32.totalorder %s26, 0
    %p173 = por %p171, %p172
    %p174 = scmp.ne.s32.totalorder %s162, %s163
    %p175 = scmp.eq.s32.totalorder %s27, 1
    %p176 = por %p174, %p175
    %p178 = scmp.ne.s32.totalorder %s163, %s177
    %p179 = scmp.eq.s32.totalorder %s27, 0
    %p180 = por %p178, %p179
    %s182 = sadd.s32 %s181, 1
    %p185 = scmp.eq.s32.totalorder %s21, 1
    %p186 = scmp.ne.s32.totalorder %s181, %s183
    %p187 = scmp.eq.s32.totalorder %s21, 0
    %p188 = por %p186, %p187
    %p189 = scmp.ne.s32.totalorder %s181, %s183
    %p190 = scmp.eq.s32.totalorder %s26, 1
    %p191 = por %p189, %p190
    %p192 = scmp.ne.s32.totalorder %s183, %s184
    %p193 = scmp.eq.s32.totalorder %s26, 0
    %p194 = por %p192, %p193
    %p195 = scmp.ne.s32.totalorder %s183, %s184
    %p196 = scmp.eq.s32.totalorder %s27, 1
    %p197 = por %p195, %p196
    %p199 = scmp.ne.s32.totalorder %s184, %s198
    %p200 = scmp.eq.s32.totalorder %s27, 0
    %p201 = por %p199, %p200
    %s203 = sadd.s32 %s202, 1
    %p206 = scmp.eq.s32.totalorder %s21, 1
    %p207 = scmp.ne.s32.totalorder %s202, %s204
    %p208 = scmp.eq.s32.totalorder %s21, 0
    %p209 = por %p207, %p208
    %p210 = scmp.ne.s32.totalorder %s202, %s204
    %p211 = scmp.eq.s32.totalorder %s26, 1
    %p212 = por %p210, %p211
    %p213 = scmp.ne.s32.totalorder %s204, %s205
    %p214 = scmp.eq.s32.totalorder %s26, 0
    %p215 = por %p213, %p214
    %p216 = scmp.ne.s32.totalorder %s204, %s205
    %p217 = scmp.eq.s32.totalorder %s27, 1
    %p218 = por %p216, %p217
    %p220 = scmp.ne.s32.totalorder %s205, %s219
    %p221 = scmp.eq.s32.totalorder %s27, 0
    %p222 = por %p220, %p221
    %s224 = sadd.s32 %s223, 1
    %p227 = scmp.eq.s32.totalorder %s21, 1
    %p228 = scmp.ne.s32.totalorder %s223, %s225
    %p229 = scmp.eq.s32.totalorder %s21, 0
    %p230 = por %p228, %p229
    %p231 = scmp.ne.s32.totalorder %s223, %s225
    %p232 = scmp.eq.s32.totalorder %s26, 1
    %p233 = por %p231, %p232
    %p234 = scmp.ne.s32.totalorder %s225, %s226
    %p235 = scmp.eq.s32.totalorder %s26, 0
    %p236 = por %p234, %p235
    %p237 = scmp.ne.s32.totalorder %s225, %s226
    %p238 = scmp.eq.s32.totalorder %s27, 1
    %p239 = por %p237, %p238
    %p241 = scmp.ne.s32.totalorder %s226, %s240
    %p242 = scmp.eq.s32.totalorder %s27, 0
    %p243 = por %p241, %p242
    %s245 = sadd.s32 %s244, 1
    %p248 = scmp.eq.s32.totalorder %s21, 1
    %p249 = scmp.ne.s32.totalorder %s244, %s246
    %p250 = scmp.eq.s32.totalorder %s21, 0
    %p251 = por %p249, %p250
    %p252 = scmp.ne.s32.totalorder %s244, %s246
    %p253 = scmp.eq.s32.totalorder %s26, 1
    %p254 = por %p252, %p253
    %p255 = scmp.ne.s32.totalorder %s246, %s247
    %p256 = scmp.eq.s32.totalorder %s26, 0
    %p257 = por %p255, %p256
    %p258 = scmp.ne.s32.totalorder %s246, %s247
    %p259 = scmp.eq.s32.totalorder %s27, 1
    %p260 = por %p258, %p259
    %p262 = scmp.ne.s32.totalorder %s247, %s261
    %p263 = scmp.eq.s32.totalorder %s27, 0
    %p264 = por %p262, %p263
    %s266 = sadd.s32 %s265, 1
    %p269 = scmp.eq.s32.totalorder %s21, 1
    %p270 = scmp.ne.s32.totalorder %s265, %s267
    %p271 = scmp.eq.s32.totalorder %s21, 0
    %p272 = por %p270, %p271
    %p273 = scmp.ne.s32.totalorder %s265, %s267
    %p274 = scmp.eq.s32.totalorder %s26, 1
    %p275 = por %p273, %p274
    %p276 = scmp.ne.s32.totalorder %s267, %s268
    %p277 = scmp.eq.s32.totalorder %s26, 0
    %p278 = por %p276, %p277
    %p279 = scmp.ne.s32.totalorder %s267, %s268
    %p280 = scmp.eq.s32.totalorder %s27, 1
    %p281 = por %p279, %p280
    %p283 = scmp.ne.s32.totalorder %s268, %s282
    %p284 = scmp.eq.s32.totalorder %s27, 0
    %p285 = por %p283, %p284
    %s287 = sadd.s32 %s286, 1
    %p290 = scmp.eq.s32.totalorder %s21, 1
    %p291 = scmp.ne.s32.totalorder %s286, %s288
    %p292 = scmp.eq.s32.totalorder %s21, 0
    %p293 = por %p291, %p292
    %p294 = scmp.ne.s32.totalorder %s286, %s288
    %p295 = scmp.eq.s32.totalorder %s26, 1
    %p296 = por %p294, %p295
    %p297 = scmp.ne.s32.totalorder %s288, %s289
    %p298 = scmp.eq.s32.totalorder %s26, 0
    %p299 = por %p297, %p298
    %p300 = scmp.ne.s32.totalorder %s288, %s289
    %p301 = scmp.eq.s32.totalorder %s27, 1
    %p302 = por %p300, %p301
    %p304 = scmp.ne.s32.totalorder %s289, %s303
    %p305 = scmp.eq.s32.totalorder %s27, 0
    %p306 = por %p304, %p305
    %s307 = ssub.s32 %s21, %s28
    %p308 = scmp.eq.s32.totalorder %s307, 0
    %s310 = sadd.s32 %s309, 1
    %s311 = scalar_select %p308, %s309, %s310
    %p314 = pneg %p308
    %p315 = scmp.eq.s32.totalorder %s21, 1
    %p316 = por %p314, %p315
    %p317 = scmp.ne.s32.totalorder %s309, %s312
    %p318 = scmp.eq.s32.totalorder %s21, 0
    %p319 = por %p317, %p318
    %p320 = scmp.ne.s32.totalorder %s309, %s312
    %p321 = scmp.eq.s32.totalorder %s26, 1
    %p322 = por %p320, %p321
    %p323 = scmp.ne.s32.totalorder %s312, %s313
    %p324 = scmp.eq.s32.totalorder %s26, 0
    %p325 = por %p323, %p324
    %p326 = scmp.ne.s32.totalorder %s312, %s313
    %p327 = scmp.eq.s32.totalorder %s27, 1
    %p328 = por %p326, %p327
    %p330 = scmp.ne.s32.totalorder %s313, %s329
    %p331 = scmp.eq.s32.totalorder %s27, 0
    %p332 = por %p330, %p331
    %p333 = scmp.le.s32.totalorder 1, %s21
    %p334 = scmp.lt.s32.totalorder %s21, 3
    %p335 = pnand %p333, %p334
    %p336 = pneg %p335
    // Predicated region
    $region9: #{tpu_custom_call.1} parent=5 // pred_check
      _
    $region10: #{tpu_custom_call.1} parent=5 // pred_check_branch
      %338 = sbr.rel (%p335) target = $region12
    $region11: #{tpu_custom_call.1} parent=5 // pred_region
      %s339 = ssub.s32 %s21, 1
      // Predicated region
      $region13: #{tpu_custom_call.1} parent=11 // pred_check
        %p340 = pneg %p68
      $region14: #{tpu_custom_call.1} parent=11 // pred_check_branch
        %342 = sbr.rel (%p340) target = $region16
      $region15: #{tpu_custom_call.1} parent=11 // pred_region
        _
      $region16: #{tpu_custom_call.1} parent=11 // pred_fallthru
        _
      // Predicated region
      $region17: #{tpu_custom_call.1} parent=11 // pred_check
        %p343 = pneg %p89
      $region18: #{tpu_custom_call.1} parent=11 // pred_check_branch
        %345 = sbr.rel (%p343) target = $region20
      $region19: #{tpu_custom_call.1} parent=11 // pred_region
        _
      $region20: #{tpu_custom_call.1} parent=11 // pred_fallthru
        _
      // Predicated region
      $region21: #{tpu_custom_call.1} parent=11 // pred_check
        %p346 = pneg %p110
      $region22: #{tpu_custom_call.1} parent=11 // pred_check_branch
        %348 = sbr.rel (%p346) target = $region24
      $region23: #{tpu_custom_call.1} parent=11 // pred_region
        _
      $region24: #{tpu_custom_call.1} parent=11 // pred_fallthru
        _
      // Predicated region
      $region25: #{tpu_custom_call.1} parent=11 // pred_check
        %p349 = pneg %p131
      $region26: #{tpu_custom_call.1} parent=11 // pred_check_branch
        %351 = sbr.rel (%p349) target = $region28
      $region27: #{tpu_custom_call.1} parent=11 // pred_region
        _
      $region28: #{tpu_custom_call.1} parent=11 // pred_fallthru
        _
      // Predicated region
      $region29: #{tpu_custom_call.1} parent=11 // pred_check
        %p352 = pneg %p152
      $region30: #{tpu_custom_call.1} parent=11 // pred_check_branch
        %354 = sbr.rel (%p352) target = $region32
      $region31: #{tpu_custom_call.1} parent=11 // pred_region
        _
      $region32: #{tpu_custom_call.1} parent=11 // pred_fallthru
        _
      // Predicated region
      $region33: #{tpu_custom_call.1} parent=11 // pred_check
        %p355 = pneg %p173
      $region34: #{tpu_custom_call.1} parent=11 // pred_check_branch
        %357 = sbr.rel (%p355) target = $region36
      $region35: #{tpu_custom_call.1} parent=11 // pred_region
        _
      $region36: #{tpu_custom_call.1} parent=11 // pred_fallthru
        _
      // Predicated region
      $region37: #{tpu_custom_call.1} parent=11 // pred_check
        %p358 = pneg %p194
      $region38: #{tpu_custom_call.1} parent=11 // pred_check_branch
        %360 = sbr.rel (%p358) target = $region40
      $region39: #{tpu_custom_call.1} parent=11 // pred_region
        _
      $region40: #{tpu_custom_call.1} parent=11 // pred_fallthru
        _
      // Predicated region
      $region41: #{tpu_custom_call.1} parent=11 // pred_check
        %p361 = pneg %p215
      $region42: #{tpu_custom_call.1} parent=11 // pred_check_branch
        %363 = sbr.rel (%p361) target = $region44
      $region43: #{tpu_custom_call.1} parent=11 // pred_region
        _
      $region44: #{tpu_custom_call.1} parent=11 // pred_fallthru
        _
      // Predicated region
      $region45: #{tpu_custom_call.1} parent=11 // pred_check
        %p364 = pneg %p236
      $region46: #{tpu_custom_call.1} parent=11 // pred_check_branch
        %366 = sbr.rel (%p364) target = $region48
      $region47: #{tpu_custom_call.1} parent=11 // pred_region
        _
      $region48: #{tpu_custom_call.1} parent=11 // pred_fallthru
        _
      // Predicated region
      $region49: #{tpu_custom_call.1} parent=11 // pred_check
        %p367 = pneg %p257
      $region50: #{tpu_custom_call.1} parent=11 // pred_check_branch
        %369 = sbr.rel (%p367) target = $region52
      $region51: #{tpu_custom_call.1} parent=11 // pred_region
        _
      $region52: #{tpu_custom_call.1} parent=11 // pred_fallthru
        _
      // Predicated region
      $region53: #{tpu_custom_call.1} parent=11 // pred_check
        %p370 = pneg %p278
      $region54: #{tpu_custom_call.1} parent=11 // pred_check_branch
        %372 = sbr.rel (%p370) target = $region56
      $region55: #{tpu_custom_call.1} parent=11 // pred_region
        _
      $region56: #{tpu_custom_call.1} parent=11 // pred_fallthru
        _
      // Predicated region
      $region57: #{tpu_custom_call.1} parent=11 // pred_check
        %p373 = pneg %p299
      $region58: #{tpu_custom_call.1} parent=11 // pred_check_branch
        %375 = sbr.rel (%p373) target = $region60
      $region59: #{tpu_custom_call.1} parent=11 // pred_region
        _
      $region60: #{tpu_custom_call.1} parent=11 // pred_fallthru
        _
    $region12: #{tpu_custom_call.1} parent=5 // pred_fallthru
      _
    %p376 = scmp.lt.s32.totalorder %s21, 2
    // Predicated region
    $region61: #{tpu_custom_call.1} parent=5 // pred_check
      %p377 = pneg %p376
    $region62: #{tpu_custom_call.1} parent=5 // pred_check_branch
      %379 = sbr.rel (%p377) target = $region64
    $region63: #{tpu_custom_call.1} parent=5 // pred_region
      // Predicated region
      $region65: #{tpu_custom_call.1} parent=63 // pred_check
        %p380 = pneg %p41
      $region66: #{tpu_custom_call.1} parent=63 // pred_check_branch
        %382 = sbr.rel (%p380) target = $region68
      $region67: #{tpu_custom_call.1} parent=63 // pred_region
        %p383 = scmp.lt.s32.totalorder %s21, 1
        %s384 = scalar_select %p383, %s21, 1
        %s385 = smul.addr %s384, 54
        %s386 = smul.addr %s385, 8
        %s387 = scalar_lea.vmem %s0, %s386
      $region68: #{tpu_custom_call.1} parent=63 // pred_fallthru
        _
    $region64: #{tpu_custom_call.1} parent=5 // pred_fallthru
      _
    %p388 = scmp.le.s32.totalorder 1, %s21
    %p389 = scmp.lt.s32.totalorder %s21, 3
    %p390 = pnand %p388, %p389
    %p391 = pneg %p390
    // Predicated region
    $region69: #{tpu_custom_call.1} parent=5 // pred_check
      _
    $region70: #{tpu_custom_call.1} parent=5 // pred_check_branch
      %393 = sbr.rel (%p390) target = $region72
    $region71: #{tpu_custom_call.1} parent=5 // pred_region
      %s394 = ssub.s32 %s21, 1
      %p395 = scmp.lt.s32.totalorder %s26, 1
      %s396 = scalar_select %p395, %s26, 1
      %s397 = smul.addr %s396, 54
      %s398 = smul.addr %s397, 8
      %s399 = scalar_lea.vmem %s0, %s398
      %p400 = pneg %p47
      %p401 = pneg %p44
      %p402 = pneg %p68
      %p403 = pneg %p65
      %p404 = pneg %p89
      %p405 = pneg %p86
      %p406 = pneg %p110
      %p407 = pneg %p107
      %p408 = pneg %p131
      %p409 = pneg %p128
      %p410 = pneg %p152
      %p411 = pneg %p149
      %p412 = pneg %p173
      %p413 = pneg %p170
      %p414 = pneg %p194
      %p415 = pneg %p191
      %p416 = pneg %p215
      %p417 = pneg %p212
      %p418 = pneg %p236
      %p419 = pneg %p233
      %p420 = pneg %p257
      %p421 = pneg %p254
      %p422 = pneg %p278
      %p423 = pneg %p275
      %p424 = pneg %p299
      %p425 = pneg %p296
      %p426 = pneg %p325
      %p427 = pneg %p322
      %p428 = scmp.lt.s32.totalorder %s26, 1
      %s429 = scalar_select %p428, %s26, 1
      %s430 = smul.addr %s429, 32
      %s431 = smul.addr %s430, 8
      %s432 = scalar_lea.vmem %s13, %s431
      %p433 = scmp.lt.s32.totalorder %s26, 1
      %s434 = scalar_select %p433, %s26, 1
      %s435 = smul.addr %s434, 54
      %s436 = smul.addr %s435, 8
      %s437 = scalar_lea.vmem %s0, %s436
      %p438 = scmp.lt.s32.totalorder %s26, 1
      %s439 = scalar_select %p438, %s26, 1
      %s440 = smul.addr %s439, 32
      %s441 = smul.addr %s440, 8
      %s442 = scalar_lea.vmem %s13, %s441
      %v443 = vld [vmem:[%s437] sm:$0xff]
      %v444 = vld [vmem:[%s437 + $0x8] sm:$0xff]
      %v445 = vld [vmem:[%s437 + $0x10] sm:$0x3]
      %v446 = vld [vmem:[%s437 + $0x18] sm:$0xff]
      %v447 = vld [vmem:[%s437 + $0x20] sm:$0xff]
      %v448 = vld [vmem:[%s437 + $0x28] sm:$0x3]
      %v449 = vld [vmem:[%s437 + $0x30] sm:$0xff]
      %v450 = vld [vmem:[%s437 + $0x38] sm:$0xff]
      %v451 = vld [vmem:[%s437 + $0x40] sm:$0x3]
      %v452 = vld [vmem:[%s437 + $0x48] sm:$0xff]
      %v453 = vld [vmem:[%s437 + $0x50] sm:$0xff]
      %v454 = vld [vmem:[%s437 + $0x58] sm:$0x3]
      %v455 = vld [vmem:[%s437 + $0x60] sm:$0xff]
      %v456 = vld [vmem:[%s437 + $0x68] sm:$0xff]
      %v457 = vld [vmem:[%s437 + $0x70] sm:$0x3]
      %v458 = vld [vmem:[%s437 + $0x78] sm:$0xff]
      %v459 = vld [vmem:[%s437 + $0x80] sm:$0xff]
      %v460 = vld [vmem:[%s437 + $0x88] sm:$0x3]
      %v461 = vld [vmem:[%s437 + $0x90] sm:$0xff]
      %v462 = vld [vmem:[%s437 + $0x98] sm:$0xff]
      %v463 = vld [vmem:[%s437 + $0xa0] sm:$0x3]
      %v464 = vld [vmem:[%s437 + $0xa8] sm:$0xff]
      %v465 = vld [vmem:[%s437 + $0xb0] sm:$0xff]
      %v466 = vld [vmem:[%s437 + $0xb8] sm:$0x3]
      %v467 = vld [vmem:[%s437 + $0xc0] sm:$0xff]
      %v468 = vld [vmem:[%s437 + $0xc8] sm:$0xff]
      %v469 = vld [vmem:[%s437 + $0xd0] sm:$0x3]
      %v470 = vld [vmem:[%s437 + $0xd8] sm:$0xff]
      %v471 = vld [vmem:[%s437 + $0xe0] sm:$0xff]
      %v472 = vld [vmem:[%s437 + $0xe8] sm:$0x3]
      %v473 = vld [vmem:[%s437 + $0xf0] sm:$0xff]
      %v474 = vld [vmem:[%s437 + $0xf8] sm:$0xff]
      %v475 = vld [vmem:[%s437 + $0x100] sm:$0x3]
      %v476 = vld [vmem:[%s437 + $0x108] sm:$0xff]
      %v477 = vld [vmem:[%s437 + $0x110] sm:$0xff]
      %v478 = vld [vmem:[%s437 + $0x118] sm:$0x3]
      %v479 = vld [vmem:[%s437 + $0x120] sm:$0xff]
      %v480 = vld [vmem:[%s437 + $0x128] sm:$0xff]
      %v481 = vld [vmem:[%s437 + $0x130] sm:$0x3]
      %v482 = vld [vmem:[%s437 + $0x138] sm:$0xff]
      %v483 = vld [vmem:[%s437 + $0x140] sm:$0xff]
      %v484 = vld [vmem:[%s437 + $0x148] sm:$0x3]
      %v485 = vld [vmem:[%s437 + $0x150] sm:$0xff]
      %v486 = vld [vmem:[%s437 + $0x158] sm:$0xff]
      %v487 = vld [vmem:[%s437 + $0x160] sm:$0x3]
      %v488 = vld [vmem:[%s437 + $0x168] sm:$0xff]
      %v489 = vld [vmem:[%s437 + $0x170] sm:$0xff]
      %v490 = vld [vmem:[%s437 + $0x178] sm:$0x3]
      %v491 = vld [vmem:[%s437 + $0x180] sm:$0xff]
      %v492 = vld [vmem:[%s437 + $0x188] sm:$0xff]
      %v493 = vld [vmem:[%s437 + $0x190] sm:$0x3]
      %v494 = vld [vmem:[%s437 + $0x198] sm:$0xff]
      %v495 = vld [vmem:[%s437 + $0x1a0] sm:$0xff]
      %v496 = vld [vmem:[%s437 + $0x1a8] sm:$0x3]
      %vm545 = vcmask 1046528
      %v546 = vrot.slane %v443, 1
      %v547 = vrot.slane %v444, 1
      %v548 = vsel %vm545, %v546, %v547
      %v549 = vrot.slane %v445, 1
      %v550 = vsel %vm545, %v547, %v549
      %v551 = vrot.slane %v446, 1
      %v552 = vrot.slane %v447, 1
      %v553 = vsel %vm545, %v551, %v552
      %v554 = vrot.slane %v448, 1
      %v555 = vsel %vm545, %v552, %v554
      %v556 = vrot.slane %v449, 1
      %v557 = vrot.slane %v450, 1
      %v558 = vsel %vm545, %v556, %v557
      %v559 = vrot.slane %v451, 1
      %v560 = vsel %vm545, %v557, %v559
      %v561 = vrot.slane %v452, 1
      %v562 = vrot.slane %v453, 1
      %v563 = vsel %vm545, %v561, %v562
      %v564 = vrot.slane %v454, 1
      %v565 = vsel %vm545, %v562, %v564
      %v566 = vrot.slane %v455, 1
      %v567 = vrot.slane %v456, 1
      %v568 = vsel %vm545, %v566, %v567
      %v569 = vrot.slane %v457, 1
      %v570 = vsel %vm545, %v567, %v569
      %v571 = vrot.slane %v458, 1
      %v572 = vrot.slane %v459, 1
      %v573 = vsel %vm545, %v571, %v572
      %v574 = vrot.slane %v460, 1
      %v575 = vsel %vm545, %v572, %v574
      %v576 = vrot.slane %v461, 1
      %v577 = vrot.slane %v462, 1
      %v578 = vsel %vm545, %v576, %v577
      %v579 = vrot.slane %v463, 1
      %v580 = vsel %vm545, %v577, %v579
      %v581 = vrot.slane %v464, 1
      %v582 = vrot.slane %v465, 1
      %v583 = vsel %vm545, %v581, %v582
      %v584 = vrot.slane %v466, 1
      %v585 = vsel %vm545, %v582, %v584
      %v586 = vrot.slane %v467, 1
      %v587 = vrot.slane %v468, 1
      %v588 = vsel %vm545, %v586, %v587
      %v589 = vrot.slane %v469, 1
      %v590 = vsel %vm545, %v587, %v589
      %v591 = vrot.slane %v470, 1
      %v592 = vrot.slane %v471, 1
      %v593 = vsel %vm545, %v591, %v592
      %v594 = vrot.slane %v472, 1
      %v595 = vsel %vm545, %v592, %v594
      %v596 = vrot.slane %v473, 1
      %v597 = vrot.slane %v474, 1
      %v598 = vsel %vm545, %v596, %v597
      %v599 = vrot.slane %v475, 1
      %v600 = vsel %vm545, %v597, %v599
      %v601 = vrot.slane %v476, 1
      %v602 = vrot.slane %v477, 1
      %v603 = vsel %vm545, %v601, %v602
      %v604 = vrot.slane %v478, 1
      %v605 = vsel %vm545, %v602, %v604
      %v606 = vrot.slane %v479, 1
      %v607 = vrot.slane %v480, 1
      %v608 = vsel %vm545, %v606, %v607
      %v609 = vrot.slane %v481, 1
      %v610 = vsel %vm545, %v607, %v609
      %v611 = vrot.slane %v482, 1
      %v612 = vrot.slane %v483, 1
      %v613 = vsel %vm545, %v611, %v612
      %v614 = vrot.slane %v484, 1
      %v615 = vsel %vm545, %v612, %v614
      %v616 = vrot.slane %v485, 1
      %v617 = vrot.slane %v486, 1
      %v618 = vsel %vm545, %v616, %v617
      %v619 = vrot.slane %v487, 1
      %v620 = vsel %vm545, %v617, %v619
      %v621 = vrot.slane %v488, 1
      %v622 = vrot.slane %v489, 1
      %v623 = vsel %vm545, %v621, %v622
      %v624 = vrot.slane %v490, 1
      %v625 = vsel %vm545, %v622, %v624
      %vm626 = vcmask 1045504
      %v627 = vrot.slane %v443, 2
      %v628 = vrot.slane %v444, 2
      %v629 = vsel %vm626, %v627, %v628
      %v630 = vrot.slane %v445, 2
      %v631 = vsel %vm626, %v628, %v630
      %v632 = vrot.slane %v446, 2
      %v633 = vrot.slane %v447, 2
      %v634 = vsel %vm626, %v632, %v633
      %v635 = vrot.slane %v448, 2
      %v636 = vsel %vm626, %v633, %v635
      %v637 = vrot.slane %v449, 2
      %v638 = vrot.slane %v450, 2
      %v639 = vsel %vm626, %v637, %v638
      %v640 = vrot.slane %v451, 2
      %v641 = vsel %vm626, %v638, %v640
      %v642 = vrot.slane %v452, 2
      %v643 = vrot.slane %v453, 2
      %v644 = vsel %vm626, %v642, %v643
      %v645 = vrot.slane %v454, 2
      %v646 = vsel %vm626, %v643, %v645
      %v647 = vrot.slane %v455, 2
      %v648 = vrot.slane %v456, 2
      %v649 = vsel %vm626, %v647, %v648
      %v650 = vrot.slane %v457, 2
      %v651 = vsel %vm626, %v648, %v650
      %v652 = vrot.slane %v458, 2
      %v653 = vrot.slane %v459, 2
      %v654 = vsel %vm626, %v652, %v653
      %v655 = vrot.slane %v460, 2
      %v656 = vsel %vm626, %v653, %v655
      %v657 = vrot.slane %v461, 2
      %v658 = vrot.slane %v462, 2
      %v659 = vsel %vm626, %v657, %v658
      %v660 = vrot.slane %v463, 2
      %v661 = vsel %vm626, %v658, %v660
      %v662 = vrot.slane %v464, 2
      %v663 = vrot.slane %v465, 2
      %v664 = vsel %vm626, %v662, %v663
      %v665 = vrot.slane %v466, 2
      %v666 = vsel %vm626, %v663, %v665
      %v667 = vrot.slane %v467, 2
      %v668 = vrot.slane %v468, 2
      %v669 = vsel %vm626, %v667, %v668
      %v670 = vrot.slane %v469, 2
      %v671 = vsel %vm626, %v668, %v670
      %v672 = vrot.slane %v470, 2
      %v673 = vrot.slane %v471, 2
      %v674 = vsel %vm626, %v672, %v673
      %v675 = vrot.slane %v472, 2
      %v676 = vsel %vm626, %v673, %v675
      %v677 = vrot.slane %v473, 2
      %v678 = vrot.slane %v474, 2
      %v679 = vsel %vm626, %v677, %v678
      %v680 = vrot.slane %v475, 2
      %v681 = vsel %vm626, %v678, %v680
      %v682 = vrot.slane %v476, 2
      %v683 = vrot.slane %v477, 2
      %v684 = vsel %vm626, %v682, %v683
      %v685 = vrot.slane %v478, 2
      %v686 = vsel %vm626, %v683, %v685
      %v687 = vrot.slane %v479, 2
      %v688 = vrot.slane %v480, 2
      %v689 = vsel %vm626, %v687, %v688
      %v690 = vrot.slane %v481, 2
      %v691 = vsel %vm626, %v688, %v690
      %v692 = vrot.slane %v482, 2
      %v693 = vrot.slane %v483, 2
      %v694 = vsel %vm626, %v692, %v693
      %v695 = vrot.slane %v484, 2
      %v696 = vsel %vm626, %v693, %v695
      %v697 = vrot.slane %v485, 2
      %v698 = vrot.slane %v486, 2
      %v699 = vsel %vm626, %v697, %v698
      %v700 = vrot.slane %v487, 2
      %v701 = vsel %vm626, %v698, %v700
      %v702 = vrot.slane %v488, 2
      %v703 = vrot.slane %v489, 2
      %v704 = vsel %vm626, %v702, %v703
      %v705 = vrot.slane %v490, 2
      %v706 = vsel %vm626, %v703, %v705
      %v710 = vrot.slane %v491, 1
      %v711 = vrot.slane %v492, 1
      %v712 = vsel %vm545, %v710, %v711
      %v713 = vrot.slane %v493, 1
      %v714 = vsel %vm545, %v711, %v713
      %v747 = vrot.slane %v491, 2
      %v748 = vrot.slane %v492, 2
      %v749 = vsel %vm626, %v747, %v748
      %v750 = vrot.slane %v493, 2
      %v751 = vsel %vm626, %v748, %v750
      %v755 = vrot.slane %v494, 1
      %v756 = vrot.slane %v495, 1
      %v757 = vsel %vm545, %v755, %v756
      %v758 = vrot.slane %v496, 1
      %v759 = vsel %vm545, %v756, %v758
      %v760 = vrot.slane %v494, 2
      %v761 = vrot.slane %v495, 2
      %v762 = vsel %vm626, %v760, %v761
      %v763 = vrot.slane %v496, 2
      %v764 = vsel %vm626, %v761, %v763
      %765 = vrot.lane.b32.xlu0 %v548, 32
      %v766 = vpop.permute.xlu0 %765
      %767 = vrot.lane.b32.xlu0 %v550, 32
      %v768 = vpop.permute.xlu0 %767
      %769 = vrot.lane.b32.xlu0 %v553, 32
      %v770 = vpop.permute.xlu0 %769
      %771 = vrot.lane.b32.xlu0 %v555, 32
      %v772 = vpop.permute.xlu0 %771
      %773 = vrot.lane.b32.xlu0 %v558, 32
      %v774 = vpop.permute.xlu0 %773
      %775 = vrot.lane.b32.xlu0 %v560, 32
      %v776 = vpop.permute.xlu0 %775
      %777 = vrot.lane.b32.xlu0 %v563, 32
      %v778 = vpop.permute.xlu0 %777
      %779 = vrot.lane.b32.xlu0 %v565, 32
      %v780 = vpop.permute.xlu0 %779
      %781 = vrot.lane.b32.xlu0 %v568, 32
      %v782 = vpop.permute.xlu0 %781
      %783 = vrot.lane.b32.xlu0 %v570, 32
      %v784 = vpop.permute.xlu0 %783
      %785 = vrot.lane.b32.xlu0 %v573, 32
      %v786 = vpop.permute.xlu0 %785
      %787 = vrot.lane.b32.xlu0 %v575, 32
      %v788 = vpop.permute.xlu0 %787
      %789 = vrot.lane.b32.xlu0 %v578, 32
      %v790 = vpop.permute.xlu0 %789
      %791 = vrot.lane.b32.xlu0 %v580, 32
      %v792 = vpop.permute.xlu0 %791
      %793 = vrot.lane.b32.xlu0 %v583, 32
      %v794 = vpop.permute.xlu0 %793
      %795 = vrot.lane.b32.xlu0 %v585, 32
      %v796 = vpop.permute.xlu0 %795
      %797 = vrot.lane.b32.xlu0 %v588, 32
      %v798 = vpop.permute.xlu0 %797
      %799 = vrot.lane.b32.xlu0 %v590, 32
      %v800 = vpop.permute.xlu0 %799
      %801 = vrot.lane.b32.xlu0 %v593, 32
      %v802 = vpop.permute.xlu0 %801
      %803 = vrot.lane.b32.xlu0 %v595, 32
      %v804 = vpop.permute.xlu0 %803
      %805 = vrot.lane.b32.xlu0 %v598, 32
      %v806 = vpop.permute.xlu0 %805
      %807 = vrot.lane.b32.xlu0 %v600, 32
      %v808 = vpop.permute.xlu0 %807
      %809 = vrot.lane.b32.xlu0 %v603, 32
      %v810 = vpop.permute.xlu0 %809
      %811 = vrot.lane.b32.xlu0 %v605, 32
      %v812 = vpop.permute.xlu0 %811
      %813 = vrot.lane.b32.xlu0 %v608, 32
      %v814 = vpop.permute.xlu0 %813
      %815 = vrot.lane.b32.xlu0 %v610, 32
      %v816 = vpop.permute.xlu0 %815
      %817 = vrot.lane.b32.xlu0 %v613, 32
      %v818 = vpop.permute.xlu0 %817
      %819 = vrot.lane.b32.xlu0 %v615, 32
      %v820 = vpop.permute.xlu0 %819
      %821 = vrot.lane.b32.xlu0 %v618, 32
      %v822 = vpop.permute.xlu0 %821
      %823 = vrot.lane.b32.xlu0 %v620, 32
      %v824 = vpop.permute.xlu0 %823
      %825 = vrot.lane.b32.xlu0 %v623, 32
      %v826 = vpop.permute.xlu0 %825
      %827 = vrot.lane.b32.xlu0 %v625, 32
      %v828 = vpop.permute.xlu0 %827
      %861 = vrot.lane.b32.xlu0 %v629, 64
      %v862 = vpop.permute.xlu0 %861
      %863 = vrot.lane.b32.xlu0 %v631, 64
      %v864 = vpop.permute.xlu0 %863
      %865 = vrot.lane.b32.xlu0 %v634, 64
      %v866 = vpop.permute.xlu0 %865
      %867 = vrot.lane.b32.xlu0 %v636, 64
      %v868 = vpop.permute.xlu0 %867
      %869 = vrot.lane.b32.xlu0 %v639, 64
      %v870 = vpop.permute.xlu0 %869
      %871 = vrot.lane.b32.xlu0 %v641, 64
      %v872 = vpop.permute.xlu0 %871
      %873 = vrot.lane.b32.xlu0 %v644, 64
      %v874 = vpop.permute.xlu0 %873
      %875 = vrot.lane.b32.xlu0 %v646, 64
      %v876 = vpop.permute.xlu0 %875
      %877 = vrot.lane.b32.xlu0 %v649, 64
      %v878 = vpop.permute.xlu0 %877
      %879 = vrot.lane.b32.xlu0 %v651, 64
      %v880 = vpop.permute.xlu0 %879
      %881 = vrot.lane.b32.xlu0 %v654, 64
      %v882 = vpop.permute.xlu0 %881
      %883 = vrot.lane.b32.xlu0 %v656, 64
      %v884 = vpop.permute.xlu0 %883
      %885 = vrot.lane.b32.xlu0 %v659, 64
      %v886 = vpop.permute.xlu0 %885
      %887 = vrot.lane.b32.xlu0 %v661, 64
      %v888 = vpop.permute.xlu0 %887
      %889 = vrot.lane.b32.xlu0 %v664, 64
      %v890 = vpop.permute.xlu0 %889
      %891 = vrot.lane.b32.xlu0 %v666, 64
      %v892 = vpop.permute.xlu0 %891
      %893 = vrot.lane.b32.xlu0 %v669, 64
      %v894 = vpop.permute.xlu0 %893
      %895 = vrot.lane.b32.xlu0 %v671, 64
      %v896 = vpop.permute.xlu0 %895
      %897 = vrot.lane.b32.xlu0 %v674, 64
      %v898 = vpop.permute.xlu0 %897
      %899 = vrot.lane.b32.xlu0 %v676, 64
      %v900 = vpop.permute.xlu0 %899
      %901 = vrot.lane.b32.xlu0 %v679, 64
      %v902 = vpop.permute.xlu0 %901
      %903 = vrot.lane.b32.xlu0 %v681, 64
      %v904 = vpop.permute.xlu0 %903
      %905 = vrot.lane.b32.xlu0 %v684, 64
      %v906 = vpop.permute.xlu0 %905
      %907 = vrot.lane.b32.xlu0 %v686, 64
      %v908 = vpop.permute.xlu0 %907
      %909 = vrot.lane.b32.xlu0 %v689, 64
      %v910 = vpop.permute.xlu0 %909
      %911 = vrot.lane.b32.xlu0 %v691, 64
      %v912 = vpop.permute.xlu0 %911
      %913 = vrot.lane.b32.xlu0 %v694, 64
      %v914 = vpop.permute.xlu0 %913
      %915 = vrot.lane.b32.xlu0 %v696, 64
      %v916 = vpop.permute.xlu0 %915
      %917 = vrot.lane.b32.xlu0 %v699, 64
      %v918 = vpop.permute.xlu0 %917
      %919 = vrot.lane.b32.xlu0 %v701, 64
      %v920 = vpop.permute.xlu0 %919
      %921 = vrot.lane.b32.xlu0 %v704, 64
      %v922 = vpop.permute.xlu0 %921
      %923 = vrot.lane.b32.xlu0 %v706, 64
      %v924 = vpop.permute.xlu0 %923
      %957 = vrot.lane.b32.xlu0 %v446, 96
      %v958 = vpop.permute.xlu0 %957
      %959 = vrot.lane.b32.xlu0 %v447, 96
      %v960 = vpop.permute.xlu0 %959
      %961 = vrot.lane.b32.xlu0 %v449, 96
      %v962 = vpop.permute.xlu0 %961
      %963 = vrot.lane.b32.xlu0 %v450, 96
      %v964 = vpop.permute.xlu0 %963
      %965 = vrot.lane.b32.xlu0 %v452, 96
      %v966 = vpop.permute.xlu0 %965
      %967 = vrot.lane.b32.xlu0 %v453, 96
      %v968 = vpop.permute.xlu0 %967
      %969 = vrot.lane.b32.xlu0 %v455, 96
      %v970 = vpop.permute.xlu0 %969
      %971 = vrot.lane.b32.xlu0 %v456, 96
      %v972 = vpop.permute.xlu0 %971
      %973 = vrot.lane.b32.xlu0 %v458, 96
      %v974 = vpop.permute.xlu0 %973
      %975 = vrot.lane.b32.xlu0 %v459, 96
      %v976 = vpop.permute.xlu0 %975
      %977 = vrot.lane.b32.xlu0 %v461, 96
      %v978 = vpop.permute.xlu0 %977
      %979 = vrot.lane.b32.xlu0 %v462, 96
      %v980 = vpop.permute.xlu0 %979
      %981 = vrot.lane.b32.xlu0 %v464, 96
      %v982 = vpop.permute.xlu0 %981
      %983 = vrot.lane.b32.xlu0 %v465, 96
      %v984 = vpop.permute.xlu0 %983
      %985 = vrot.lane.b32.xlu0 %v467, 96
      %v986 = vpop.permute.xlu0 %985
      %987 = vrot.lane.b32.xlu0 %v468, 96
      %v988 = vpop.permute.xlu0 %987
      %989 = vrot.lane.b32.xlu0 %v470, 96
      %v990 = vpop.permute.xlu0 %989
      %991 = vrot.lane.b32.xlu0 %v471, 96
      %v992 = vpop.permute.xlu0 %991
      %993 = vrot.lane.b32.xlu0 %v473, 96
      %v994 = vpop.permute.xlu0 %993
      %995 = vrot.lane.b32.xlu0 %v474, 96
      %v996 = vpop.permute.xlu0 %995
      %997 = vrot.lane.b32.xlu0 %v476, 96
      %v998 = vpop.permute.xlu0 %997
      %999 = vrot.lane.b32.xlu0 %v477, 96
      %v1000 = vpop.permute.xlu0 %999
      %1001 = vrot.lane.b32.xlu0 %v479, 96
      %v1002 = vpop.permute.xlu0 %1001
      %1003 = vrot.lane.b32.xlu0 %v480, 96
      %v1004 = vpop.permute.xlu0 %1003
      %1005 = vrot.lane.b32.xlu0 %v482, 96
      %v1006 = vpop.permute.xlu0 %1005
      %1007 = vrot.lane.b32.xlu0 %v483, 96
      %v1008 = vpop.permute.xlu0 %1007
      %1009 = vrot.lane.b32.xlu0 %v485, 96
      %v1010 = vpop.permute.xlu0 %1009
      %1011 = vrot.lane.b32.xlu0 %v486, 96
      %v1012 = vpop.permute.xlu0 %1011
      %1013 = vrot.lane.b32.xlu0 %v488, 96
      %v1014 = vpop.permute.xlu0 %1013
      %1015 = vrot.lane.b32.xlu0 %v489, 96
      %v1016 = vpop.permute.xlu0 %1015
      %1017 = vrot.lane.b32.xlu0 %v491, 96
      %v1018 = vpop.permute.xlu0 %1017
      %1019 = vrot.lane.b32.xlu0 %v492, 96
      %v1020 = vpop.permute.xlu0 %1019
      %1053 = vrot.lane.b32.xlu0 %v634, 32
      %v1054 = vpop.permute.xlu0 %1053
      %1055 = vrot.lane.b32.xlu0 %v636, 32
      %v1056 = vpop.permute.xlu0 %1055
      %1057 = vrot.lane.b32.xlu0 %v639, 32
      %v1058 = vpop.permute.xlu0 %1057
      %1059 = vrot.lane.b32.xlu0 %v641, 32
      %v1060 = vpop.permute.xlu0 %1059
      %1061 = vrot.lane.b32.xlu0 %v644, 32
      %v1062 = vpop.permute.xlu0 %1061
      %1063 = vrot.lane.b32.xlu0 %v646, 32
      %v1064 = vpop.permute.xlu0 %1063
      %1065 = vrot.lane.b32.xlu0 %v649, 32
      %v1066 = vpop.permute.xlu0 %1065
      %1067 = vrot.lane.b32.xlu0 %v651, 32
      %v1068 = vpop.permute.xlu0 %1067
      %1069 = vrot.lane.b32.xlu0 %v654, 32
      %v1070 = vpop.permute.xlu0 %1069
      %1071 = vrot.lane.b32.xlu0 %v656, 32
      %v1072 = vpop.permute.xlu0 %1071
      %1073 = vrot.lane.b32.xlu0 %v659, 32
      %v1074 = vpop.permute.xlu0 %1073
      %1075 = vrot.lane.b32.xlu0 %v661, 32
      %v1076 = vpop.permute.xlu0 %1075
      %1077 = vrot.lane.b32.xlu0 %v664, 32
      %v1078 = vpop.permute.xlu0 %1077
      %1079 = vrot.lane.b32.xlu0 %v666, 32
      %v1080 = vpop.permute.xlu0 %1079
      %1081 = vrot.lane.b32.xlu0 %v669, 32
      %v1082 = vpop.permute.xlu0 %1081
      %1083 = vrot.lane.b32.xlu0 %v671, 32
      %v1084 = vpop.permute.xlu0 %1083
      %1085 = vrot.lane.b32.xlu0 %v674, 32
      %v1086 = vpop.permute.xlu0 %1085
      %1087 = vrot.lane.b32.xlu0 %v676, 32
      %v1088 = vpop.permute.xlu0 %1087
      %1089 = vrot.lane.b32.xlu0 %v679, 32
      %v1090 = vpop.permute.xlu0 %1089
      %1091 = vrot.lane.b32.xlu0 %v681, 32
      %v1092 = vpop.permute.xlu0 %1091
      %1093 = vrot.lane.b32.xlu0 %v684, 32
      %v1094 = vpop.permute.xlu0 %1093
      %1095 = vrot.lane.b32.xlu0 %v686, 32
      %v1096 = vpop.permute.xlu0 %1095
      %1097 = vrot.lane.b32.xlu0 %v689, 32
      %v1098 = vpop.permute.xlu0 %1097
      %1099 = vrot.lane.b32.xlu0 %v691, 32
      %v1100 = vpop.permute.xlu0 %1099
      %1101 = vrot.lane.b32.xlu0 %v694, 32
      %v1102 = vpop.permute.xlu0 %1101
      %1103 = vrot.lane.b32.xlu0 %v696, 32
      %v1104 = vpop.permute.xlu0 %1103
      %1105 = vrot.lane.b32.xlu0 %v699, 32
      %v1106 = vpop.permute.xlu0 %1105
      %1107 = vrot.lane.b32.xlu0 %v701, 32
      %v1108 = vpop.permute.xlu0 %1107
      %1109 = vrot.lane.b32.xlu0 %v704, 32
      %v1110 = vpop.permute.xlu0 %1109
      %1111 = vrot.lane.b32.xlu0 %v706, 32
      %v1112 = vpop.permute.xlu0 %1111
      %1113 = vrot.lane.b32.xlu0 %v749, 32
      %v1114 = vpop.permute.xlu0 %1113
      %1115 = vrot.lane.b32.xlu0 %v751, 32
      %v1116 = vpop.permute.xlu0 %1115
      %1149 = vrot.lane.b32.xlu0 %v449, 64
      %v1150 = vpop.permute.xlu0 %1149
      %1151 = vrot.lane.b32.xlu0 %v450, 64
      %v1152 = vpop.permute.xlu0 %1151
      %1153 = vrot.lane.b32.xlu0 %v452, 64
      %v1154 = vpop.permute.xlu0 %1153
      %1155 = vrot.lane.b32.xlu0 %v453, 64
      %v1156 = vpop.permute.xlu0 %1155
      %1157 = vrot.lane.b32.xlu0 %v455, 64
      %v1158 = vpop.permute.xlu0 %1157
      %1159 = vrot.lane.b32.xlu0 %v456, 64
      %v1160 = vpop.permute.xlu0 %1159
      %1161 = vrot.lane.b32.xlu0 %v458, 64
      %v1162 = vpop.permute.xlu0 %1161
      %1163 = vrot.lane.b32.xlu0 %v459, 64
      %v1164 = vpop.permute.xlu0 %1163
      %1165 = vrot.lane.b32.xlu0 %v461, 64
      %v1166 = vpop.permute.xlu0 %1165
      %1167 = vrot.lane.b32.xlu0 %v462, 64
      %v1168 = vpop.permute.xlu0 %1167
      %1169 = vrot.lane.b32.xlu0 %v464, 64
      %v1170 = vpop.permute.xlu0 %1169
      %1171 = vrot.lane.b32.xlu0 %v465, 64
      %v1172 = vpop.permute.xlu0 %1171
      %1173 = vrot.lane.b32.xlu0 %v467, 64
      %v1174 = vpop.permute.xlu0 %1173
      %1175 = vrot.lane.b32.xlu0 %v468, 64
      %v1176 = vpop.permute.xlu0 %1175
      %1177 = vrot.lane.b32.xlu0 %v470, 64
      %v1178 = vpop.permute.xlu0 %1177
      %1179 = vrot.lane.b32.xlu0 %v471, 64
      %v1180 = vpop.permute.xlu0 %1179
      %1181 = vrot.lane.b32.xlu0 %v473, 64
      %v1182 = vpop.permute.xlu0 %1181
      %1183 = vrot.lane.b32.xlu0 %v474, 64
      %v1184 = vpop.permute.xlu0 %1183
      %1185 = vrot.lane.b32.xlu0 %v476, 64
      %v1186 = vpop.permute.xlu0 %1185
      %1187 = vrot.lane.b32.xlu0 %v477, 64
      %v1188 = vpop.permute.xlu0 %1187
      %1189 = vrot.lane.b32.xlu0 %v479, 64
      %v1190 = vpop.permute.xlu0 %1189
      %1191 = vrot.lane.b32.xlu0 %v480, 64
      %v1192 = vpop.permute.xlu0 %1191
      %1193 = vrot.lane.b32.xlu0 %v482, 64
      %v1194 = vpop.permute.xlu0 %1193
      %1195 = vrot.lane.b32.xlu0 %v483, 64
      %v1196 = vpop.permute.xlu0 %1195
      %1197 = vrot.lane.b32.xlu0 %v485, 64
      %v1198 = vpop.permute.xlu0 %1197
      %1199 = vrot.lane.b32.xlu0 %v486, 64
      %v1200 = vpop.permute.xlu0 %1199
      %1201 = vrot.lane.b32.xlu0 %v488, 64
      %v1202 = vpop.permute.xlu0 %1201
      %1203 = vrot.lane.b32.xlu0 %v489, 64
      %v1204 = vpop.permute.xlu0 %1203
      %1205 = vrot.lane.b32.xlu0 %v491, 64
      %v1206 = vpop.permute.xlu0 %1205
      %1207 = vrot.lane.b32.xlu0 %v492, 64
      %v1208 = vpop.permute.xlu0 %1207
      %1209 = vrot.lane.b32.xlu0 %v494, 64
      %v1210 = vpop.permute.xlu0 %1209
      %1211 = vrot.lane.b32.xlu0 %v495, 64
      %v1212 = vpop.permute.xlu0 %1211
      %1245 = vrot.lane.b32.xlu0 %v558, 96
      %v1246 = vpop.permute.xlu0 %1245
      %1247 = vrot.lane.b32.xlu0 %v560, 96
      %v1248 = vpop.permute.xlu0 %1247
      %1249 = vrot.lane.b32.xlu0 %v563, 96
      %v1250 = vpop.permute.xlu0 %1249
      %1251 = vrot.lane.b32.xlu0 %v565, 96
      %v1252 = vpop.permute.xlu0 %1251
      %1253 = vrot.lane.b32.xlu0 %v568, 96
      %v1254 = vpop.permute.xlu0 %1253
      %1255 = vrot.lane.b32.xlu0 %v570, 96
      %v1256 = vpop.permute.xlu0 %1255
      %1257 = vrot.lane.b32.xlu0 %v573, 96
      %v1258 = vpop.permute.xlu0 %1257
      %1259 = vrot.lane.b32.xlu0 %v575, 96
      %v1260 = vpop.permute.xlu0 %1259
      %1261 = vrot.lane.b32.xlu0 %v578, 96
      %v1262 = vpop.permute.xlu0 %1261
      %1263 = vrot.lane.b32.xlu0 %v580, 96
      %v1264 = vpop.permute.xlu0 %1263
      %1265 = vrot.lane.b32.xlu0 %v583, 96
      %v1266 = vpop.permute.xlu0 %1265
      %1267 = vrot.lane.b32.xlu0 %v585, 96
      %v1268 = vpop.permute.xlu0 %1267
      %1269 = vrot.lane.b32.xlu0 %v588, 96
      %v1270 = vpop.permute.xlu0 %1269
      %1271 = vrot.lane.b32.xlu0 %v590, 96
      %v1272 = vpop.permute.xlu0 %1271
      %1273 = vrot.lane.b32.xlu0 %v593, 96
      %v1274 = vpop.permute.xlu0 %1273
      %1275 = vrot.lane.b32.xlu0 %v595, 96
      %v1276 = vpop.permute.xlu0 %1275
      %1277 = vrot.lane.b32.xlu0 %v598, 96
      %v1278 = vpop.permute.xlu0 %1277
      %1279 = vrot.lane.b32.xlu0 %v600, 96
      %v1280 = vpop.permute.xlu0 %1279
      %1281 = vrot.lane.b32.xlu0 %v603, 96
      %v1282 = vpop.permute.xlu0 %1281
      %1283 = vrot.lane.b32.xlu0 %v605, 96
      %v1284 = vpop.permute.xlu0 %1283
      %1285 = vrot.lane.b32.xlu0 %v608, 96
      %v1286 = vpop.permute.xlu0 %1285
      %1287 = vrot.lane.b32.xlu0 %v610, 96
      %v1288 = vpop.permute.xlu0 %1287
      %1289 = vrot.lane.b32.xlu0 %v613, 96
      %v1290 = vpop.permute.xlu0 %1289
      %1291 = vrot.lane.b32.xlu0 %v615, 96
      %v1292 = vpop.permute.xlu0 %1291
      %1293 = vrot.lane.b32.xlu0 %v618, 96
      %v1294 = vpop.permute.xlu0 %1293
      %1295 = vrot.lane.b32.xlu0 %v620, 96
      %v1296 = vpop.permute.xlu0 %1295
      %1297 = vrot.lane.b32.xlu0 %v623, 96
      %v1298 = vpop.permute.xlu0 %1297
      %1299 = vrot.lane.b32.xlu0 %v625, 96
      %v1300 = vpop.permute.xlu0 %1299
      %1301 = vrot.lane.b32.xlu0 %v712, 96
      %v1302 = vpop.permute.xlu0 %1301
      %1303 = vrot.lane.b32.xlu0 %v714, 96
      %v1304 = vpop.permute.xlu0 %1303
      %1305 = vrot.lane.b32.xlu0 %v757, 96
      %v1306 = vpop.permute.xlu0 %1305
      %1307 = vrot.lane.b32.xlu0 %v759, 96
      %v1308 = vpop.permute.xlu0 %1307
      %vm1341 = vcmask 261120
      %v1342 = vsel %vm1341, %v443, %v766
      %v1343 = vsel %vm1341, %v444, %v768
      %v1344 = vsel %vm1341, %v446, %v770
      %v1345 = vsel %vm1341, %v447, %v772
      %v1346 = vsel %vm1341, %v449, %v774
      %v1347 = vsel %vm1341, %v450, %v776
      %v1348 = vsel %vm1341, %v452, %v778
      %v1349 = vsel %vm1341, %v453, %v780
      %v1350 = vsel %vm1341, %v455, %v782
      %v1351 = vsel %vm1341, %v456, %v784
      %v1352 = vsel %vm1341, %v458, %v786
      %v1353 = vsel %vm1341, %v459, %v788
      %v1354 = vsel %vm1341, %v461, %v790
      %v1355 = vsel %vm1341, %v462, %v792
      %v1356 = vsel %vm1341, %v464, %v794
      %v1357 = vsel %vm1341, %v465, %v796
      %v1358 = vsel %vm1341, %v467, %v798
      %v1359 = vsel %vm1341, %v468, %v800
      %v1360 = vsel %vm1341, %v470, %v802
      %v1361 = vsel %vm1341, %v471, %v804
      %v1362 = vsel %vm1341, %v473, %v806
      %v1363 = vsel %vm1341, %v474, %v808
      %v1364 = vsel %vm1341, %v476, %v810
      %v1365 = vsel %vm1341, %v477, %v812
      %v1366 = vsel %vm1341, %v479, %v814
      %v1367 = vsel %vm1341, %v480, %v816
      %v1368 = vsel %vm1341, %v482, %v818
      %v1369 = vsel %vm1341, %v483, %v820
      %v1370 = vsel %vm1341, %v485, %v822
      %v1371 = vsel %vm1341, %v486, %v824
      %v1372 = vsel %vm1341, %v488, %v826
      %v1373 = vsel %vm1341, %v489, %v828
      %vm1374 = vcmask 523264
      %v1375 = vsel %vm1374, %v1342, %v862
      %v1376 = vsel %vm1374, %v1343, %v864
      %v1377 = vsel %vm1374, %v1344, %v866
      %v1378 = vsel %vm1374, %v1345, %v868
      %v1379 = vsel %vm1374, %v1346, %v870
      %v1380 = vsel %vm1374, %v1347, %v872
      %v1381 = vsel %vm1374, %v1348, %v874
      %v1382 = vsel %vm1374, %v1349, %v876
      %v1383 = vsel %vm1374, %v1350, %v878
      %v1384 = vsel %vm1374, %v1351, %v880
      %v1385 = vsel %vm1374, %v1352, %v882
      %v1386 = vsel %vm1374, %v1353, %v884
      %v1387 = vsel %vm1374, %v1354, %v886
      %v1388 = vsel %vm1374, %v1355, %v888
      %v1389 = vsel %vm1374, %v1356, %v890
      %v1390 = vsel %vm1374, %v1357, %v892
      %v1391 = vsel %vm1374, %v1358, %v894
      %v1392 = vsel %vm1374, %v1359, %v896
      %v1393 = vsel %vm1374, %v1360, %v898
      %v1394 = vsel %vm1374, %v1361, %v900
      %v1395 = vsel %vm1374, %v1362, %v902
      %v1396 = vsel %vm1374, %v1363, %v904
      %v1397 = vsel %vm1374, %v1364, %v906
      %v1398 = vsel %vm1374, %v1365, %v908
      %v1399 = vsel %vm1374, %v1366, %v910
      %v1400 = vsel %vm1374, %v1367, %v912
      %v1401 = vsel %vm1374, %v1368, %v914
      %v1402 = vsel %vm1374, %v1369, %v916
      %v1403 = vsel %vm1374, %v1370, %v918
      %v1404 = vsel %vm1374, %v1371, %v920
      %v1405 = vsel %vm1374, %v1372, %v922
      %v1406 = vsel %vm1374, %v1373, %v924
      %vm1407 = vcmask 785408
      %v1408 = vsel %vm1407, %v1375, %v958
      %v1409 = vsel %vm1407, %v1376, %v960
      %v1410 = vsel %vm1407, %v1377, %v962
      %v1411 = vsel %vm1407, %v1378, %v964
      %v1412 = vsel %vm1407, %v1379, %v966
      %v1413 = vsel %vm1407, %v1380, %v968
      %v1414 = vsel %vm1407, %v1381, %v970
      %v1415 = vsel %vm1407, %v1382, %v972
      %v1416 = vsel %vm1407, %v1383, %v974
      %v1417 = vsel %vm1407, %v1384, %v976
      %v1418 = vsel %vm1407, %v1385, %v978
      %v1419 = vsel %vm1407, %v1386, %v980
      %v1420 = vsel %vm1407, %v1387, %v982
      %v1421 = vsel %vm1407, %v1388, %v984
      %v1422 = vsel %vm1407, %v1389, %v986
      %v1423 = vsel %vm1407, %v1390, %v988
      %v1424 = vsel %vm1407, %v1391, %v990
      %v1425 = vsel %vm1407, %v1392, %v992
      %v1426 = vsel %vm1407, %v1393, %v994
      %v1427 = vsel %vm1407, %v1394, %v996
      %v1428 = vsel %vm1407, %v1395, %v998
      %v1429 = vsel %vm1407, %v1396, %v1000
      %v1430 = vsel %vm1407, %v1397, %v1002
      %v1431 = vsel %vm1407, %v1398, %v1004
      %v1432 = vsel %vm1407, %v1399, %v1006
      %v1433 = vsel %vm1407, %v1400, %v1008
      %v1434 = vsel %vm1407, %v1401, %v1010
      %v1435 = vsel %vm1407, %v1402, %v1012
      %v1436 = vsel %vm1407, %v1403, %v1014
      %v1437 = vsel %vm1407, %v1404, %v1016
      %v1438 = vsel %vm1407, %v1405, %v1018
      %v1439 = vsel %vm1407, %v1406, %v1020
      %v1440 = vsel %vm1341, %v553, %v1054
      %v1441 = vsel %vm1341, %v555, %v1056
      %v1442 = vsel %vm1341, %v558, %v1058
      %v1443 = vsel %vm1341, %v560, %v1060
      %v1444 = vsel %vm1341, %v563, %v1062
      %v1445 = vsel %vm1341, %v565, %v1064
      %v1446 = vsel %vm1341, %v568, %v1066
      %v1447 = vsel %vm1341, %v570, %v1068
      %v1448 = vsel %vm1341, %v573, %v1070
      %v1449 = vsel %vm1341, %v575, %v1072
      %v1450 = vsel %vm1341, %v578, %v1074
      %v1451 = vsel %vm1341, %v580, %v1076
      %v1452 = vsel %vm1341, %v583, %v1078
      %v1453 = vsel %vm1341, %v585, %v1080
      %v1454 = vsel %vm1341, %v588, %v1082
      %v1455 = vsel %vm1341, %v590, %v1084
      %v1456 = vsel %vm1341, %v593, %v1086
      %v1457 = vsel %vm1341, %v595, %v1088
      %v1458 = vsel %vm1341, %v598, %v1090
      %v1459 = vsel %vm1341, %v600, %v1092
      %v1460 = vsel %vm1341, %v603, %v1094
      %v1461 = vsel %vm1341, %v605, %v1096
      %v1462 = vsel %vm1341, %v608, %v1098
      %v1463 = vsel %vm1341, %v610, %v1100
      %v1464 = vsel %vm1341, %v613, %v1102
      %v1465 = vsel %vm1341, %v615, %v1104
      %v1466 = vsel %vm1341, %v618, %v1106
      %v1467 = vsel %vm1341, %v620, %v1108
      %v1468 = vsel %vm1341, %v623, %v1110
      %v1469 = vsel %vm1341, %v625, %v1112
      %v1470 = vsel %vm1341, %v712, %v1114
      %v1471 = vsel %vm1341, %v714, %v1116
      %v1472 = vsel %vm1374, %v1440, %v1150
      %v1473 = vsel %vm1374, %v1441, %v1152
      %v1474 = vsel %vm1374, %v1442, %v1154
      %v1475 = vsel %vm1374, %v1443, %v1156
      %v1476 = vsel %vm1374, %v1444, %v1158
      %v1477 = vsel %vm1374, %v1445, %v1160
      %v1478 = vsel %vm1374, %v1446, %v1162
      %v1479 = vsel %vm1374, %v1447, %v1164
      %v1480 = vsel %vm1374, %v1448, %v1166
      %v1481 = vsel %vm1374, %v1449, %v1168
      %v1482 = vsel %vm1374, %v1450, %v1170
      %v1483 = vsel %vm1374, %v1451, %v1172
      %v1484 = vsel %vm1374, %v1452, %v1174
      %v1485 = vsel %vm1374, %v1453, %v1176
      %v1486 = vsel %vm1374, %v1454, %v1178
      %v1487 = vsel %vm1374, %v1455, %v1180
      %v1488 = vsel %vm1374, %v1456, %v1182
      %v1489 = vsel %vm1374, %v1457, %v1184
      %v1490 = vsel %vm1374, %v1458, %v1186
      %v1491 = vsel %vm1374, %v1459, %v1188
      %v1492 = vsel %vm1374, %v1460, %v1190
      %v1493 = vsel %vm1374, %v1461, %v1192
      %v1494 = vsel %vm1374, %v1462, %v1194
      %v1495 = vsel %vm1374, %v1463, %v1196
      %v1496 = vsel %vm1374, %v1464, %v1198
      %v1497 = vsel %vm1374, %v1465, %v1200
      %v1498 = vsel %vm1374, %v1466, %v1202
      %v1499 = vsel %vm1374, %v1467, %v1204
      %v1500 = vsel %vm1374, %v1468, %v1206
      %v1501 = vsel %vm1374, %v1469, %v1208
      %v1502 = vsel %vm1374, %v1470, %v1210
      %v1503 = vsel %vm1374, %v1471, %v1212
      %v1504 = vsel %vm1407, %v1472, %v1246
      %v1505 = vsel %vm1407, %v1473, %v1248
      %v1506 = vsel %vm1407, %v1474, %v1250
      %v1507 = vsel %vm1407, %v1475, %v1252
      %v1508 = vsel %vm1407, %v1476, %v1254
      %v1509 = vsel %vm1407, %v1477, %v1256
      %v1510 = vsel %vm1407, %v1478, %v1258
      %v1511 = vsel %vm1407, %v1479, %v1260
      %v1512 = vsel %vm1407, %v1480, %v1262
      %v1513 = vsel %vm1407, %v1481, %v1264
      %v1514 = vsel %vm1407, %v1482, %v1266
      %v1515 = vsel %vm1407, %v1483, %v1268
      %v1516 = vsel %vm1407, %v1484, %v1270
      %v1517 = vsel %vm1407, %v1485, %v1272
      %v1518 = vsel %vm1407, %v1486, %v1274
      %v1519 = vsel %vm1407, %v1487, %v1276
      %v1520 = vsel %vm1407, %v1488, %v1278
      %v1521 = vsel %vm1407, %v1489, %v1280
      %v1522 = vsel %vm1407, %v1490, %v1282
      %v1523 = vsel %vm1407, %v1491, %v1284
      %v1524 = vsel %vm1407, %v1492, %v1286
      %v1525 = vsel %vm1407, %v1493, %v1288
      %v1526 = vsel %vm1407, %v1494, %v1290
      %v1527 = vsel %vm1407, %v1495, %v1292
      %v1528 = vsel %vm1407, %v1496, %v1294
      %v1529 = vsel %vm1407, %v1497, %v1296
      %v1530 = vsel %vm1407, %v1498, %v1298
      %v1531 = vsel %vm1407, %v1499, %v1300
      %v1532 = vsel %vm1407, %v1500, %v1302
      %v1533 = vsel %vm1407, %v1501, %v1304
      %v1534 = vsel %vm1407, %v1502, %v1306
      %v1535 = vsel %vm1407, %v1503, %v1308
      %v1536 = vld [vmem:[%s1] sm:$0xff]
      %v1537 = vld [vmem:[%s1 + $0x8] sm:$0xff]
      %v1538 = vld [vmem:[%s1 + $0x10] sm:$0xff]
      %v1539 = vld [vmem:[%s1 + $0x18] sm:$0xff]
      %v1540 = vld [vmem:[%s1 + $0x20] sm:$0xff]
      %v1541 = vld [vmem:[%s1 + $0x28] sm:$0xff]
      %v1542 = vld [vmem:[%s1 + $0x30] sm:$0xff]
      %v1543 = vld [vmem:[%s1 + $0x38] sm:$0xff]
      %v1544 = vld [vmem:[%s1 + $0x40] sm:$0xff]
      %v1545 = vld [vmem:[%s1 + $0x48] sm:$0xff]
      %v1546 = vld [vmem:[%s1 + $0x50] sm:$0xff]
      %v1547 = vld [vmem:[%s1 + $0x58] sm:$0xff]
      %v1548 = vld [vmem:[%s1 + $0x60] sm:$0xff]
      %v1549 = vld [vmem:[%s1 + $0x68] sm:$0xff]
      %v1550 = vld [vmem:[%s1 + $0x70] sm:$0xff]
      %v1551 = vld [vmem:[%s1 + $0x78] sm:$0xff]
      %v1552 = vld [vmem:[%s1 + $0x80] sm:$0xff]
      %v1553 = vld [vmem:[%s1 + $0x88] sm:$0xff]
      %v1554 = vld [vmem:[%s1 + $0x90] sm:$0xff]
      %v1555 = vld [vmem:[%s1 + $0x98] sm:$0xff]
      %v1556 = vld [vmem:[%s1 + $0xa0] sm:$0xff]
      %v1557 = vld [vmem:[%s1 + $0xa8] sm:$0xff]
      %v1558 = vld [vmem:[%s1 + $0xb0] sm:$0xff]
      %v1559 = vld [vmem:[%s1 + $0xb8] sm:$0xff]
      %v1560 = vld [vmem:[%s1 + $0xc0] sm:$0xff]
      %v1561 = vld [vmem:[%s1 + $0xc8] sm:$0xff]
      %v1562 = vld [vmem:[%s1 + $0xd0] sm:$0xff]
      %v1563 = vld [vmem:[%s1 + $0xd8] sm:$0xff]
      %v1564 = vld [vmem:[%s1 + $0xe0] sm:$0xff]
      %v1565 = vld [vmem:[%s1 + $0xe8] sm:$0xff]
      %v1566 = vld [vmem:[%s1 + $0xf0] sm:$0xff]
      %v1567 = vld [vmem:[%s1 + $0xf8] sm:$0xff]
      %v1568 = vld [vmem:[%s1 + $0x100] sm:$0xff]
      %v1569 = vld [vmem:[%s1 + $0x108] sm:$0xff]
      %v1570 = vld [vmem:[%s1 + $0x110] sm:$0xff]
      %v1571 = vld [vmem:[%s1 + $0x118] sm:$0xff]
      %v1572 = vld [vmem:[%s2] sm:$0x1]
      %v1574 = vlaneseq
      %v1575 = vshrl.u32 %v1574, 7
      %v1576 = vsub.s32 0, %v1575
      %v1577 = vrot.slane %v1572, %v1576
      %v1579 = vsel %vm1341, %v639, 0
      %v1581 = vsel %vm1341, %v641, 0
      %v1583 = vsel %vm1341, %v644, 0
      %v1585 = vsel %vm1341, %v646, 0
      %v1587 = vsel %vm1341, %v649, 0
      %v1589 = vsel %vm1341, %v651, 0
      %v1591 = vsel %vm1341, %v654, 0
      %v1593 = vsel %vm1341, %v656, 0
      %v1595 = vsel %vm1341, %v659, 0
      %v1597 = vsel %vm1341, %v661, 0
      %v1599 = vsel %vm1341, %v664, 0
      %v1601 = vsel %vm1341, %v666, 0
      %v1603 = vsel %vm1341, %v669, 0
      %v1605 = vsel %vm1341, %v671, 0
      %v1607 = vsel %vm1341, %v674, 0
      %v1609 = vsel %vm1341, %v676, 0
      %v1611 = vsel %vm1341, %v679, 0
      %v1613 = vsel %vm1341, %v681, 0
      %v1615 = vsel %vm1341, %v684, 0
      %v1617 = vsel %vm1341, %v686, 0
      %v1619 = vsel %vm1341, %v689, 0
      %v1621 = vsel %vm1341, %v691, 0
      %v1623 = vsel %vm1341, %v694, 0
      %v1625 = vsel %vm1341, %v696, 0
      %v1627 = vsel %vm1341, %v699, 0
      %v1629 = vsel %vm1341, %v701, 0
      %v1631 = vsel %vm1341, %v704, 0
      %v1633 = vsel %vm1341, %v706, 0
      %v1635 = vsel %vm1341, %v749, 0
      %v1637 = vsel %vm1341, %v751, 0
      %v1639 = vsel %vm1341, %v762, 0
      %v1641 = vsel %vm1341, %v764, 0
      %1643 = vmatprep.subr.mxu0 0.0
      %1644 = vmatpush1.msra.mxu0 %v1536
      %1645 = vmatprep.subr.mxu0 0.0
      %1646 = vmatpush1.msra.mxu0 %v1537
      %1647 = vmatprep.subr.mxu0 0.0
      %1648 = vmatpush1.msra.mxu0 %v1538
      %1649 = vmatprep.subr.mxu0 0.0
      %1650 = vmatpush1.msra.mxu0 %v1539
      %1651 = vmatprep.subr.mxu0 0.0
      %1652 = vmatpush1.msra.mxu0 %v1540
      %1653 = vmatprep.subr.mxu0 0.0
      %1654 = vmatpush1.msra.mxu0 %v1541
      %1655 = vmatprep.subr.mxu0 0.0
      %1656 = vmatpush1.msra.mxu0 %v1542
      %1657 = vmatprep.subr.mxu0 0.0
      %1658 = vmatpush1.msra.mxu0 %v1543
      %1659 = vmatprep.subr.mxu0 0.0
      %1660 = vmatpush1.msra.mxu0 %v1544
      %1661 = vmatprep.subr.mxu0 0.0
      %1662 = vmatpush1.msra.mxu0 %v1545
      %1663 = vmatprep.subr.mxu0 0.0
      %1664 = vmatpush1.msra.mxu0 %v1546
      %1665 = vmatprep.subr.mxu0 0.0
      %1666 = vmatpush1.msra.mxu0 %v1547
      %1667 = vmatprep.subr.mxu0 0.0
      %1668 = vmatpush1.msra.mxu0 %v1548
      %1669 = vmatprep.subr.mxu0 0.0
      %1670 = vmatpush1.msra.mxu0 %v1549
      %1671 = vmatprep.subr.mxu0 0.0
      %1672 = vmatpush1.msra.mxu0 %v1550
      %1673 = vmatprep.subr.mxu0 0.0
      %1674 = vmatpush1.msra.mxu0 %v1551
      %1675 = vmatprep.subr.mxu0 0.0
      %1676 = vmatpush1.msra.mxu0 %v1552
      %1677 = vmatprep.subr.mxu0 0.0
      %1678 = vmatpush1.msra.mxu0 %v1553
      %1679 = vmatprep.subr.mxu0 0.0
      %1680 = vmatpush1.msra.mxu0 %v1554
      %1681 = vmatprep.subr.mxu0 0.0
      %1682 = vmatpush1.msra.mxu0 %v1555
      %1683 = vmatprep.subr.mxu0 0.0
      %1684 = vmatpush1.msra.mxu0 %v1556
      %1685 = vmatprep.subr.mxu0 0.0
      %1686 = vmatpush1.msra.mxu0 %v1557
      %1687 = vmatprep.subr.mxu0 0.0
      %1688 = vmatpush1.msra.mxu0 %v1558
      %1689 = vmatprep.subr.mxu0 0.0
      %1690 = vmatpush1.msra.mxu0 %v1559
      %1691 = vmatprep.subr.mxu0 0.0
      %1692 = vmatpush1.msra.mxu0 %v1560
      %1693 = vmatprep.subr.mxu0 0.0
      %1694 = vmatpush1.msra.mxu0 %v1561
      %1695 = vmatprep.subr.mxu0 0.0
      %1696 = vmatpush1.msra.mxu0 %v1562
      %1697 = vmatprep.subr.mxu0 0.0
      %1698 = vmatpush1.msra.mxu0 %v1563
      %1699 = vmatprep.subr.mxu0 0.0
      %1700 = vmatpush1.msra.mxu0 %v1564
      %1701 = vmatprep.subr.mxu0 0.0
      %1702 = vmatpush1.msra.mxu0 %v1565
      %1703 = vmatprep.subr.mxu0 0.0
      %1704 = vmatpush1.msra.mxu0 %v1566
      %1705 = vmatprep.subr.mxu0 0.0
      %1706 = vmatpush1.msra.mxu0 %v1567
      %1707 = vmatprep.mubr.f32.mxu0 %v1504
      %1708 = vmatmul.mubr.f32.gmra.mrb[0].mxu0 %v1408
      %v1709 = vpop.f32.mrb[0].mxu0
      %v1710 = vadd.f32 %v1577, %v1709
      %v1711 = vpop.f32.mrb[0].mxu0
      %1712 = vmatprep.mubr.f32.mxu0 %v1505
      %1713 = vmatmul.mubr.f32.gmra.mrb[0].mxu0 %v1409
      %v1714 = vpop.f32.mrb[0].mxu0
      %v1715 = vadd.f32 %v1577, %v1714
      %v1716 = vpop.f32.mrb[0].mxu0
      %1717 = vmatprep.mubr.f32.mxu0 %v1506
      %1718 = vmatmul.mubr.f32.gmra.mrb[0].mxu0 %v1410
      %v1719 = vpop.f32.mrb[0].mxu0
      %v1720 = vadd.f32 %v1577, %v1719
      %v1721 = vpop.f32.mrb[0].mxu0
      %1722 = vmatprep.mubr.f32.mxu0 %v1507
      %1723 = vmatmul.mubr.f32.gmra.mrb[0].mxu0 %v1411
      %v1724 = vpop.f32.mrb[0].mxu0
      %v1725 = vadd.f32 %v1577, %v1724
      %v1726 = vpop.f32.mrb[0].mxu0
      %1727 = vmatprep.mubr.f32.mxu0 %v1508
      %1728 = vmatmul.mubr.f32.gmra.mrb[0].mxu0 %v1412
      %v1729 = vpop.f32.mrb[0].mxu0
      %v1730 = vadd.f32 %v1577, %v1729
      %v1731 = vpop.f32.mrb[0].mxu0
      %1732 = vmatprep.mubr.f32.mxu0 %v1509
      %1733 = vmatmul.mubr.f32.gmra.mrb[0].mxu0 %v1413
      %v1734 = vpop.f32.mrb[0].mxu0
      %v1735 = vadd.f32 %v1577, %v1734
      %v1736 = vpop.f32.mrb[0].mxu0
      %1737 = vmatprep.mubr.f32.mxu0 %v1510
      %1738 = vmatmul.mubr.f32.gmra.mrb[0].mxu0 %v1414
      %v1739 = vpop.f32.mrb[0].mxu0
      %v1740 = vadd.f32 %v1577, %v1739
      %v1741 = vpop.f32.mrb[0].mxu0
      %1742 = vmatprep.mubr.f32.mxu0 %v1511
      %1743 = vmatmul.mubr.f32.gmra.mrb[0].mxu0 %v1415
      %v1744 = vpop.f32.mrb[0].mxu0
      %v1745 = vadd.f32 %v1577, %v1744
      %v1746 = vpop.f32.mrb[0].mxu0
      %1747 = vmatprep.mubr.f32.mxu0 %v1512
      %1748 = vmatmul.mubr.f32.gmra.mrb[0].mxu0 %v1416
      %v1749 = vpop.f32.mrb[0].mxu0
      %v1750 = vadd.f32 %v1577, %v1749
      %v1751 = vpop.f32.mrb[0].mxu0
      %1752 = vmatprep.mubr.f32.mxu0 %v1513
      %1753 = vmatmul.mubr.f32.gmra.mrb[0].mxu0 %v1417
      %v1754 = vpop.f32.mrb[0].mxu0
      %v1755 = vadd.f32 %v1577, %v1754
      %v1756 = vpop.f32.mrb[0].mxu0
      %1757 = vmatprep.mubr.f32.mxu0 %v1514
      %1758 = vmatmul.mubr.f32.gmra.mrb[0].mxu0 %v1418
      %v1759 = vpop.f32.mrb[0].mxu0
      %v1760 = vadd.f32 %v1577, %v1759
      %v1761 = vpop.f32.mrb[0].mxu0
      %1762 = vmatprep.mubr.f32.mxu0 %v1515
      %1763 = vmatmul.mubr.f32.gmra.mrb[0].mxu0 %v1419
      %v1764 = vpop.f32.mrb[0].mxu0
      %v1765 = vadd.f32 %v1577, %v1764
      %v1766 = vpop.f32.mrb[0].mxu0
      %1767 = vmatprep.mubr.f32.mxu0 %v1516
      %1768 = vmatmul.mubr.f32.gmra.mrb[0].mxu0 %v1420
      %v1769 = vpop.f32.mrb[0].mxu0
      %v1770 = vadd.f32 %v1577, %v1769
      %v1771 = vpop.f32.mrb[0].mxu0
      %1772 = vmatprep.mubr.f32.mxu0 %v1517
      %1773 = vmatmul.mubr.f32.gmra.mrb[0].mxu0 %v1421
      %v1774 = vpop.f32.mrb[0].mxu0
      %v1775 = vadd.f32 %v1577, %v1774
      %v1776 = vpop.f32.mrb[0].mxu0
      %1777 = vmatprep.mubr.f32.mxu0 %v1518
      %1778 = vmatmul.mubr.f32.gmra.mrb[0].mxu0 %v1422
      %v1779 = vpop.f32.mrb[0].mxu0
      %v1780 = vadd.f32 %v1577, %v1779
      %v1781 = vpop.f32.mrb[0].mxu0
      %1782 = vmatprep.mubr.f32.mxu0 %v1519
      %1783 = vmatmul.mubr.f32.gmra.mrb[0].mxu0 %v1423
      %v1784 = vpop.f32.mrb[0].mxu0
      %v1785 = vadd.f32 %v1577, %v1784
      %v1786 = vpop.f32.mrb[0].mxu0
      %1787 = vmatprep.mubr.f32.mxu0 %v1520
      %1788 = vmatmul.mubr.f32.gmra.mrb[0].mxu0 %v1424
      %v1789 = vpop.f32.mrb[0].mxu0
      %v1790 = vadd.f32 %v1577, %v1789
      %v1791 = vpop.f32.mrb[0].mxu0
      %1792 = vmatprep.mubr.f32.mxu0 %v1521
      %1793 = vmatmul.mubr.f32.gmra.mrb[0].mxu0 %v1425
      %v1794 = vpop.f32.mrb[0].mxu0
      %v1795 = vadd.f32 %v1577, %v1794
      %v1796 = vpop.f32.mrb[0].mxu0
      %1797 = vmatprep.mubr.f32.mxu0 %v1522
      %1798 = vmatmul.mubr.f32.gmra.mrb[0].mxu0 %v1426
      %v1799 = vpop.f32.mrb[0].mxu0
      %v1800 = vadd.f32 %v1577, %v1799
      %v1801 = vpop.f32.mrb[0].mxu0
      %1802 = vmatprep.mubr.f32.mxu0 %v1523
      %1803 = vmatmul.mubr.f32.gmra.mrb[0].mxu0 %v1427
      %v1804 = vpop.f32.mrb[0].mxu0
      %v1805 = vadd.f32 %v1577, %v1804
      %v1806 = vpop.f32.mrb[0].mxu0
      %1807 = vmatprep.mubr.f32.mxu0 %v1524
      %1808 = vmatmul.mubr.f32.gmra.mrb[0].mxu0 %v1428
      %v1809 = vpop.f32.mrb[0].mxu0
      %v1810 = vadd.f32 %v1577, %v1809
      %v1811 = vpop.f32.mrb[0].mxu0
      %1812 = vmatprep.mubr.f32.mxu0 %v1525
      %1813 = vmatmul.mubr.f32.gmra.mrb[0].mxu0 %v1429
      %v1814 = vpop.f32.mrb[0].mxu0
      %v1815 = vadd.f32 %v1577, %v1814
      %v1816 = vpop.f32.mrb[0].mxu0
      %1817 = vmatprep.mubr.f32.mxu0 %v1526
      %1818 = vmatmul.mubr.f32.gmra.mrb[0].mxu0 %v1430
      %v1819 = vpop.f32.mrb[0].mxu0
      %v1820 = vadd.f32 %v1577, %v1819
      %v1821 = vpop.f32.mrb[0].mxu0
      %1822 = vmatprep.mubr.f32.mxu0 %v1527
      %1823 = vmatmul.mubr.f32.gmra.mrb[0].mxu0 %v1431
      %v1824 = vpop.f32.mrb[0].mxu0
      %v1825 = vadd.f32 %v1577, %v1824
      %v1826 = vpop.f32.mrb[0].mxu0
      %1827 = vmatprep.mubr.f32.mxu0 %v1528
      %1828 = vmatmul.mubr.f32.gmra.mrb[0].mxu0 %v1432
      %v1829 = vpop.f32.mrb[0].mxu0
      %v1830 = vadd.f32 %v1577, %v1829
      %v1831 = vpop.f32.mrb[0].mxu0
      %1832 = vmatprep.mubr.f32.mxu0 %v1529
      %1833 = vmatmul.mubr.f32.gmra.mrb[0].mxu0 %v1433
      %v1834 = vpop.f32.mrb[0].mxu0
      %v1835 = vadd.f32 %v1577, %v1834
      %v1836 = vpop.f32.mrb[0].mxu0
      %1837 = vmatprep.mubr.f32.mxu0 %v1530
      %1838 = vmatmul.mubr.f32.gmra.mrb[0].mxu0 %v1434
      %v1839 = vpop.f32.mrb[0].mxu0
      %v1840 = vadd.f32 %v1577, %v1839
      %v1841 = vpop.f32.mrb[0].mxu0
      %1842 = vmatprep.mubr.f32.mxu0 %v1531
      %1843 = vmatmul.mubr.f32.gmra.mrb[0].mxu0 %v1435
      %v1844 = vpop.f32.mrb[0].mxu0
      %v1845 = vadd.f32 %v1577, %v1844
      %v1846 = vpop.f32.mrb[0].mxu0
      %1847 = vmatprep.mubr.f32.mxu0 %v1532
      %1848 = vmatmul.mubr.f32.gmra.mrb[0].mxu0 %v1436
      %v1849 = vpop.f32.mrb[0].mxu0
      %v1850 = vadd.f32 %v1577, %v1849
      %v1851 = vpop.f32.mrb[0].mxu0
      %1852 = vmatprep.mubr.f32.mxu0 %v1533
      %1853 = vmatmul.mubr.f32.gmra.mrb[0].mxu0 %v1437
      %v1854 = vpop.f32.mrb[0].mxu0
      %v1855 = vadd.f32 %v1577, %v1854
      %v1856 = vpop.f32.mrb[0].mxu0
      %1857 = vmatprep.mubr.f32.mxu0 %v1534
      %1858 = vmatmul.mubr.f32.gmra.mrb[0].mxu0 %v1438
      %v1859 = vpop.f32.mrb[0].mxu0
      %v1860 = vadd.f32 %v1577, %v1859
      %v1861 = vpop.f32.mrb[0].mxu0
      %1862 = vmatprep.mubr.f32.mxu0 %v1535
      %1863 = vmatmul.mubr.f32.gmra.mrb[0].mxu0 %v1439
      %v1864 = vpop.f32.mrb[0].mxu0
      %v1865 = vadd.f32 %v1577, %v1864
      %v1866 = vpop.f32.mrb[0].mxu0
      %1867 = vdwg.mxu0
      %1868 = vmatprep.subr.mxu0 0.0
      %1869 = vmatpush1.msra.mxu0 %v1568
      %1870 = vmatprep.subr.mxu0 0.0
      %1871 = vmatpush1.msra.mxu0 %v1569
      %1872 = vmatprep.subr.mxu0 0.0
      %1873 = vmatpush1.msra.mxu0 %v1570
      %1874 = vmatprep.subr.mxu0 0.0
      %1875 = vmatpush1.msra.mxu0 %v1571
      %1876 = vmatprep.subr.mxu0 0.0
      %1877 = vmatpush1.msra.mxu0 0.0
      %1878 = vmatprep.subr.mxu0 0.0
      %1879 = vmatpush1.msra.mxu0 0.0
      %1880 = vmatprep.subr.mxu0 0.0
      %1881 = vmatpush1.msra.mxu0 0.0
      %1882 = vmatprep.subr.mxu0 0.0
      %1883 = vmatpush1.msra.mxu0 0.0
      %1884 = vmatprep.subr.mxu0 0.0
      %1885 = vmatpush1.msra.mxu0 0.0
      %1886 = vmatprep.subr.mxu0 0.0
      %1887 = vmatpush1.msra.mxu0 0.0
      %1888 = vmatprep.subr.mxu0 0.0
      %1889 = vmatpush1.msra.mxu0 0.0
      %1890 = vmatprep.subr.mxu0 0.0
      %1891 = vmatpush1.msra.mxu0 0.0
      %1892 = vmatprep.subr.mxu0 0.0
      %1893 = vmatpush1.msra.mxu0 0.0
      %1894 = vmatprep.subr.mxu0 0.0
      %1895 = vmatpush1.msra.mxu0 0.0
      %1896 = vmatprep.subr.mxu0 0.0
      %1897 = vmatpush1.msra.mxu0 0.0
      %1898 = vmatprep.subr.mxu0 0.0
      %1899 = vmatpush1.msra.mxu0 0.0
      %1900 = vmatprep.subr.mxu0 0.0
      %1901 = vmatpush1.msra.mxu0 0.0
      %1902 = vmatprep.subr.mxu0 0.0
      %1903 = vmatpush1.msra.mxu0 0.0
      %1904 = vmatprep.subr.mxu0 0.0
      %1905 = vmatpush1.msra.mxu0 0.0
      %1906 = vmatprep.subr.mxu0 0.0
      %1907 = vmatpush1.msra.mxu0 0.0
      %1908 = vmatprep.subr.mxu0 0.0
      %1909 = vmatpush1.msra.mxu0 0.0
      %1910 = vmatprep.subr.mxu0 0.0
      %1911 = vmatpush1.msra.mxu0 0.0
      %1912 = vmatprep.subr.mxu0 0.0
      %1913 = vmatpush1.msra.mxu0 0.0
      %1914 = vmatprep.subr.mxu0 0.0
      %1915 = vmatpush1.msra.mxu0 0.0
      %1916 = vmatprep.subr.mxu0 0.0
      %1917 = vmatpush1.msra.mxu0 0.0
      %1918 = vmatprep.subr.mxu0 0.0
      %1919 = vmatpush1.msra.mxu0 0.0
      %1920 = vmatprep.subr.mxu0 0.0
      %1921 = vmatpush1.msra.mxu0 0.0
      %1922 = vmatprep.subr.mxu0 0.0
      %1923 = vmatpush1.msra.mxu0 0.0
      %1924 = vmatprep.subr.mxu0 0.0
      %1925 = vmatpush1.msra.mxu0 0.0
      %1926 = vmatprep.subr.mxu0 0.0
      %1927 = vmatpush1.msra.mxu0 0.0
      %1928 = vmatprep.subr.mxu0 0.0
      %1929 = vmatpush1.msra.mxu0 0.0
      %1930 = vmatprep.subr.mxu0 0.0
      %1931 = vmatpush1.msra.mxu0 0.0
      %1932 = vmatprep.mubr.f32.mxu0 0.0
      %1933 = vmatmul.mubr.f32.gmra.mrb[0].mxu0 %v1579
      %v1934 = vpop.f32.mrb[0].mxu0
      %v1935 = vadd.f32 %v1710, %v1934
      %v1936 = vpop.f32.mrb[0].mxu0
      %1937 = vmatprep.mubr.f32.mxu0 0.0
      %1938 = vmatmul.mubr.f32.gmra.mrb[0].mxu0 %v1581
      %v1939 = vpop.f32.mrb[0].mxu0
      %v1940 = vadd.f32 %v1715, %v1939
      %v1941 = vpop.f32.mrb[0].mxu0
      %1942 = vmatprep.mubr.f32.mxu0 0.0
      %1943 = vmatmul.mubr.f32.gmra.mrb[0].mxu0 %v1583
      %v1944 = vpop.f32.mrb[0].mxu0
      %v1945 = vadd.f32 %v1720, %v1944
      %v1946 = vpop.f32.mrb[0].mxu0
      %1947 = vmatprep.mubr.f32.mxu0 0.0
      %1948 = vmatmul.mubr.f32.gmra.mrb[0].mxu0 %v1585
      %v1949 = vpop.f32.mrb[0].mxu0
      %v1950 = vadd.f32 %v1725, %v1949
      %v1951 = vpop.f32.mrb[0].mxu0
      %1952 = vmatprep.mubr.f32.mxu0 0.0
      %1953 = vmatmul.mubr.f32.gmra.mrb[0].mxu0 %v1587
      %v1954 = vpop.f32.mrb[0].mxu0
      %v1955 = vadd.f32 %v1730, %v1954
      %v1956 = vpop.f32.mrb[0].mxu0
      %1957 = vmatprep.mubr.f32.mxu0 0.0
      %1958 = vmatmul.mubr.f32.gmra.mrb[0].mxu0 %v1589
      %v1959 = vpop.f32.mrb[0].mxu0
      %v1960 = vadd.f32 %v1735, %v1959
      %v1961 = vpop.f32.mrb[0].mxu0
      %1962 = vmatprep.mubr.f32.mxu0 0.0
      %1963 = vmatmul.mubr.f32.gmra.mrb[0].mxu0 %v1591
      %v1964 = vpop.f32.mrb[0].mxu0
      %v1965 = vadd.f32 %v1740, %v1964
      %v1966 = vpop.f32.mrb[0].mxu0
      %1967 = vmatprep.mubr.f32.mxu0 0.0
      %1968 = vmatmul.mubr.f32.gmra.mrb[0].mxu0 %v1593
      %v1969 = vpop.f32.mrb[0].mxu0
      %v1970 = vadd.f32 %v1745, %v1969
      %v1971 = vpop.f32.mrb[0].mxu0
      %1972 = vmatprep.mubr.f32.mxu0 0.0
      %1973 = vmatmul.mubr.f32.gmra.mrb[0].mxu0 %v1595
      %v1974 = vpop.f32.mrb[0].mxu0
      %v1975 = vadd.f32 %v1750, %v1974
      %v1976 = vpop.f32.mrb[0].mxu0
      %1977 = vmatprep.mubr.f32.mxu0 0.0
      %1978 = vmatmul.mubr.f32.gmra.mrb[0].mxu0 %v1597
      %v1979 = vpop.f32.mrb[0].mxu0
      %v1980 = vadd.f32 %v1755, %v1979
      %v1981 = vpop.f32.mrb[0].mxu0
      %1982 = vmatprep.mubr.f32.mxu0 0.0
      %1983 = vmatmul.mubr.f32.gmra.mrb[0].mxu0 %v1599
      %v1984 = vpop.f32.mrb[0].mxu0
      %v1985 = vadd.f32 %v1760, %v1984
      %v1986 = vpop.f32.mrb[0].mxu0
      %1987 = vmatprep.mubr.f32.mxu0 0.0
      %1988 = vmatmul.mubr.f32.gmra.mrb[0].mxu0 %v1601
      %v1989 = vpop.f32.mrb[0].mxu0
      %v1990 = vadd.f32 %v1765, %v1989
      %v1991 = vpop.f32.mrb[0].mxu0
      %1992 = vmatprep.mubr.f32.mxu0 0.0
      %1993 = vmatmul.mubr.f32.gmra.mrb[0].mxu0 %v1603
      %v1994 = vpop.f32.mrb[0].mxu0
      %v1995 = vadd.f32 %v1770, %v1994
      %v1996 = vpop.f32.mrb[0].mxu0
      %1997 = vmatprep.mubr.f32.mxu0 0.0
      %1998 = vmatmul.mubr.f32.gmra.mrb[0].mxu0 %v1605
      %v1999 = vpop.f32.mrb[0].mxu0
      %v2000 = vadd.f32 %v1775, %v1999
      %v2001 = vpop.f32.mrb[0].mxu0
      %2002 = vmatprep.mubr.f32.mxu0 0.0
      %2003 = vmatmul.mubr.f32.gmra.mrb[0].mxu0 %v1607
      %v2004 = vpop.f32.mrb[0].mxu0
      %v2005 = vadd.f32 %v1780, %v2004
      %v2006 = vpop.f32.mrb[0].mxu0
      %2007 = vmatprep.mubr.f32.mxu0 0.0
      %2008 = vmatmul.mubr.f32.gmra.mrb[0].mxu0 %v1609
      %v2009 = vpop.f32.mrb[0].mxu0
      %v2010 = vadd.f32 %v1785, %v2009
      %v2011 = vpop.f32.mrb[0].mxu0
      %2012 = vmatprep.mubr.f32.mxu0 0.0
      %2013 = vmatmul.mubr.f32.gmra.mrb[0].mxu0 %v1611
      %v2014 = vpop.f32.mrb[0].mxu0
      %v2015 = vadd.f32 %v1790, %v2014
      %v2016 = vpop.f32.mrb[0].mxu0
      %2017 = vmatprep.mubr.f32.mxu0 0.0
      %2018 = vmatmul.mubr.f32.gmra.mrb[0].mxu0 %v1613
      %v2019 = vpop.f32.mrb[0].mxu0
      %v2020 = vadd.f32 %v1795, %v2019
      %v2021 = vpop.f32.mrb[0].mxu0
      %2022 = vmatprep.mubr.f32.mxu0 0.0
      %2023 = vmatmul.mubr.f32.gmra.mrb[0].mxu0 %v1615
      %v2024 = vpop.f32.mrb[0].mxu0
      %v2025 = vadd.f32 %v1800, %v2024
      %v2026 = vpop.f32.mrb[0].mxu0
      %2027 = vmatprep.mubr.f32.mxu0 0.0
      %2028 = vmatmul.mubr.f32.gmra.mrb[0].mxu0 %v1617
      %v2029 = vpop.f32.mrb[0].mxu0
      %v2030 = vadd.f32 %v1805, %v2029
      %v2031 = vpop.f32.mrb[0].mxu0
      %2032 = vmatprep.mubr.f32.mxu0 0.0
      %2033 = vmatmul.mubr.f32.gmra.mrb[0].mxu0 %v1619
      %v2034 = vpop.f32.mrb[0].mxu0
      %v2035 = vadd.f32 %v1810, %v2034
      %v2036 = vpop.f32.mrb[0].mxu0
      %2037 = vmatprep.mubr.f32.mxu0 0.0
      %2038 = vmatmul.mubr.f32.gmra.mrb[0].mxu0 %v1621
      %v2039 = vpop.f32.mrb[0].mxu0
      %v2040 = vadd.f32 %v1815, %v2039
      %v2041 = vpop.f32.mrb[0].mxu0
      %2042 = vmatprep.mubr.f32.mxu0 0.0
      %2043 = vmatmul.mubr.f32.gmra.mrb[0].mxu0 %v1623
      %v2044 = vpop.f32.mrb[0].mxu0
      %v2045 = vadd.f32 %v1820, %v2044
      %v2046 = vpop.f32.mrb[0].mxu0
      %2047 = vmatprep.mubr.f32.mxu0 0.0
      %2048 = vmatmul.mubr.f32.gmra.mrb[0].mxu0 %v1625
      %v2049 = vpop.f32.mrb[0].mxu0
      %v2050 = vadd.f32 %v1825, %v2049
      %v2051 = vpop.f32.mrb[0].mxu0
      %2052 = vmatprep.mubr.f32.mxu0 0.0
      %2053 = vmatmul.mubr.f32.gmra.mrb[0].mxu0 %v1627
      %v2054 = vpop.f32.mrb[0].mxu0
      %v2055 = vadd.f32 %v1830, %v2054
      %v2056 = vpop.f32.mrb[0].mxu0
      %2057 = vmatprep.mubr.f32.mxu0 0.0
      %2058 = vmatmul.mubr.f32.gmra.mrb[0].mxu0 %v1629
      %v2059 = vpop.f32.mrb[0].mxu0
      %v2060 = vadd.f32 %v1835, %v2059
      %v2061 = vpop.f32.mrb[0].mxu0
      %2062 = vmatprep.mubr.f32.mxu0 0.0
      %2063 = vmatmul.mubr.f32.gmra.mrb[0].mxu0 %v1631
      %v2064 = vpop.f32.mrb[0].mxu0
      %v2065 = vadd.f32 %v1840, %v2064
      %v2066 = vpop.f32.mrb[0].mxu0
      %2067 = vmatprep.mubr.f32.mxu0 0.0
      %2068 = vmatmul.mubr.f32.gmra.mrb[0].mxu0 %v1633
      %v2069 = vpop.f32.mrb[0].mxu0
      %v2070 = vadd.f32 %v1845, %v2069
      %v2071 = vpop.f32.mrb[0].mxu0
      %2072 = vmatprep.mubr.f32.mxu0 0.0
      %2073 = vmatmul.mubr.f32.gmra.mrb[0].mxu0 %v1635
      %v2074 = vpop.f32.mrb[0].mxu0
      %v2075 = vadd.f32 %v1850, %v2074
      %v2076 = vpop.f32.mrb[0].mxu0
      %2077 = vmatprep.mubr.f32.mxu0 0.0
      %2078 = vmatmul.mubr.f32.gmra.mrb[0].mxu0 %v1637
      %v2079 = vpop.f32.mrb[0].mxu0
      %v2080 = vadd.f32 %v1855, %v2079
      %v2081 = vpop.f32.mrb[0].mxu0
      %2082 = vmatprep.mubr.f32.mxu0 0.0
      %2083 = vmatmul.mubr.f32.gmra.mrb[0].mxu0 %v1639
      %v2084 = vpop.f32.mrb[0].mxu0
      %v2085 = vadd.f32 %v1860, %v2084
      %v2086 = vpop.f32.mrb[0].mxu0
      %2087 = vmatprep.mubr.f32.mxu0 0.0
      %2088 = vmatmul.mubr.f32.gmra.mrb[0].mxu0 %v1641
      %v2089 = vpop.f32.mrb[0].mxu0
      %v2090 = vadd.f32 %v1865, %v2089
      %v2091 = vpop.f32.mrb[0].mxu0
      %2092 = vdwg.mxu0
      %v2093 = vmax.f32 %v1935, 0.0
      %v2094 = vmax.f32 %v1940, 0.0
      %v2095 = vmax.f32 %v1945, 0.0
      %v2096 = vmax.f32 %v1950, 0.0
      %v2097 = vmax.f32 %v1955, 0.0
      %v2098 = vmax.f32 %v1960, 0.0
      %v2099 = vmax.f32 %v1965, 0.0
      %v2100 = vmax.f32 %v1970, 0.0
      %v2101 = vmax.f32 %v1975, 0.0
      %v2102 = vmax.f32 %v1980, 0.0
      %v2103 = vmax.f32 %v1985, 0.0
      %v2104 = vmax.f32 %v1990, 0.0
      %v2105 = vmax.f32 %v1995, 0.0
      %v2106 = vmax.f32 %v2000, 0.0
      %v2107 = vmax.f32 %v2005, 0.0
      %v2108 = vmax.f32 %v2010, 0.0
      %v2109 = vmax.f32 %v2015, 0.0
      %v2110 = vmax.f32 %v2020, 0.0
      %v2111 = vmax.f32 %v2025, 0.0
      %v2112 = vmax.f32 %v2030, 0.0
      %v2113 = vmax.f32 %v2035, 0.0
      %v2114 = vmax.f32 %v2040, 0.0
      %v2115 = vmax.f32 %v2045, 0.0
      %v2116 = vmax.f32 %v2050, 0.0
      %v2117 = vmax.f32 %v2055, 0.0
      %v2118 = vmax.f32 %v2060, 0.0
      %v2119 = vmax.f32 %v2065, 0.0
      %v2120 = vmax.f32 %v2070, 0.0
      %v2121 = vmax.f32 %v2075, 0.0
      %v2122 = vmax.f32 %v2080, 0.0
      %v2123 = vmax.f32 %v2085, 0.0
      %v2124 = vmax.f32 %v2090, 0.0
      %vm2157 = vcmask 1040384
      %v2158 = vrot.slane %v2093, 7
      %v2159 = vrot.slane %v2094, 7
      %v2160 = vsel %vm2157, %v2158, %v2159
      %v2161 = vrot.slane %v2095, 7
      %v2162 = vrot.slane %v2096, 7
      %v2163 = vsel %vm2157, %v2161, %v2162
      %v2164 = vrot.slane %v2097, 7
      %v2165 = vrot.slane %v2098, 7
      %v2166 = vsel %vm2157, %v2164, %v2165
      %v2167 = vrot.slane %v2099, 7
      %v2168 = vrot.slane %v2100, 7
      %v2169 = vsel %vm2157, %v2167, %v2168
      %v2170 = vrot.slane %v2101, 7
      %v2171 = vrot.slane %v2102, 7
      %v2172 = vsel %vm2157, %v2170, %v2171
      %v2173 = vrot.slane %v2103, 7
      %v2174 = vrot.slane %v2104, 7
      %v2175 = vsel %vm2157, %v2173, %v2174
      %v2176 = vrot.slane %v2105, 7
      %v2177 = vrot.slane %v2106, 7
      %v2178 = vsel %vm2157, %v2176, %v2177
      %v2179 = vrot.slane %v2107, 7
      %v2180 = vrot.slane %v2108, 7
      %v2181 = vsel %vm2157, %v2179, %v2180
      %v2182 = vrot.slane %v2109, 7
      %v2183 = vrot.slane %v2110, 7
      %v2184 = vsel %vm2157, %v2182, %v2183
      %v2185 = vrot.slane %v2111, 7
      %v2186 = vrot.slane %v2112, 7
      %v2187 = vsel %vm2157, %v2185, %v2186
      %v2188 = vrot.slane %v2113, 7
      %v2189 = vrot.slane %v2114, 7
      %v2190 = vsel %vm2157, %v2188, %v2189
      %v2191 = vrot.slane %v2115, 7
      %v2192 = vrot.slane %v2116, 7
      %v2193 = vsel %vm2157, %v2191, %v2192
      %v2194 = vrot.slane %v2117, 7
      %v2195 = vrot.slane %v2118, 7
      %v2196 = vsel %vm2157, %v2194, %v2195
      %v2197 = vrot.slane %v2119, 7
      %v2198 = vrot.slane %v2120, 7
      %v2199 = vsel %vm2157, %v2197, %v2198
      %v2200 = vrot.slane %v2121, 7
      %v2201 = vrot.slane %v2122, 7
      %v2202 = vsel %vm2157, %v2200, %v2201
      %v2203 = vrot.slane %v2123, 7
      %v2204 = vrot.slane %v2124, 7
      %v2205 = vsel %vm2157, %v2203, %v2204
      %v2253 = vsel %vm2157, 0.0, %v2158
      %v2254 = vsel %vm2157, 0.0, %v2161
      %v2255 = vsel %vm2157, 0.0, %v2164
      %v2256 = vsel %vm2157, 0.0, %v2167
      %v2257 = vsel %vm2157, 0.0, %v2170
      %v2258 = vsel %vm2157, 0.0, %v2173
      %v2259 = vsel %vm2157, 0.0, %v2176
      %v2260 = vsel %vm2157, 0.0, %v2179
      %v2261 = vsel %vm2157, 0.0, %v2182
      %v2262 = vsel %vm2157, 0.0, %v2185
      %v2263 = vsel %vm2157, 0.0, %v2188
      %v2264 = vsel %vm2157, 0.0, %v2191
      %v2265 = vsel %vm2157, 0.0, %v2194
      %v2266 = vsel %vm2157, 0.0, %v2197
      %v2267 = vsel %vm2157, 0.0, %v2200
      %v2268 = vsel %vm2157, 0.0, %v2203
      %v2269 = vsel %vm2157, %v2159, 0.0
      %v2270 = vsel %vm2157, %v2162, 0.0
      %v2271 = vsel %vm2157, %v2165, 0.0
      %v2272 = vsel %vm2157, %v2168, 0.0
      %v2273 = vsel %vm2157, %v2171, 0.0
      %v2274 = vsel %vm2157, %v2174, 0.0
      %v2275 = vsel %vm2157, %v2177, 0.0
      %v2276 = vsel %vm2157, %v2180, 0.0
      %v2277 = vsel %vm2157, %v2183, 0.0
      %v2278 = vsel %vm2157, %v2186, 0.0
      %v2279 = vsel %vm2157, %v2189, 0.0
      %v2280 = vsel %vm2157, %v2192, 0.0
      %v2281 = vsel %vm2157, %v2195, 0.0
      %v2282 = vsel %vm2157, %v2198, 0.0
      %v2283 = vsel %vm2157, %v2201, 0.0
      %v2284 = vsel %vm2157, %v2204, 0.0
      %v2316 = vrot.slane 0.0, 1
      %v2317 = vsel %vm545, %v2316, %v2316
      %v2318 = vrot.slane %v2253, 1
      %v2319 = vrot.slane %v2160, 1
      %v2320 = vsel %vm545, %v2318, %v2319
      %v2321 = vrot.slane %v2269, 1
      %v2322 = vsel %vm545, %v2319, %v2321
      %v2323 = vrot.slane %v2254, 1
      %v2324 = vrot.slane %v2163, 1
      %v2325 = vsel %vm545, %v2323, %v2324
      %v2326 = vrot.slane %v2270, 1
      %v2327 = vsel %vm545, %v2324, %v2326
      %v2328 = vrot.slane %v2255, 1
      %v2329 = vrot.slane %v2166, 1
      %v2330 = vsel %vm545, %v2328, %v2329
      %v2331 = vrot.slane %v2271, 1
      %v2332 = vsel %vm545, %v2329, %v2331
      %v2333 = vrot.slane %v2256, 1
      %v2334 = vrot.slane %v2169, 1
      %v2335 = vsel %vm545, %v2333, %v2334
      %v2336 = vrot.slane %v2272, 1
      %v2337 = vsel %vm545, %v2334, %v2336
      %v2338 = vrot.slane %v2257, 1
      %v2339 = vrot.slane %v2172, 1
      %v2340 = vsel %vm545, %v2338, %v2339
      %v2341 = vrot.slane %v2273, 1
      %v2342 = vsel %vm545, %v2339, %v2341
      %v2343 = vrot.slane %v2258, 1
      %v2344 = vrot.slane %v2175, 1
      %v2345 = vsel %vm545, %v2343, %v2344
      %v2346 = vrot.slane %v2274, 1
      %v2347 = vsel %vm545, %v2344, %v2346
      %v2348 = vrot.slane %v2259, 1
      %v2349 = vrot.slane %v2178, 1
      %v2350 = vsel %vm545, %v2348, %v2349
      %v2351 = vrot.slane %v2275, 1
      %v2352 = vsel %vm545, %v2349, %v2351
      %v2353 = vrot.slane %v2260, 1
      %v2354 = vrot.slane %v2181, 1
      %v2355 = vsel %vm545, %v2353, %v2354
      %v2356 = vrot.slane %v2276, 1
      %v2357 = vsel %vm545, %v2354, %v2356
      %v2358 = vrot.slane %v2261, 1
      %v2359 = vrot.slane %v2184, 1
      %v2360 = vsel %vm545, %v2358, %v2359
      %v2361 = vrot.slane %v2277, 1
      %v2362 = vsel %vm545, %v2359, %v2361
      %v2363 = vrot.slane %v2262, 1
      %v2364 = vrot.slane %v2187, 1
      %v2365 = vsel %vm545, %v2363, %v2364
      %v2366 = vrot.slane %v2278, 1
      %v2367 = vsel %vm545, %v2364, %v2366
      %v2368 = vrot.slane %v2263, 1
      %v2369 = vrot.slane %v2190, 1
      %v2370 = vsel %vm545, %v2368, %v2369
      %v2371 = vrot.slane %v2279, 1
      %v2372 = vsel %vm545, %v2369, %v2371
      %v2373 = vrot.slane %v2264, 1
      %v2374 = vrot.slane %v2193, 1
      %v2375 = vsel %vm545, %v2373, %v2374
      %v2376 = vrot.slane %v2280, 1
      %v2377 = vsel %vm545, %v2374, %v2376
      %v2378 = vrot.slane %v2265, 1
      %v2379 = vrot.slane %v2196, 1
      %v2380 = vsel %vm545, %v2378, %v2379
      %v2381 = vrot.slane %v2281, 1
      %v2382 = vsel %vm545, %v2379, %v2381
      %v2383 = vrot.slane %v2266, 1
      %v2384 = vrot.slane %v2199, 1
      %v2385 = vsel %vm545, %v2383, %v2384
      %v2386 = vrot.slane %v2282, 1
      %v2387 = vsel %vm545, %v2384, %v2386
      %v2388 = vrot.slane %v2267, 1
      %v2389 = vrot.slane %v2202, 1
      %v2390 = vsel %vm545, %v2388, %v2389
      %v2391 = vrot.slane %v2283, 1
      %v2392 = vsel %vm545, %v2389, %v2391
      %v2393 = vrot.slane 0.0, 2
      %v2394 = vsel %vm626, %v2393, %v2393
      %v2395 = vrot.slane %v2253, 2
      %v2396 = vrot.slane %v2160, 2
      %v2397 = vsel %vm626, %v2395, %v2396
      %v2398 = vrot.slane %v2269, 2
      %v2399 = vsel %vm626, %v2396, %v2398
      %v2400 = vrot.slane %v2254, 2
      %v2401 = vrot.slane %v2163, 2
      %v2402 = vsel %vm626, %v2400, %v2401
      %v2403 = vrot.slane %v2270, 2
      %v2404 = vsel %vm626, %v2401, %v2403
      %v2405 = vrot.slane %v2255, 2
      %v2406 = vrot.slane %v2166, 2
      %v2407 = vsel %vm626, %v2405, %v2406
      %v2408 = vrot.slane %v2271, 2
      %v2409 = vsel %vm626, %v2406, %v2408
      %v2410 = vrot.slane %v2256, 2
      %v2411 = vrot.slane %v2169, 2
      %v2412 = vsel %vm626, %v2410, %v2411
      %v2413 = vrot.slane %v2272, 2
      %v2414 = vsel %vm626, %v2411, %v2413
      %v2415 = vrot.slane %v2257, 2
      %v2416 = vrot.slane %v2172, 2
      %v2417 = vsel %vm626, %v2415, %v2416
      %v2418 = vrot.slane %v2273, 2
      %v2419 = vsel %vm626, %v2416, %v2418
      %v2420 = vrot.slane %v2258, 2
      %v2421 = vrot.slane %v2175, 2
      %v2422 = vsel %vm626, %v2420, %v2421
      %v2423 = vrot.slane %v2274, 2
      %v2424 = vsel %vm626, %v2421, %v2423
      %v2425 = vrot.slane %v2259, 2
      %v2426 = vrot.slane %v2178, 2
      %v2427 = vsel %vm626, %v2425, %v2426
      %v2428 = vrot.slane %v2275, 2
      %v2429 = vsel %vm626, %v2426, %v2428
      %v2430 = vrot.slane %v2260, 2
      %v2431 = vrot.slane %v2181, 2
      %v2432 = vsel %vm626, %v2430, %v2431
      %v2433 = vrot.slane %v2276, 2
      %v2434 = vsel %vm626, %v2431, %v2433
      %v2435 = vrot.slane %v2261, 2
      %v2436 = vrot.slane %v2184, 2
      %v2437 = vsel %vm626, %v2435, %v2436
      %v2438 = vrot.slane %v2277, 2
      %v2439 = vsel %vm626, %v2436, %v2438
      %v2440 = vrot.slane %v2262, 2
      %v2441 = vrot.slane %v2187, 2
      %v2442 = vsel %vm626, %v2440, %v2441
      %v2443 = vrot.slane %v2278, 2
      %v2444 = vsel %vm626, %v2441, %v2443
      %v2445 = vrot.slane %v2263, 2
      %v2446 = vrot.slane %v2190, 2
      %v2447 = vsel %vm626, %v2445, %v2446
      %v2448 = vrot.slane %v2279, 2
      %v2449 = vsel %vm626, %v2446, %v2448
      %v2450 = vrot.slane %v2264, 2
      %v2451 = vrot.slane %v2193, 2
      %v2452 = vsel %vm626, %v2450, %v2451
      %v2453 = vrot.slane %v2280, 2
      %v2454 = vsel %vm626, %v2451, %v2453
      %v2455 = vrot.slane %v2265, 2
      %v2456 = vrot.slane %v2196, 2
      %v2457 = vsel %vm626, %v2455, %v2456
      %v2458 = vrot.slane %v2281, 2
      %v2459 = vsel %vm626, %v2456, %v2458
      %v2460 = vrot.slane %v2266, 2
      %v2461 = vrot.slane %v2199, 2
      %v2462 = vsel %vm626, %v2460, %v2461
      %v2463 = vrot.slane %v2282, 2
      %v2464 = vsel %vm626, %v2461, %v2463
      %v2465 = vrot.slane %v2267, 2
      %v2466 = vrot.slane %v2202, 2
      %v2467 = vsel %vm626, %v2465, %v2466
      %v2468 = vrot.slane %v2283, 2
      %v2469 = vsel %vm626, %v2466, %v2468
      %v2472 = vrot.slane %v2268, 1
      %v2473 = vrot.slane %v2205, 1
      %v2474 = vsel %vm545, %v2472, %v2473
      %v2475 = vrot.slane %v2284, 1
      %v2476 = vsel %vm545, %v2473, %v2475
      %v2509 = vrot.slane %v2268, 2
      %v2510 = vrot.slane %v2205, 2
      %v2511 = vsel %vm626, %v2509, %v2510
      %v2512 = vrot.slane %v2284, 2
      %v2513 = vsel %vm626, %v2510, %v2512
      %2514 = vrot.lane.b32.xlu0 %v2317, 32
      %v2515 = vpop.permute.xlu0 %2514
      %2516 = vrot.lane.b32.xlu0 %v2320, 32
      %v2517 = vpop.permute.xlu0 %2516
      %2518 = vrot.lane.b32.xlu0 %v2322, 32
      %v2519 = vpop.permute.xlu0 %2518
      %2520 = vrot.lane.b32.xlu0 %v2325, 32
      %v2521 = vpop.permute.xlu0 %2520
      %2522 = vrot.lane.b32.xlu0 %v2327, 32
      %v2523 = vpop.permute.xlu0 %2522
      %2524 = vrot.lane.b32.xlu0 %v2330, 32
      %v2525 = vpop.permute.xlu0 %2524
      %2526 = vrot.lane.b32.xlu0 %v2332, 32
      %v2527 = vpop.permute.xlu0 %2526
      %2528 = vrot.lane.b32.xlu0 %v2335, 32
      %v2529 = vpop.permute.xlu0 %2528
      %2530 = vrot.lane.b32.xlu0 %v2337, 32
      %v2531 = vpop.permute.xlu0 %2530
      %2532 = vrot.lane.b32.xlu0 %v2340, 32
      %v2533 = vpop.permute.xlu0 %2532
      %2534 = vrot.lane.b32.xlu0 %v2342, 32
      %v2535 = vpop.permute.xlu0 %2534
      %2536 = vrot.lane.b32.xlu0 %v2345, 32
      %v2537 = vpop.permute.xlu0 %2536
      %2538 = vrot.lane.b32.xlu0 %v2347, 32
      %v2539 = vpop.permute.xlu0 %2538
      %2540 = vrot.lane.b32.xlu0 %v2350, 32
      %v2541 = vpop.permute.xlu0 %2540
      %2542 = vrot.lane.b32.xlu0 %v2352, 32
      %v2543 = vpop.permute.xlu0 %2542
      %2544 = vrot.lane.b32.xlu0 %v2355, 32
      %v2545 = vpop.permute.xlu0 %2544
      %2546 = vrot.lane.b32.xlu0 %v2357, 32
      %v2547 = vpop.permute.xlu0 %2546
      %2548 = vrot.lane.b32.xlu0 %v2360, 32
      %v2549 = vpop.permute.xlu0 %2548
      %2550 = vrot.lane.b32.xlu0 %v2362, 32
      %v2551 = vpop.permute.xlu0 %2550
      %2552 = vrot.lane.b32.xlu0 %v2365, 32
      %v2553 = vpop.permute.xlu0 %2552
      %2554 = vrot.lane.b32.xlu0 %v2367, 32
      %v2555 = vpop.permute.xlu0 %2554
      %2556 = vrot.lane.b32.xlu0 %v2370, 32
      %v2557 = vpop.permute.xlu0 %2556
      %2558 = vrot.lane.b32.xlu0 %v2372, 32
      %v2559 = vpop.permute.xlu0 %2558
      %2560 = vrot.lane.b32.xlu0 %v2375, 32
      %v2561 = vpop.permute.xlu0 %2560
      %2562 = vrot.lane.b32.xlu0 %v2377, 32
      %v2563 = vpop.permute.xlu0 %2562
      %2564 = vrot.lane.b32.xlu0 %v2380, 32
      %v2565 = vpop.permute.xlu0 %2564
      %2566 = vrot.lane.b32.xlu0 %v2382, 32
      %v2567 = vpop.permute.xlu0 %2566
      %2568 = vrot.lane.b32.xlu0 %v2385, 32
      %v2569 = vpop.permute.xlu0 %2568
      %2570 = vrot.lane.b32.xlu0 %v2387, 32
      %v2571 = vpop.permute.xlu0 %2570
      %2572 = vrot.lane.b32.xlu0 %v2390, 32
      %v2573 = vpop.permute.xlu0 %2572
      %2574 = vrot.lane.b32.xlu0 %v2392, 32
      %v2575 = vpop.permute.xlu0 %2574
      %2607 = vrot.lane.b32.xlu0 %v2394, 64
      %v2608 = vpop.permute.xlu0 %2607
      %2609 = vrot.lane.b32.xlu0 %v2397, 64
      %v2610 = vpop.permute.xlu0 %2609
      %2611 = vrot.lane.b32.xlu0 %v2399, 64
      %v2612 = vpop.permute.xlu0 %2611
      %2613 = vrot.lane.b32.xlu0 %v2402, 64
      %v2614 = vpop.permute.xlu0 %2613
      %2615 = vrot.lane.b32.xlu0 %v2404, 64
      %v2616 = vpop.permute.xlu0 %2615
      %2617 = vrot.lane.b32.xlu0 %v2407, 64
      %v2618 = vpop.permute.xlu0 %2617
      %2619 = vrot.lane.b32.xlu0 %v2409, 64
      %v2620 = vpop.permute.xlu0 %2619
      %2621 = vrot.lane.b32.xlu0 %v2412, 64
      %v2622 = vpop.permute.xlu0 %2621
      %2623 = vrot.lane.b32.xlu0 %v2414, 64
      %v2624 = vpop.permute.xlu0 %2623
      %2625 = vrot.lane.b32.xlu0 %v2417, 64
      %v2626 = vpop.permute.xlu0 %2625
      %2627 = vrot.lane.b32.xlu0 %v2419, 64
      %v2628 = vpop.permute.xlu0 %2627
      %2629 = vrot.lane.b32.xlu0 %v2422, 64
      %v2630 = vpop.permute.xlu0 %2629
      %2631 = vrot.lane.b32.xlu0 %v2424, 64
      %v2632 = vpop.permute.xlu0 %2631
      %2633 = vrot.lane.b32.xlu0 %v2427, 64
      %v2634 = vpop.permute.xlu0 %2633
      %2635 = vrot.lane.b32.xlu0 %v2429, 64
      %v2636 = vpop.permute.xlu0 %2635
      %2637 = vrot.lane.b32.xlu0 %v2432, 64
      %v2638 = vpop.permute.xlu0 %2637
      %2639 = vrot.lane.b32.xlu0 %v2434, 64
      %v2640 = vpop.permute.xlu0 %2639
      %2641 = vrot.lane.b32.xlu0 %v2437, 64
      %v2642 = vpop.permute.xlu0 %2641
      %2643 = vrot.lane.b32.xlu0 %v2439, 64
      %v2644 = vpop.permute.xlu0 %2643
      %2645 = vrot.lane.b32.xlu0 %v2442, 64
      %v2646 = vpop.permute.xlu0 %2645
      %2647 = vrot.lane.b32.xlu0 %v2444, 64
      %v2648 = vpop.permute.xlu0 %2647
      %2649 = vrot.lane.b32.xlu0 %v2447, 64
      %v2650 = vpop.permute.xlu0 %2649
      %2651 = vrot.lane.b32.xlu0 %v2449, 64
      %v2652 = vpop.permute.xlu0 %2651
      %2653 = vrot.lane.b32.xlu0 %v2452, 64
      %v2654 = vpop.permute.xlu0 %2653
      %2655 = vrot.lane.b32.xlu0 %v2454, 64
      %v2656 = vpop.permute.xlu0 %2655
      %2657 = vrot.lane.b32.xlu0 %v2457, 64
      %v2658 = vpop.permute.xlu0 %2657
      %2659 = vrot.lane.b32.xlu0 %v2459, 64
      %v2660 = vpop.permute.xlu0 %2659
      %2661 = vrot.lane.b32.xlu0 %v2462, 64
      %v2662 = vpop.permute.xlu0 %2661
      %2663 = vrot.lane.b32.xlu0 %v2464, 64
      %v2664 = vpop.permute.xlu0 %2663
      %2665 = vrot.lane.b32.xlu0 %v2467, 64
      %v2666 = vpop.permute.xlu0 %2665
      %2667 = vrot.lane.b32.xlu0 %v2469, 64
      %v2668 = vpop.permute.xlu0 %2667
      %2700 = vrot.lane.b32.xlu0 %v2253, 96
      %v2701 = vpop.permute.xlu0 %2700
      %2702 = vrot.lane.b32.xlu0 %v2160, 96
      %v2703 = vpop.permute.xlu0 %2702
      %2704 = vrot.lane.b32.xlu0 %v2254, 96
      %v2705 = vpop.permute.xlu0 %2704
      %2706 = vrot.lane.b32.xlu0 %v2163, 96
      %v2707 = vpop.permute.xlu0 %2706
      %2708 = vrot.lane.b32.xlu0 %v2255, 96
      %v2709 = vpop.permute.xlu0 %2708
      %2710 = vrot.lane.b32.xlu0 %v2166, 96
      %v2711 = vpop.permute.xlu0 %2710
      %2712 = vrot.lane.b32.xlu0 %v2256, 96
      %v2713 = vpop.permute.xlu0 %2712
      %2714 = vrot.lane.b32.xlu0 %v2169, 96
      %v2715 = vpop.permute.xlu0 %2714
      %2716 = vrot.lane.b32.xlu0 %v2257, 96
      %v2717 = vpop.permute.xlu0 %2716
      %2718 = vrot.lane.b32.xlu0 %v2172, 96
      %v2719 = vpop.permute.xlu0 %2718
      %2720 = vrot.lane.b32.xlu0 %v2258, 96
      %v2721 = vpop.permute.xlu0 %2720
      %2722 = vrot.lane.b32.xlu0 %v2175, 96
      %v2723 = vpop.permute.xlu0 %2722
      %2724 = vrot.lane.b32.xlu0 %v2259, 96
      %v2725 = vpop.permute.xlu0 %2724
      %2726 = vrot.lane.b32.xlu0 %v2178, 96
      %v2727 = vpop.permute.xlu0 %2726
      %2728 = vrot.lane.b32.xlu0 %v2260, 96
      %v2729 = vpop.permute.xlu0 %2728
      %2730 = vrot.lane.b32.xlu0 %v2181, 96
      %v2731 = vpop.permute.xlu0 %2730
      %2732 = vrot.lane.b32.xlu0 %v2261, 96
      %v2733 = vpop.permute.xlu0 %2732
      %2734 = vrot.lane.b32.xlu0 %v2184, 96
      %v2735 = vpop.permute.xlu0 %2734
      %2736 = vrot.lane.b32.xlu0 %v2262, 96
      %v2737 = vpop.permute.xlu0 %2736
      %2738 = vrot.lane.b32.xlu0 %v2187, 96
      %v2739 = vpop.permute.xlu0 %2738
      %2740 = vrot.lane.b32.xlu0 %v2263, 96
      %v2741 = vpop.permute.xlu0 %2740
      %2742 = vrot.lane.b32.xlu0 %v2190, 96
      %v2743 = vpop.permute.xlu0 %2742
      %2744 = vrot.lane.b32.xlu0 %v2264, 96
      %v2745 = vpop.permute.xlu0 %2744
      %2746 = vrot.lane.b32.xlu0 %v2193, 96
      %v2747 = vpop.permute.xlu0 %2746
      %2748 = vrot.lane.b32.xlu0 %v2265, 96
      %v2749 = vpop.permute.xlu0 %2748
      %2750 = vrot.lane.b32.xlu0 %v2196, 96
      %v2751 = vpop.permute.xlu0 %2750
      %2752 = vrot.lane.b32.xlu0 %v2266, 96
      %v2753 = vpop.permute.xlu0 %2752
      %2754 = vrot.lane.b32.xlu0 %v2199, 96
      %v2755 = vpop.permute.xlu0 %2754
      %2756 = vrot.lane.b32.xlu0 %v2267, 96
      %v2757 = vpop.permute.xlu0 %2756
      %2758 = vrot.lane.b32.xlu0 %v2202, 96
      %v2759 = vpop.permute.xlu0 %2758
      %2760 = vrot.lane.b32.xlu0 %v2268, 96
      %v2761 = vpop.permute.xlu0 %2760
      %2762 = vrot.lane.b32.xlu0 %v2205, 96
      %v2763 = vpop.permute.xlu0 %2762
      %2796 = vrot.lane.b32.xlu0 %v2397, 32
      %v2797 = vpop.permute.xlu0 %2796
      %2798 = vrot.lane.b32.xlu0 %v2399, 32
      %v2799 = vpop.permute.xlu0 %2798
      %2800 = vrot.lane.b32.xlu0 %v2402, 32
      %v2801 = vpop.permute.xlu0 %2800
      %2802 = vrot.lane.b32.xlu0 %v2404, 32
      %v2803 = vpop.permute.xlu0 %2802
      %2804 = vrot.lane.b32.xlu0 %v2407, 32
      %v2805 = vpop.permute.xlu0 %2804
      %2806 = vrot.lane.b32.xlu0 %v2409, 32
      %v2807 = vpop.permute.xlu0 %2806
      %2808 = vrot.lane.b32.xlu0 %v2412, 32
      %v2809 = vpop.permute.xlu0 %2808
      %2810 = vrot.lane.b32.xlu0 %v2414, 32
      %v2811 = vpop.permute.xlu0 %2810
      %2812 = vrot.lane.b32.xlu0 %v2417, 32
      %v2813 = vpop.permute.xlu0 %2812
      %2814 = vrot.lane.b32.xlu0 %v2419, 32
      %v2815 = vpop.permute.xlu0 %2814
      %2816 = vrot.lane.b32.xlu0 %v2422, 32
      %v2817 = vpop.permute.xlu0 %2816
      %2818 = vrot.lane.b32.xlu0 %v2424, 32
      %v2819 = vpop.permute.xlu0 %2818
      %2820 = vrot.lane.b32.xlu0 %v2427, 32
      %v2821 = vpop.permute.xlu0 %2820
      %2822 = vrot.lane.b32.xlu0 %v2429, 32
      %v2823 = vpop.permute.xlu0 %2822
      %2824 = vrot.lane.b32.xlu0 %v2432, 32
      %v2825 = vpop.permute.xlu0 %2824
      %2826 = vrot.lane.b32.xlu0 %v2434, 32
      %v2827 = vpop.permute.xlu0 %2826
      %2828 = vrot.lane.b32.xlu0 %v2437, 32
      %v2829 = vpop.permute.xlu0 %2828
      %2830 = vrot.lane.b32.xlu0 %v2439, 32
      %v2831 = vpop.permute.xlu0 %2830
      %2832 = vrot.lane.b32.xlu0 %v2442, 32
      %v2833 = vpop.permute.xlu0 %2832
      %2834 = vrot.lane.b32.xlu0 %v2444, 32
      %v2835 = vpop.permute.xlu0 %2834
      %2836 = vrot.lane.b32.xlu0 %v2447, 32
      %v2837 = vpop.permute.xlu0 %2836
      %2838 = vrot.lane.b32.xlu0 %v2449, 32
      %v2839 = vpop.permute.xlu0 %2838
      %2840 = vrot.lane.b32.xlu0 %v2452, 32
      %v2841 = vpop.permute.xlu0 %2840
      %2842 = vrot.lane.b32.xlu0 %v2454, 32
      %v2843 = vpop.permute.xlu0 %2842
      %2844 = vrot.lane.b32.xlu0 %v2457, 32
      %v2845 = vpop.permute.xlu0 %2844
      %2846 = vrot.lane.b32.xlu0 %v2459, 32
      %v2847 = vpop.permute.xlu0 %2846
      %2848 = vrot.lane.b32.xlu0 %v2462, 32
      %v2849 = vpop.permute.xlu0 %2848
      %2850 = vrot.lane.b32.xlu0 %v2464, 32
      %v2851 = vpop.permute.xlu0 %2850
      %2852 = vrot.lane.b32.xlu0 %v2467, 32
      %v2853 = vpop.permute.xlu0 %2852
      %2854 = vrot.lane.b32.xlu0 %v2469, 32
      %v2855 = vpop.permute.xlu0 %2854
      %2856 = vrot.lane.b32.xlu0 %v2511, 32
      %v2857 = vpop.permute.xlu0 %2856
      %2858 = vrot.lane.b32.xlu0 %v2513, 32
      %v2859 = vpop.permute.xlu0 %2858
      %2892 = vrot.lane.b32.xlu0 %v2254, 64
      %v2893 = vpop.permute.xlu0 %2892
      %2894 = vrot.lane.b32.xlu0 %v2163, 64
      %v2895 = vpop.permute.xlu0 %2894
      %2896 = vrot.lane.b32.xlu0 %v2255, 64
      %v2897 = vpop.permute.xlu0 %2896
      %2898 = vrot.lane.b32.xlu0 %v2166, 64
      %v2899 = vpop.permute.xlu0 %2898
      %2900 = vrot.lane.b32.xlu0 %v2256, 64
      %v2901 = vpop.permute.xlu0 %2900
      %2902 = vrot.lane.b32.xlu0 %v2169, 64
      %v2903 = vpop.permute.xlu0 %2902
      %2904 = vrot.lane.b32.xlu0 %v2257, 64
      %v2905 = vpop.permute.xlu0 %2904
      %2906 = vrot.lane.b32.xlu0 %v2172, 64
      %v2907 = vpop.permute.xlu0 %2906
      %2908 = vrot.lane.b32.xlu0 %v2258, 64
      %v2909 = vpop.permute.xlu0 %2908
      %2910 = vrot.lane.b32.xlu0 %v2175, 64
      %v2911 = vpop.permute.xlu0 %2910
      %2912 = vrot.lane.b32.xlu0 %v2259, 64
      %v2913 = vpop.permute.xlu0 %2912
      %2914 = vrot.lane.b32.xlu0 %v2178, 64
      %v2915 = vpop.permute.xlu0 %2914
      %2916 = vrot.lane.b32.xlu0 %v2260, 64
      %v2917 = vpop.permute.xlu0 %2916
      %2918 = vrot.lane.b32.xlu0 %v2181, 64
      %v2919 = vpop.permute.xlu0 %2918
      %2920 = vrot.lane.b32.xlu0 %v2261, 64
      %v2921 = vpop.permute.xlu0 %2920
      %2922 = vrot.lane.b32.xlu0 %v2184, 64
      %v2923 = vpop.permute.xlu0 %2922
      %2924 = vrot.lane.b32.xlu0 %v2262, 64
      %v2925 = vpop.permute.xlu0 %2924
      %2926 = vrot.lane.b32.xlu0 %v2187, 64
      %v2927 = vpop.permute.xlu0 %2926
      %2928 = vrot.lane.b32.xlu0 %v2263, 64
      %v2929 = vpop.permute.xlu0 %2928
      %2930 = vrot.lane.b32.xlu0 %v2190, 64
      %v2931 = vpop.permute.xlu0 %2930
      %2932 = vrot.lane.b32.xlu0 %v2264, 64
      %v2933 = vpop.permute.xlu0 %2932
      %2934 = vrot.lane.b32.xlu0 %v2193, 64
      %v2935 = vpop.permute.xlu0 %2934
      %2936 = vrot.lane.b32.xlu0 %v2265, 64
      %v2937 = vpop.permute.xlu0 %2936
      %2938 = vrot.lane.b32.xlu0 %v2196, 64
      %v2939 = vpop.permute.xlu0 %2938
      %2940 = vrot.lane.b32.xlu0 %v2266, 64
      %v2941 = vpop.permute.xlu0 %2940
      %2942 = vrot.lane.b32.xlu0 %v2199, 64
      %v2943 = vpop.permute.xlu0 %2942
      %2944 = vrot.lane.b32.xlu0 %v2267, 64
      %v2945 = vpop.permute.xlu0 %2944
      %2946 = vrot.lane.b32.xlu0 %v2202, 64
      %v2947 = vpop.permute.xlu0 %2946
      %2948 = vrot.lane.b32.xlu0 %v2268, 64
      %v2949 = vpop.permute.xlu0 %2948
      %2950 = vrot.lane.b32.xlu0 %v2205, 64
      %v2951 = vpop.permute.xlu0 %2950
      %2952 = vrot.lane.b32.xlu0 0.0, 64
      %v2953 = vpop.permute.xlu0 %2952
      %2985 = vrot.lane.b32.xlu0 %v2325, 96
      %v2986 = vpop.permute.xlu0 %2985
      %2987 = vrot.lane.b32.xlu0 %v2327, 96
      %v2988 = vpop.permute.xlu0 %2987
      %2989 = vrot.lane.b32.xlu0 %v2330, 96
      %v2990 = vpop.permute.xlu0 %2989
      %2991 = vrot.lane.b32.xlu0 %v2332, 96
      %v2992 = vpop.permute.xlu0 %2991
      %2993 = vrot.lane.b32.xlu0 %v2335, 96
      %v2994 = vpop.permute.xlu0 %2993
      %2995 = vrot.lane.b32.xlu0 %v2337, 96
      %v2996 = vpop.permute.xlu0 %2995
      %2997 = vrot.lane.b32.xlu0 %v2340, 96
      %v2998 = vpop.permute.xlu0 %2997
      %2999 = vrot.lane.b32.xlu0 %v2342, 96
      %v3000 = vpop.permute.xlu0 %2999
      %3001 = vrot.lane.b32.xlu0 %v2345, 96
      %v3002 = vpop.permute.xlu0 %3001
      %3003 = vrot.lane.b32.xlu0 %v2347, 96
      %v3004 = vpop.permute.xlu0 %3003
      %3005 = vrot.lane.b32.xlu0 %v2350, 96
      %v3006 = vpop.permute.xlu0 %3005
      %3007 = vrot.lane.b32.xlu0 %v2352, 96
      %v3008 = vpop.permute.xlu0 %3007
      %3009 = vrot.lane.b32.xlu0 %v2355, 96
      %v3010 = vpop.permute.xlu0 %3009
      %3011 = vrot.lane.b32.xlu0 %v2357, 96
      %v3012 = vpop.permute.xlu0 %3011
      %3013 = vrot.lane.b32.xlu0 %v2360, 96
      %v3014 = vpop.permute.xlu0 %3013
      %3015 = vrot.lane.b32.xlu0 %v2362, 96
      %v3016 = vpop.permute.xlu0 %3015
      %3017 = vrot.lane.b32.xlu0 %v2365, 96
      %v3018 = vpop.permute.xlu0 %3017
      %3019 = vrot.lane.b32.xlu0 %v2367, 96
      %v3020 = vpop.permute.xlu0 %3019
      %3021 = vrot.lane.b32.xlu0 %v2370, 96
      %v3022 = vpop.permute.xlu0 %3021
      %3023 = vrot.lane.b32.xlu0 %v2372, 96
      %v3024 = vpop.permute.xlu0 %3023
      %3025 = vrot.lane.b32.xlu0 %v2375, 96
      %v3026 = vpop.permute.xlu0 %3025
      %3027 = vrot.lane.b32.xlu0 %v2377, 96
      %v3028 = vpop.permute.xlu0 %3027
      %3029 = vrot.lane.b32.xlu0 %v2380, 96
      %v3030 = vpop.permute.xlu0 %3029
      %3031 = vrot.lane.b32.xlu0 %v2382, 96
      %v3032 = vpop.permute.xlu0 %3031
      %3033 = vrot.lane.b32.xlu0 %v2385, 96
      %v3034 = vpop.permute.xlu0 %3033
      %3035 = vrot.lane.b32.xlu0 %v2387, 96
      %v3036 = vpop.permute.xlu0 %3035
      %3037 = vrot.lane.b32.xlu0 %v2390, 96
      %v3038 = vpop.permute.xlu0 %3037
      %3039 = vrot.lane.b32.xlu0 %v2392, 96
      %v3040 = vpop.permute.xlu0 %3039
      %3041 = vrot.lane.b32.xlu0 %v2474, 96
      %v3042 = vpop.permute.xlu0 %3041
      %3043 = vrot.lane.b32.xlu0 %v2476, 96
      %v3044 = vpop.permute.xlu0 %3043
      %3045 = vrot.lane.b32.xlu0 %v2317, 96
      %v3046 = vpop.permute.xlu0 %3045
      %v3078 = vsel %vm1341, 0.0, %v2515
      %v3079 = vsel %vm1341, %v2253, %v2517
      %v3080 = vsel %vm1341, %v2160, %v2519
      %v3081 = vsel %vm1341, %v2254, %v2521
      %v3082 = vsel %vm1341, %v2163, %v2523
      %v3083 = vsel %vm1341, %v2255, %v2525
      %v3084 = vsel %vm1341, %v2166, %v2527
      %v3085 = vsel %vm1341, %v2256, %v2529
      %v3086 = vsel %vm1341, %v2169, %v2531
      %v3087 = vsel %vm1341, %v2257, %v2533
      %v3088 = vsel %vm1341, %v2172, %v2535
      %v3089 = vsel %vm1341, %v2258, %v2537
      %v3090 = vsel %vm1341, %v2175, %v2539
      %v3091 = vsel %vm1341, %v2259, %v2541
      %v3092 = vsel %vm1341, %v2178, %v2543
      %v3093 = vsel %vm1341, %v2260, %v2545
      %v3094 = vsel %vm1341, %v2181, %v2547
      %v3095 = vsel %vm1341, %v2261, %v2549
      %v3096 = vsel %vm1341, %v2184, %v2551
      %v3097 = vsel %vm1341, %v2262, %v2553
      %v3098 = vsel %vm1341, %v2187, %v2555
      %v3099 = vsel %vm1341, %v2263, %v2557
      %v3100 = vsel %vm1341, %v2190, %v2559
      %v3101 = vsel %vm1341, %v2264, %v2561
      %v3102 = vsel %vm1341, %v2193, %v2563
      %v3103 = vsel %vm1341, %v2265, %v2565
      %v3104 = vsel %vm1341, %v2196, %v2567
      %v3105 = vsel %vm1341, %v2266, %v2569
      %v3106 = vsel %vm1341, %v2199, %v2571
      %v3107 = vsel %vm1341, %v2267, %v2573
      %v3108 = vsel %vm1341, %v2202, %v2575
      %v3109 = vsel %vm1374, %v3078, %v2608
      %v3110 = vsel %vm1374, %v3079, %v2610
      %v3111 = vsel %vm1374, %v3080, %v2612
      %v3112 = vsel %vm1374, %v3081, %v2614
      %v3113 = vsel %vm1374, %v3082, %v2616
      %v3114 = vsel %vm1374, %v3083, %v2618
      %v3115 = vsel %vm1374, %v3084, %v2620
      %v3116 = vsel %vm1374, %v3085, %v2622
      %v3117 = vsel %vm1374, %v3086, %v2624
      %v3118 = vsel %vm1374, %v3087, %v2626
      %v3119 = vsel %vm1374, %v3088, %v2628
      %v3120 = vsel %vm1374, %v3089, %v2630
      %v3121 = vsel %vm1374, %v3090, %v2632
      %v3122 = vsel %vm1374, %v3091, %v2634
      %v3123 = vsel %vm1374, %v3092, %v2636
      %v3124 = vsel %vm1374, %v3093, %v2638
      %v3125 = vsel %vm1374, %v3094, %v2640
      %v3126 = vsel %vm1374, %v3095, %v2642
      %v3127 = vsel %vm1374, %v3096, %v2644
      %v3128 = vsel %vm1374, %v3097, %v2646
      %v3129 = vsel %vm1374, %v3098, %v2648
      %v3130 = vsel %vm1374, %v3099, %v2650
      %v3131 = vsel %vm1374, %v3100, %v2652
      %v3132 = vsel %vm1374, %v3101, %v2654
      %v3133 = vsel %vm1374, %v3102, %v2656
      %v3134 = vsel %vm1374, %v3103, %v2658
      %v3135 = vsel %vm1374, %v3104, %v2660
      %v3136 = vsel %vm1374, %v3105, %v2662
      %v3137 = vsel %vm1374, %v3106, %v2664
      %v3138 = vsel %vm1374, %v3107, %v2666
      %v3139 = vsel %vm1374, %v3108, %v2668
      %v3140 = vsel %vm1407, %v3109, %v2701
      %v3141 = vsel %vm1407, %v3109, %v2703
      %v3142 = vsel %vm1407, %v3110, %v2705
      %v3143 = vsel %vm1407, %v3111, %v2707
      %v3144 = vsel %vm1407, %v3112, %v2709
      %v3145 = vsel %vm1407, %v3113, %v2711
      %v3146 = vsel %vm1407, %v3114, %v2713
      %v3147 = vsel %vm1407, %v3115, %v2715
      %v3148 = vsel %vm1407, %v3116, %v2717
      %v3149 = vsel %vm1407, %v3117, %v2719
      %v3150 = vsel %vm1407, %v3118, %v2721
      %v3151 = vsel %vm1407, %v3119, %v2723
      %v3152 = vsel %vm1407, %v3120, %v2725
      %v3153 = vsel %vm1407, %v3121, %v2727
      %v3154 = vsel %vm1407, %v3122, %v2729
      %v3155 = vsel %vm1407, %v3123, %v2731
      %v3156 = vsel %vm1407, %v3124, %v2733
      %v3157 = vsel %vm1407, %v3125, %v2735
      %v3158 = vsel %vm1407, %v3126, %v2737
      %v3159 = vsel %vm1407, %v3127, %v2739
      %v3160 = vsel %vm1407, %v3128, %v2741
      %v3161 = vsel %vm1407, %v3129, %v2743
      %v3162 = vsel %vm1407, %v3130, %v2745
      %v3163 = vsel %vm1407, %v3131, %v2747
      %v3164 = vsel %vm1407, %v3132, %v2749
      %v3165 = vsel %vm1407, %v3133, %v2751
      %v3166 = vsel %vm1407, %v3134, %v2753
      %v3167 = vsel %vm1407, %v3135, %v2755
      %v3168 = vsel %vm1407, %v3136, %v2757
      %v3169 = vsel %vm1407, %v3137, %v2759
      %v3170 = vsel %vm1407, %v3138, %v2761
      %v3171 = vsel %vm1407, %v3139, %v2763
      %v3172 = vsel %vm1341, %v2320, %v2797
      %v3173 = vsel %vm1341, %v2322, %v2799
      %v3174 = vsel %vm1341, %v2325, %v2801
      %v3175 = vsel %vm1341, %v2327, %v2803
      %v3176 = vsel %vm1341, %v2330, %v2805
      %v3177 = vsel %vm1341, %v2332, %v2807
      %v3178 = vsel %vm1341, %v2335, %v2809
      %v3179 = vsel %vm1341, %v2337, %v2811
      %v3180 = vsel %vm1341, %v2340, %v2813
      %v3181 = vsel %vm1341, %v2342, %v2815
      %v3182 = vsel %vm1341, %v2345, %v2817
      %v3183 = vsel %vm1341, %v2347, %v2819
      %v3184 = vsel %vm1341, %v2350, %v2821
      %v3185 = vsel %vm1341, %v2352, %v2823
      %v3186 = vsel %vm1341, %v2355, %v2825
      %v3187 = vsel %vm1341, %v2357, %v2827
      %v3188 = vsel %vm1341, %v2360, %v2829
      %v3189 = vsel %vm1341, %v2362, %v2831
      %v3190 = vsel %vm1341, %v2365, %v2833
      %v3191 = vsel %vm1341, %v2367, %v2835
      %v3192 = vsel %vm1341, %v2370, %v2837
      %v3193 = vsel %vm1341, %v2372, %v2839
      %v3194 = vsel %vm1341, %v2375, %v2841
      %v3195 = vsel %vm1341, %v2377, %v2843
      %v3196 = vsel %vm1341, %v2380, %v2845
      %v3197 = vsel %vm1341, %v2382, %v2847
      %v3198 = vsel %vm1341, %v2385, %v2849
      %v3199 = vsel %vm1341, %v2387, %v2851
      %v3200 = vsel %vm1341, %v2390, %v2853
      %v3201 = vsel %vm1341, %v2392, %v2855
      %v3202 = vsel %vm1341, %v2474, %v2857
      %v3203 = vsel %vm1341, %v2476, %v2859
      %v3204 = vsel %vm1374, %v3172, %v2893
      %v3205 = vsel %vm1374, %v3173, %v2895
      %v3206 = vsel %vm1374, %v3174, %v2897
      %v3207 = vsel %vm1374, %v3175, %v2899
      %v3208 = vsel %vm1374, %v3176, %v2901
      %v3209 = vsel %vm1374, %v3177, %v2903
      %v3210 = vsel %vm1374, %v3178, %v2905
      %v3211 = vsel %vm1374, %v3179, %v2907
      %v3212 = vsel %vm1374, %v3180, %v2909
      %v3213 = vsel %vm1374, %v3181, %v2911
      %v3214 = vsel %vm1374, %v3182, %v2913
      %v3215 = vsel %vm1374, %v3183, %v2915
      %v3216 = vsel %vm1374, %v3184, %v2917
      %v3217 = vsel %vm1374, %v3185, %v2919
      %v3218 = vsel %vm1374, %v3186, %v2921
      %v3219 = vsel %vm1374, %v3187, %v2923
      %v3220 = vsel %vm1374, %v3188, %v2925
      %v3221 = vsel %vm1374, %v3189, %v2927
      %v3222 = vsel %vm1374, %v3190, %v2929
      %v3223 = vsel %vm1374, %v3191, %v2931
      %v3224 = vsel %vm1374, %v3192, %v2933
      %v3225 = vsel %vm1374, %v3193, %v2935
      %v3226 = vsel %vm1374, %v3194, %v2937
      %v3227 = vsel %vm1374, %v3195, %v2939
      %v3228 = vsel %vm1374, %v3196, %v2941
      %v3229 = vsel %vm1374, %v3197, %v2943
      %v3230 = vsel %vm1374, %v3198, %v2945
      %v3231 = vsel %vm1374, %v3199, %v2947
      %v3232 = vsel %vm1374, %v3200, %v2949
      %v3233 = vsel %vm1374, %v3201, %v2951
      %v3234 = vsel %vm1374, %v3202, %v2953
      %v3235 = vsel %vm1374, %v3203, %v2953
      %v3236 = vsel %vm1407, %v3204, %v2986
      %v3237 = vsel %vm1407, %v3205, %v2988
      %v3238 = vsel %vm1407, %v3206, %v2990
      %v3239 = vsel %vm1407, %v3207, %v2992
      %v3240 = vsel %vm1407, %v3208, %v2994
      %v3241 = vsel %vm1407, %v3209, %v2996
      %v3242 = vsel %vm1407, %v3210, %v2998
      %v3243 = vsel %vm1407, %v3211, %v3000
      %v3244 = vsel %vm1407, %v3212, %v3002
      %v3245 = vsel %vm1407, %v3213, %v3004
      %v3246 = vsel %vm1407, %v3214, %v3006
      %v3247 = vsel %vm1407, %v3215, %v3008
      %v3248 = vsel %vm1407, %v3216, %v3010
      %v3249 = vsel %vm1407, %v3217, %v3012
      %v3250 = vsel %vm1407, %v3218, %v3014
      %v3251 = vsel %vm1407, %v3219, %v3016
      %v3252 = vsel %vm1407, %v3220, %v3018
      %v3253 = vsel %vm1407, %v3221, %v3020
      %v3254 = vsel %vm1407, %v3222, %v3022
      %v3255 = vsel %vm1407, %v3223, %v3024
      %v3256 = vsel %vm1407, %v3224, %v3026
      %v3257 = vsel %vm1407, %v3225, %v3028
      %v3258 = vsel %vm1407, %v3226, %v3030
      %v3259 = vsel %vm1407, %v3227, %v3032
      %v3260 = vsel %vm1407, %v3228, %v3034
      %v3261 = vsel %vm1407, %v3229, %v3036
      %v3262 = vsel %vm1407, %v3230, %v3038
      %v3263 = vsel %vm1407, %v3231, %v3040
      %v3264 = vsel %vm1407, %v3232, %v3042
      %v3265 = vsel %vm1407, %v3233, %v3044
      %v3266 = vsel %vm1407, %v3234, %v3046
      %v3267 = vsel %vm1407, %v3235, %v3046
      %v3268 = vld [vmem:[%s3] sm:$0xff]
      %v3269 = vld [vmem:[%s3 + $0x8] sm:$0xff]
      %v3270 = vld [vmem:[%s3 + $0x10] sm:$0xff]
      %v3271 = vld [vmem:[%s3 + $0x18] sm:$0xff]
      %v3272 = vld [vmem:[%s3 + $0x20] sm:$0xff]
      %v3273 = vld [vmem:[%s3 + $0x28] sm:$0xff]
      %v3274 = vld [vmem:[%s3 + $0x30] sm:$0xff]
      %v3275 = vld [vmem:[%s3 + $0x38] sm:$0xff]
      %v3276 = vld [vmem:[%s3 + $0x40] sm:$0xff]
      %v3277 = vld [vmem:[%s3 + $0x48] sm:$0xff]
      %v3278 = vld [vmem:[%s3 + $0x50] sm:$0xff]
      %v3279 = vld [vmem:[%s3 + $0x58] sm:$0xff]
      %v3280 = vld [vmem:[%s3 + $0x60] sm:$0xff]
      %v3281 = vld [vmem:[%s3 + $0x68] sm:$0xff]
      %v3282 = vld [vmem:[%s3 + $0x70] sm:$0xff]
      %v3283 = vld [vmem:[%s3 + $0x78] sm:$0xff]
      %v3284 = vld [vmem:[%s3 + $0x80] sm:$0xff]
      %v3285 = vld [vmem:[%s3 + $0x88] sm:$0xff]
      %v3286 = vld [vmem:[%s3 + $0x90] sm:$0xff]
      %v3287 = vld [vmem:[%s3 + $0x98] sm:$0xff]
      %v3288 = vld [vmem:[%s3 + $0xa0] sm:$0xff]
      %v3289 = vld [vmem:[%s3 + $0xa8] sm:$0xff]
      %v3290 = vld [vmem:[%s3 + $0xb0] sm:$0xff]
      %v3291 = vld [vmem:[%s3 + $0xb8] sm:$0xff]
      %v3292 = vld [vmem:[%s3 + $0xc0] sm:$0xff]
      %v3293 = vld [vmem:[%s3 + $0xc8] sm:$0xff]
      %v3294 = vld [vmem:[%s3 + $0xd0] sm:$0xff]
      %v3295 = vld [vmem:[%s3 + $0xd8] sm:$0xff]
      %v3296 = vld [vmem:[%s3 + $0xe0] sm:$0xff]
      %v3297 = vld [vmem:[%s3 + $0xe8] sm:$0xff]
      %v3298 = vld [vmem:[%s3 + $0xf0] sm:$0xff]
      %v3299 = vld [vmem:[%s3 + $0xf8] sm:$0xff]
      %v3300 = vld [vmem:[%s3 + $0x100] sm:$0xff]
      %v3301 = vld [vmem:[%s3 + $0x108] sm:$0xff]
      %v3302 = vld [vmem:[%s3 + $0x110] sm:$0xff]
      %v3303 = vld [vmem:[%s3 + $0x118] sm:$0xff]
      %v3304 = vld [vmem:[%s4] sm:$0x1]
      %v3306 = vlaneseq
      %v3307 = vshrl.u32 %v3306, 7
      %v3308 = vsub.s32 0, %v3307
      %v3309 = vrot.slane %v3304, %v3308
      %v3311 = vsel %vm1341, %v2402, 0
      %v3313 = vsel %vm1341, %v2404, 0
      %v3315 = vsel %vm1341, %v2407, 0
      %v3317 = vsel %vm1341, %v2409, 0
      %v3319 = vsel %vm1341, %v2412, 0
      %v3321 = vsel %vm1341, %v2414, 0
      %v3323 = vsel %vm1341, %v2417, 0
      %v3325 = vsel %vm1341, %v2419, 0
      %v3327 = vsel %vm1341, %v2422, 0
      %v3329 = vsel %vm1341, %v2424, 0
      %v3331 = vsel %vm1341, %v2427, 0
      %v3333 = vsel %vm1341, %v2429, 0
      %v3335 = vsel %vm1341, %v2432, 0
      %v3337 = vsel %vm1341, %v2434, 0
      %v3339 = vsel %vm1341, %v2437, 0
      %v3341 = vsel %vm1341, %v2439, 0
      %v3343 = vsel %vm1341, %v2442, 0
      %v3345 = vsel %vm1341, %v2444, 0
      %v3347 = vsel %vm1341, %v2447, 0
      %v3349 = vsel %vm1341, %v2449, 0
      %v3351 = vsel %vm1341, %v2452, 0
      %v3353 = vsel %vm1341, %v2454, 0
      %v3355 = vsel %vm1341, %v2457, 0
      %v3357 = vsel %vm1341, %v2459, 0
      %v3359 = vsel %vm1341, %v2462, 0
      %v3361 = vsel %vm1341, %v2464, 0
      %v3363 = vsel %vm1341, %v2467, 0
      %v3365 = vsel %vm1341, %v2469, 0
      %v3367 = vsel %vm1341, %v2511, 0
      %v3369 = vsel %vm1341, %v2513, 0
      %v3371 = vsel %vm1341, %v2394, 0
      %3373 = vmatprep.subr.mxu0 0.0
      %3374 = vmatpush1.msra.mxu0 %v3268
      %3375 = vmatprep.subr.mxu0 0.0
      %3376 = vmatpush1.msra.mxu0 %v3269
      %3377 = vmatprep.subr.mxu0 0.0
      %3378 = vmatpush1.msra.mxu0 %v3270
      %3379 = vmatprep.subr.mxu0 0.0
      %3380 = vmatpush1.msra.mxu0 %v3271
      %3381 = vmatprep.subr.mxu0 0.0
      %3382 = vmatpush1.msra.mxu0 %v3272
      %3383 = vmatprep.subr.mxu0 0.0
      %3384 = vmatpush1.msra.mxu0 %v3273
      %3385 = vmatprep.subr.mxu0 0.0
      %3386 = vmatpush1.msra.mxu0 %v3274
      %3387 = vmatprep.subr.mxu0 0.0
      %3388 = vmatpush1.msra.mxu0 %v3275
      %3389 = vmatprep.subr.mxu0 0.0
      %3390 = vmatpush1.msra.mxu0 %v3276
      %3391 = vmatprep.subr.mxu0 0.0
      %3392 = vmatpush1.msra.mxu0 %v3277
      %3393 = vmatprep.subr.mxu0 0.0
      %3394 = vmatpush1.msra.mxu0 %v3278
      %3395 = vmatprep.subr.mxu0 0.0
      %3396 = vmatpush1.msra.mxu0 %v3279
      %3397 = vmatprep.subr.mxu0 0.0
      %3398 = vmatpush1.msra.mxu0 %v3280
      %3399 = vmatprep.subr.mxu0 0.0
      %3400 = vmatpush1.msra.mxu0 %v3281
      %3401 = vmatprep.subr.mxu0 0.0
      %3402 = vmatpush1.msra.mxu0 %v3282
      %3403 = vmatprep.subr.mxu0 0.0
      %3404 = vmatpush1.msra.mxu0 %v3283
      %3405 = vmatprep.subr.mxu0 0.0
      %3406 = vmatpush1.msra.mxu0 %v3284
      %3407 = vmatprep.subr.mxu0 0.0
      %3408 = vmatpush1.msra.mxu0 %v3285
      %3409 = vmatprep.subr.mxu0 0.0
      %3410 = vmatpush1.msra.mxu0 %v3286
      %3411 = vmatprep.subr.mxu0 0.0
      %3412 = vmatpush1.msra.mxu0 %v3287
      %3413 = vmatprep.subr.mxu0 0.0
      %3414 = vmatpush1.msra.mxu0 %v3288
      %3415 = vmatprep.subr.mxu0 0.0
      %3416 = vmatpush1.msra.mxu0 %v3289
      %3417 = vmatprep.subr.mxu0 0.0
      %3418 = vmatpush1.msra.mxu0 %v3290
      %3419 = vmatprep.subr.mxu0 0.0
      %3420 = vmatpush1.msra.mxu0 %v3291
      %3421 = vmatprep.subr.mxu0 0.0
      %3422 = vmatpush1.msra.mxu0 %v3292
      %3423 = vmatprep.subr.mxu0 0.0
      %3424 = vmatpush1.msra.mxu0 %v3293
      %3425 = vmatprep.subr.mxu0 0.0
      %3426 = vmatpush1.msra.mxu0 %v3294
      %3427 = vmatprep.subr.mxu0 0.0
      %3428 = vmatpush1.msra.mxu0 %v3295
      %3429 = vmatprep.subr.mxu0 0.0
      %3430 = vmatpush1.msra.mxu0 %v3296
      %3431 = vmatprep.subr.mxu0 0.0
      %3432 = vmatpush1.msra.mxu0 %v3297
      %3433 = vmatprep.subr.mxu0 0.0
      %3434 = vmatpush1.msra.mxu0 %v3298
      %3435 = vmatprep.subr.mxu0 0.0
      %3436 = vmatpush1.msra.mxu0 %v3299
      %3437 = vmatprep.mubr.f32.mxu0 %v3236
      %3438 = vmatmul.mubr.f32.gmra.mrb[0].mxu0 %v3140
      %v3439 = vpop.f32.mrb[0].mxu0
      %v3440 = vadd.f32 %v3309, %v3439
      %v3441 = vpop.f32.mrb[0].mxu0
      %3442 = vmatprep.mubr.f32.mxu0 %v3237
      %3443 = vmatmul.mubr.f32.gmra.mrb[0].mxu0 %v3141
      %v3444 = vpop.f32.mrb[0].mxu0
      %v3445 = vadd.f32 %v3309, %v3444
      %v3446 = vpop.f32.mrb[0].mxu0
      %3447 = vmatprep.mubr.f32.mxu0 %v3238
      %3448 = vmatmul.mubr.f32.gmra.mrb[0].mxu0 %v3142
      %v3449 = vpop.f32.mrb[0].mxu0
      %v3450 = vadd.f32 %v3309, %v3449
      %v3451 = vpop.f32.mrb[0].mxu0
      %3452 = vmatprep.mubr.f32.mxu0 %v3239
      %3453 = vmatmul.mubr.f32.gmra.mrb[0].mxu0 %v3143
      %v3454 = vpop.f32.mrb[0].mxu0
      %v3455 = vadd.f32 %v3309, %v3454
      %v3456 = vpop.f32.mrb[0].mxu0
      %3457 = vmatprep.mubr.f32.mxu0 %v3240
      %3458 = vmatmul.mubr.f32.gmra.mrb[0].mxu0 %v3144
      %v3459 = vpop.f32.mrb[0].mxu0
      %v3460 = vadd.f32 %v3309, %v3459
      %v3461 = vpop.f32.mrb[0].mxu0
      %3462 = vmatprep.mubr.f32.mxu0 %v3241
      %3463 = vmatmul.mubr.f32.gmra.mrb[0].mxu0 %v3145
      %v3464 = vpop.f32.mrb[0].mxu0
      %v3465 = vadd.f32 %v3309, %v3464
      %v3466 = vpop.f32.mrb[0].mxu0
      %3467 = vmatprep.mubr.f32.mxu0 %v3242
      %3468 = vmatmul.mubr.f32.gmra.mrb[0].mxu0 %v3146
      %v3469 = vpop.f32.mrb[0].mxu0
      %v3470 = vadd.f32 %v3309, %v3469
      %v3471 = vpop.f32.mrb[0].mxu0
      %3472 = vmatprep.mubr.f32.mxu0 %v3243
      %3473 = vmatmul.mubr.f32.gmra.mrb[0].mxu0 %v3147
      %v3474 = vpop.f32.mrb[0].mxu0
      %v3475 = vadd.f32 %v3309, %v3474
      %v3476 = vpop.f32.mrb[0].mxu0
      %3477 = vmatprep.mubr.f32.mxu0 %v3244
      %3478 = vmatmul.mubr.f32.gmra.mrb[0].mxu0 %v3148
      %v3479 = vpop.f32.mrb[0].mxu0
      %v3480 = vadd.f32 %v3309, %v3479
      %v3481 = vpop.f32.mrb[0].mxu0
      %3482 = vmatprep.mubr.f32.mxu0 %v3245
      %3483 = vmatmul.mubr.f32.gmra.mrb[0].mxu0 %v3149
      %v3484 = vpop.f32.mrb[0].mxu0
      %v3485 = vadd.f32 %v3309, %v3484
      %v3486 = vpop.f32.mrb[0].mxu0
      %3487 = vmatprep.mubr.f32.mxu0 %v3246
      %3488 = vmatmul.mubr.f32.gmra.mrb[0].mxu0 %v3150
      %v3489 = vpop.f32.mrb[0].mxu0
      %v3490 = vadd.f32 %v3309, %v3489
      %v3491 = vpop.f32.mrb[0].mxu0
      %3492 = vmatprep.mubr.f32.mxu0 %v3247
      %3493 = vmatmul.mubr.f32.gmra.mrb[0].mxu0 %v3151
      %v3494 = vpop.f32.mrb[0].mxu0
      %v3495 = vadd.f32 %v3309, %v3494
      %v3496 = vpop.f32.mrb[0].mxu0
      %3497 = vmatprep.mubr.f32.mxu0 %v3248
      %3498 = vmatmul.mubr.f32.gmra.mrb[0].mxu0 %v3152
      %v3499 = vpop.f32.mrb[0].mxu0
      %v3500 = vadd.f32 %v3309, %v3499
      %v3501 = vpop.f32.mrb[0].mxu0
      %3502 = vmatprep.mubr.f32.mxu0 %v3249
      %3503 = vmatmul.mubr.f32.gmra.mrb[0].mxu0 %v3153
      %v3504 = vpop.f32.mrb[0].mxu0
      %v3505 = vadd.f32 %v3309, %v3504
      %v3506 = vpop.f32.mrb[0].mxu0
      %3507 = vmatprep.mubr.f32.mxu0 %v3250
      %3508 = vmatmul.mubr.f32.gmra.mrb[0].mxu0 %v3154
      %v3509 = vpop.f32.mrb[0].mxu0
      %v3510 = vadd.f32 %v3309, %v3509
      %v3511 = vpop.f32.mrb[0].mxu0
      %3512 = vmatprep.mubr.f32.mxu0 %v3251
      %3513 = vmatmul.mubr.f32.gmra.mrb[0].mxu0 %v3155
      %v3514 = vpop.f32.mrb[0].mxu0
      %v3515 = vadd.f32 %v3309, %v3514
      %v3516 = vpop.f32.mrb[0].mxu0
      %3517 = vmatprep.mubr.f32.mxu0 %v3252
      %3518 = vmatmul.mubr.f32.gmra.mrb[0].mxu0 %v3156
      %v3519 = vpop.f32.mrb[0].mxu0
      %v3520 = vadd.f32 %v3309, %v3519
      %v3521 = vpop.f32.mrb[0].mxu0
      %3522 = vmatprep.mubr.f32.mxu0 %v3253
      %3523 = vmatmul.mubr.f32.gmra.mrb[0].mxu0 %v3157
      %v3524 = vpop.f32.mrb[0].mxu0
      %v3525 = vadd.f32 %v3309, %v3524
      %v3526 = vpop.f32.mrb[0].mxu0
      %3527 = vmatprep.mubr.f32.mxu0 %v3254
      %3528 = vmatmul.mubr.f32.gmra.mrb[0].mxu0 %v3158
      %v3529 = vpop.f32.mrb[0].mxu0
      %v3530 = vadd.f32 %v3309, %v3529
      %v3531 = vpop.f32.mrb[0].mxu0
      %3532 = vmatprep.mubr.f32.mxu0 %v3255
      %3533 = vmatmul.mubr.f32.gmra.mrb[0].mxu0 %v3159
      %v3534 = vpop.f32.mrb[0].mxu0
      %v3535 = vadd.f32 %v3309, %v3534
      %v3536 = vpop.f32.mrb[0].mxu0
      %3537 = vmatprep.mubr.f32.mxu0 %v3256
      %3538 = vmatmul.mubr.f32.gmra.mrb[0].mxu0 %v3160
      %v3539 = vpop.f32.mrb[0].mxu0
      %v3540 = vadd.f32 %v3309, %v3539
      %v3541 = vpop.f32.mrb[0].mxu0
      %3542 = vmatprep.mubr.f32.mxu0 %v3257
      %3543 = vmatmul.mubr.f32.gmra.mrb[0].mxu0 %v3161
      %v3544 = vpop.f32.mrb[0].mxu0
      %v3545 = vadd.f32 %v3309, %v3544
      %v3546 = vpop.f32.mrb[0].mxu0
      %3547 = vmatprep.mubr.f32.mxu0 %v3258
      %3548 = vmatmul.mubr.f32.gmra.mrb[0].mxu0 %v3162
      %v3549 = vpop.f32.mrb[0].mxu0
      %v3550 = vadd.f32 %v3309, %v3549
      %v3551 = vpop.f32.mrb[0].mxu0
      %3552 = vmatprep.mubr.f32.mxu0 %v3259
      %3553 = vmatmul.mubr.f32.gmra.mrb[0].mxu0 %v3163
      %v3554 = vpop.f32.mrb[0].mxu0
      %v3555 = vadd.f32 %v3309, %v3554
      %v3556 = vpop.f32.mrb[0].mxu0
      %3557 = vmatprep.mubr.f32.mxu0 %v3260
      %3558 = vmatmul.mubr.f32.gmra.mrb[0].mxu0 %v3164
      %v3559 = vpop.f32.mrb[0].mxu0
      %v3560 = vadd.f32 %v3309, %v3559
      %v3561 = vpop.f32.mrb[0].mxu0
      %3562 = vmatprep.mubr.f32.mxu0 %v3261
      %3563 = vmatmul.mubr.f32.gmra.mrb[0].mxu0 %v3165
      %v3564 = vpop.f32.mrb[0].mxu0
      %v3565 = vadd.f32 %v3309, %v3564
      %v3566 = vpop.f32.mrb[0].mxu0
      %3567 = vmatprep.mubr.f32.mxu0 %v3262
      %3568 = vmatmul.mubr.f32.gmra.mrb[0].mxu0 %v3166
      %v3569 = vpop.f32.mrb[0].mxu0
      %v3570 = vadd.f32 %v3309, %v3569
      %v3571 = vpop.f32.mrb[0].mxu0
      %3572 = vmatprep.mubr.f32.mxu0 %v3263
      %3573 = vmatmul.mubr.f32.gmra.mrb[0].mxu0 %v3167
      %v3574 = vpop.f32.mrb[0].mxu0
      %v3575 = vadd.f32 %v3309, %v3574
      %v3576 = vpop.f32.mrb[0].mxu0
      %3577 = vmatprep.mubr.f32.mxu0 %v3264
      %3578 = vmatmul.mubr.f32.gmra.mrb[0].mxu0 %v3168
      %v3579 = vpop.f32.mrb[0].mxu0
      %v3580 = vadd.f32 %v3309, %v3579
      %v3581 = vpop.f32.mrb[0].mxu0
      %3582 = vmatprep.mubr.f32.mxu0 %v3265
      %3583 = vmatmul.mubr.f32.gmra.mrb[0].mxu0 %v3169
      %v3584 = vpop.f32.mrb[0].mxu0
      %v3585 = vadd.f32 %v3309, %v3584
      %v3586 = vpop.f32.mrb[0].mxu0
      %3587 = vmatprep.mubr.f32.mxu0 %v3266
      %3588 = vmatmul.mubr.f32.gmra.mrb[0].mxu0 %v3170
      %v3589 = vpop.f32.mrb[0].mxu0
      %v3590 = vadd.f32 %v3309, %v3589
      %v3591 = vpop.f32.mrb[0].mxu0
      %3592 = vmatprep.mubr.f32.mxu0 %v3267
      %3593 = vmatmul.mubr.f32.gmra.mrb[0].mxu0 %v3171
      %v3594 = vpop.f32.mrb[0].mxu0
      %v3595 = vadd.f32 %v3309, %v3594
      %v3596 = vpop.f32.mrb[0].mxu0
      %3597 = vdwg.mxu0
      %3598 = vmatprep.subr.mxu0 0.0
      %3599 = vmatpush1.msra.mxu0 %v3300
      %3600 = vmatprep.subr.mxu0 0.0
      %3601 = vmatpush1.msra.mxu0 %v3301
      %3602 = vmatprep.subr.mxu0 0.0
      %3603 = vmatpush1.msra.mxu0 %v3302
      %3604 = vmatprep.subr.mxu0 0.0
      %3605 = vmatpush1.msra.mxu0 %v3303
      %3606 = vmatprep.subr.mxu0 0.0
      %3607 = vmatpush1.msra.mxu0 0.0
      %3608 = vmatprep.subr.mxu0 0.0
      %3609 = vmatpush1.msra.mxu0 0.0
      %3610 = vmatprep.subr.mxu0 0.0
      %3611 = vmatpush1.msra.mxu0 0.0
      %3612 = vmatprep.subr.mxu0 0.0
      %3613 = vmatpush1.msra.mxu0 0.0
      %3614 = vmatprep.subr.mxu0 0.0
      %3615 = vmatpush1.msra.mxu0 0.0
      %3616 = vmatprep.subr.mxu0 0.0
      %3617 = vmatpush1.msra.mxu0 0.0
      %3618 = vmatprep.subr.mxu0 0.0
      %3619 = vmatpush1.msra.mxu0 0.0
      %3620 = vmatprep.subr.mxu0 0.0
      %3621 = vmatpush1.msra.mxu0 0.0
      %3622 = vmatprep.subr.mxu0 0.0
      %3623 = vmatpush1.msra.mxu0 0.0
      %3624 = vmatprep.subr.mxu0 0.0
      %3625 = vmatpush1.msra.mxu0 0.0
      %3626 = vmatprep.subr.mxu0 0.0
      %3627 = vmatpush1.msra.mxu0 0.0
      %3628 = vmatprep.subr.mxu0 0.0
      %3629 = vmatpush1.msra.mxu0 0.0
      %3630 = vmatprep.subr.mxu0 0.0
      %3631 = vmatpush1.msra.mxu0 0.0
      %3632 = vmatprep.subr.mxu0 0.0
      %3633 = vmatpush1.msra.mxu0 0.0
      %3634 = vmatprep.subr.mxu0 0.0
      %3635 = vmatpush1.msra.mxu0 0.0
      %3636 = vmatprep.subr.mxu0 0.0
      %3637 = vmatpush1.msra.mxu0 0.0
      %3638 = vmatprep.subr.mxu0 0.0
      %3639 = vmatpush1.msra.mxu0 0.0
      %3640 = vmatprep.subr.mxu0 0.0
      %3641 = vmatpush1.msra.mxu0 0.0
      %3642 = vmatprep.subr.mxu0 0.0
      %3643 = vmatpush1.msra.mxu0 0.0
      %3644 = vmatprep.subr.mxu0 0.0
      %3645 = vmatpush1.msra.mxu0 0.0
      %3646 = vmatprep.subr.mxu0 0.0
      %3647 = vmatpush1.msra.mxu0 0.0
      %3648 = vmatprep.subr.mxu0 0.0
      %3649 = vmatpush1.msra.mxu0 0.0
      %3650 = vmatprep.subr.mxu0 0.0
      %3651 = vmatpush1.msra.mxu0 0.0
      %3652 = vmatprep.subr.mxu0 0.0
      %3653 = vmatpush1.msra.mxu0 0.0
      %3654 = vmatprep.subr.mxu0 0.0
      %3655 = vmatpush1.msra.mxu0 0.0
      %3656 = vmatprep.subr.mxu0 0.0
      %3657 = vmatpush1.msra.mxu0 0.0
      %3658 = vmatprep.subr.mxu0 0.0
      %3659 = vmatpush1.msra.mxu0 0.0
      %3660 = vmatprep.subr.mxu0 0.0
      %3661 = vmatpush1.msra.mxu0 0.0
      %3662 = vmatprep.mubr.f32.mxu0 0.0
      %3663 = vmatmul.mubr.f32.gmra.mrb[0].mxu0 %v3311
      %v3664 = vpop.f32.mrb[0].mxu0
      %v3665 = vadd.f32 %v3440, %v3664
      %v3666 = vpop.f32.mrb[0].mxu0
      %3667 = vmatprep.mubr.f32.mxu0 0.0
      %3668 = vmatmul.mubr.f32.gmra.mrb[0].mxu0 %v3313
      %v3669 = vpop.f32.mrb[0].mxu0
      %v3670 = vadd.f32 %v3445, %v3669
      %v3671 = vpop.f32.mrb[0].mxu0
      %3672 = vmatprep.mubr.f32.mxu0 0.0
      %3673 = vmatmul.mubr.f32.gmra.mrb[0].mxu0 %v3315
      %v3674 = vpop.f32.mrb[0].mxu0
      %v3675 = vadd.f32 %v3450, %v3674
      %v3676 = vpop.f32.mrb[0].mxu0
      %3677 = vmatprep.mubr.f32.mxu0 0.0
      %3678 = vmatmul.mubr.f32.gmra.mrb[0].mxu0 %v3317
      %v3679 = vpop.f32.mrb[0].mxu0
      %v3680 = vadd.f32 %v3455, %v3679
      %v3681 = vpop.f32.mrb[0].mxu0
      %3682 = vmatprep.mubr.f32.mxu0 0.0
      %3683 = vmatmul.mubr.f32.gmra.mrb[0].mxu0 %v3319
      %v3684 = vpop.f32.mrb[0].mxu0
      %v3685 = vadd.f32 %v3460, %v3684
      %v3686 = vpop.f32.mrb[0].mxu0
      %3687 = vmatprep.mubr.f32.mxu0 0.0
      %3688 = vmatmul.mubr.f32.gmra.mrb[0].mxu0 %v3321
      %v3689 = vpop.f32.mrb[0].mxu0
      %v3690 = vadd.f32 %v3465, %v3689
      %v3691 = vpop.f32.mrb[0].mxu0
      %3692 = vmatprep.mubr.f32.mxu0 0.0
      %3693 = vmatmul.mubr.f32.gmra.mrb[0].mxu0 %v3323
      %v3694 = vpop.f32.mrb[0].mxu0
      %v3695 = vadd.f32 %v3470, %v3694
      %v3696 = vpop.f32.mrb[0].mxu0
      %3697 = vmatprep.mubr.f32.mxu0 0.0
      %3698 = vmatmul.mubr.f32.gmra.mrb[0].mxu0 %v3325
      %v3699 = vpop.f32.mrb[0].mxu0
      %v3700 = vadd.f32 %v3475, %v3699
      %v3701 = vpop.f32.mrb[0].mxu0
      %3702 = vmatprep.mubr.f32.mxu0 0.0
      %3703 = vmatmul.mubr.f32.gmra.mrb[0].mxu0 %v3327
      %v3704 = vpop.f32.mrb[0].mxu0
      %v3705 = vadd.f32 %v3480, %v3704
      %v3706 = vpop.f32.mrb[0].mxu0
      %3707 = vmatprep.mubr.f32.mxu0 0.0
      %3708 = vmatmul.mubr.f32.gmra.mrb[0].mxu0 %v3329
      %v3709 = vpop.f32.mrb[0].mxu0
      %v3710 = vadd.f32 %v3485, %v3709
      %v3711 = vpop.f32.mrb[0].mxu0
      %3712 = vmatprep.mubr.f32.mxu0 0.0
      %3713 = vmatmul.mubr.f32.gmra.mrb[0].mxu0 %v3331
      %v3714 = vpop.f32.mrb[0].mxu0
      %v3715 = vadd.f32 %v3490, %v3714
      %v3716 = vpop.f32.mrb[0].mxu0
      %3717 = vmatprep.mubr.f32.mxu0 0.0
      %3718 = vmatmul.mubr.f32.gmra.mrb[0].mxu0 %v3333
      %v3719 = vpop.f32.mrb[0].mxu0
      %v3720 = vadd.f32 %v3495, %v3719
      %v3721 = vpop.f32.mrb[0].mxu0
      %3722 = vmatprep.mubr.f32.mxu0 0.0
      %3723 = vmatmul.mubr.f32.gmra.mrb[0].mxu0 %v3335
      %v3724 = vpop.f32.mrb[0].mxu0
      %v3725 = vadd.f32 %v3500, %v3724
      %v3726 = vpop.f32.mrb[0].mxu0
      %3727 = vmatprep.mubr.f32.mxu0 0.0
      %3728 = vmatmul.mubr.f32.gmra.mrb[0].mxu0 %v3337
      %v3729 = vpop.f32.mrb[0].mxu0
      %v3730 = vadd.f32 %v3505, %v3729
      %v3731 = vpop.f32.mrb[0].mxu0
      %3732 = vmatprep.mubr.f32.mxu0 0.0
      %3733 = vmatmul.mubr.f32.gmra.mrb[0].mxu0 %v3339
      %v3734 = vpop.f32.mrb[0].mxu0
      %v3735 = vadd.f32 %v3510, %v3734
      %v3736 = vpop.f32.mrb[0].mxu0
      %3737 = vmatprep.mubr.f32.mxu0 0.0
      %3738 = vmatmul.mubr.f32.gmra.mrb[0].mxu0 %v3341
      %v3739 = vpop.f32.mrb[0].mxu0
      %v3740 = vadd.f32 %v3515, %v3739
      %v3741 = vpop.f32.mrb[0].mxu0
      %3742 = vmatprep.mubr.f32.mxu0 0.0
      %3743 = vmatmul.mubr.f32.gmra.mrb[0].mxu0 %v3343
      %v3744 = vpop.f32.mrb[0].mxu0
      %v3745 = vadd.f32 %v3520, %v3744
      %v3746 = vpop.f32.mrb[0].mxu0
      %3747 = vmatprep.mubr.f32.mxu0 0.0
      %3748 = vmatmul.mubr.f32.gmra.mrb[0].mxu0 %v3345
      %v3749 = vpop.f32.mrb[0].mxu0
      %v3750 = vadd.f32 %v3525, %v3749
      %v3751 = vpop.f32.mrb[0].mxu0
      %3752 = vmatprep.mubr.f32.mxu0 0.0
      %3753 = vmatmul.mubr.f32.gmra.mrb[0].mxu0 %v3347
      %v3754 = vpop.f32.mrb[0].mxu0
      %v3755 = vadd.f32 %v3530, %v3754
      %v3756 = vpop.f32.mrb[0].mxu0
      %3757 = vmatprep.mubr.f32.mxu0 0.0
      %3758 = vmatmul.mubr.f32.gmra.mrb[0].mxu0 %v3349
      %v3759 = vpop.f32.mrb[0].mxu0
      %v3760 = vadd.f32 %v3535, %v3759
      %v3761 = vpop.f32.mrb[0].mxu0
      %3762 = vmatprep.mubr.f32.mxu0 0.0
      %3763 = vmatmul.mubr.f32.gmra.mrb[0].mxu0 %v3351
      %v3764 = vpop.f32.mrb[0].mxu0
      %v3765 = vadd.f32 %v3540, %v3764
      %v3766 = vpop.f32.mrb[0].mxu0
      %3767 = vmatprep.mubr.f32.mxu0 0.0
      %3768 = vmatmul.mubr.f32.gmra.mrb[0].mxu0 %v3353
      %v3769 = vpop.f32.mrb[0].mxu0
      %v3770 = vadd.f32 %v3545, %v3769
      %v3771 = vpop.f32.mrb[0].mxu0
      %3772 = vmatprep.mubr.f32.mxu0 0.0
      %3773 = vmatmul.mubr.f32.gmra.mrb[0].mxu0 %v3355
      %v3774 = vpop.f32.mrb[0].mxu0
      %v3775 = vadd.f32 %v3550, %v3774
      %v3776 = vpop.f32.mrb[0].mxu0
      %3777 = vmatprep.mubr.f32.mxu0 0.0
      %3778 = vmatmul.mubr.f32.gmra.mrb[0].mxu0 %v3357
      %v3779 = vpop.f32.mrb[0].mxu0
      %v3780 = vadd.f32 %v3555, %v3779
      %v3781 = vpop.f32.mrb[0].mxu0
      %3782 = vmatprep.mubr.f32.mxu0 0.0
      %3783 = vmatmul.mubr.f32.gmra.mrb[0].mxu0 %v3359
      %v3784 = vpop.f32.mrb[0].mxu0
      %v3785 = vadd.f32 %v3560, %v3784
      %v3786 = vpop.f32.mrb[0].mxu0
      %3787 = vmatprep.mubr.f32.mxu0 0.0
      %3788 = vmatmul.mubr.f32.gmra.mrb[0].mxu0 %v3361
      %v3789 = vpop.f32.mrb[0].mxu0
      %v3790 = vadd.f32 %v3565, %v3789
      %v3791 = vpop.f32.mrb[0].mxu0
      %3792 = vmatprep.mubr.f32.mxu0 0.0
      %3793 = vmatmul.mubr.f32.gmra.mrb[0].mxu0 %v3363
      %v3794 = vpop.f32.mrb[0].mxu0
      %v3795 = vadd.f32 %v3570, %v3794
      %v3796 = vpop.f32.mrb[0].mxu0
      %3797 = vmatprep.mubr.f32.mxu0 0.0
      %3798 = vmatmul.mubr.f32.gmra.mrb[0].mxu0 %v3365
      %v3799 = vpop.f32.mrb[0].mxu0
      %v3800 = vadd.f32 %v3575, %v3799
      %v3801 = vpop.f32.mrb[0].mxu0
      %3802 = vmatprep.mubr.f32.mxu0 0.0
      %3803 = vmatmul.mubr.f32.gmra.mrb[0].mxu0 %v3367
      %v3804 = vpop.f32.mrb[0].mxu0
      %v3805 = vadd.f32 %v3580, %v3804
      %v3806 = vpop.f32.mrb[0].mxu0
      %3807 = vmatprep.mubr.f32.mxu0 0.0
      %3808 = vmatmul.mubr.f32.gmra.mrb[0].mxu0 %v3369
      %v3809 = vpop.f32.mrb[0].mxu0
      %v3810 = vadd.f32 %v3585, %v3809
      %v3811 = vpop.f32.mrb[0].mxu0
      %3812 = vmatprep.mubr.f32.mxu0 0.0
      %3813 = vmatmul.mubr.f32.gmra.mrb[0].mxu0 %v3371
      %v3814 = vpop.f32.mrb[0].mxu0
      %v3815 = vadd.f32 %v3590, %v3814
      %v3816 = vpop.f32.mrb[0].mxu0
      %3817 = vmatprep.mubr.f32.mxu0 0.0
      %3818 = vmatmul.mubr.f32.gmra.mrb[0].mxu0 %v3371
      %v3819 = vpop.f32.mrb[0].mxu0
      %v3820 = vadd.f32 %v3595, %v3819
      %v3821 = vpop.f32.mrb[0].mxu0
      %3822 = vdwg.mxu0
      %v3823 = vsel %vm1341, %v3665, -inf
      %v3824 = vsel %vm1341, %v3670, -inf
      %v3825 = vsel %vm1341, %v3675, -inf
      %v3826 = vsel %vm1341, %v3680, -inf
      %v3827 = vsel %vm1341, %v3685, -inf
      %v3828 = vmax.f32 %v3823, %v3827
      %v3829 = vsel %vm1341, %v3690, -inf
      %v3830 = vmax.f32 %v3824, %v3829
      %v3831 = vsel %vm1341, %v3695, -inf
      %v3832 = vmax.f32 %v3825, %v3831
      %v3833 = vsel %vm1341, %v3700, -inf
      %v3834 = vmax.f32 %v3826, %v3833
      %v3835 = vsel %vm1341, %v3705, -inf
      %v3836 = vmax.f32 %v3828, %v3835
      %v3837 = vsel %vm1341, %v3710, -inf
      %v3838 = vmax.f32 %v3830, %v3837
      %v3839 = vsel %vm1341, %v3715, -inf
      %v3840 = vmax.f32 %v3832, %v3839
      %v3841 = vsel %vm1341, %v3720, -inf
      %v3842 = vmax.f32 %v3834, %v3841
      %v3843 = vsel %vm1341, %v3725, -inf
      %v3844 = vmax.f32 %v3836, %v3843
      %v3845 = vsel %vm1341, %v3730, -inf
      %v3846 = vmax.f32 %v3838, %v3845
      %v3847 = vsel %vm1341, %v3735, -inf
      %v3848 = vmax.f32 %v3840, %v3847
      %v3849 = vsel %vm1341, %v3740, -inf
      %v3850 = vmax.f32 %v3842, %v3849
      %v3851 = vsel %vm1341, %v3745, -inf
      %v3852 = vmax.f32 %v3844, %v3851
      %v3853 = vsel %vm1341, %v3750, -inf
      %v3854 = vmax.f32 %v3846, %v3853
      %v3855 = vsel %vm1341, %v3755, -inf
      %v3856 = vmax.f32 %v3848, %v3855
      %v3857 = vsel %vm1341, %v3760, -inf
      %v3858 = vmax.f32 %v3850, %v3857
      %v3859 = vsel %vm1341, %v3765, -inf
      %v3860 = vmax.f32 %v3852, %v3859
      %v3861 = vsel %vm1341, %v3770, -inf
      %v3862 = vmax.f32 %v3854, %v3861
      %v3863 = vsel %vm1341, %v3775, -inf
      %v3864 = vmax.f32 %v3856, %v3863
      %v3865 = vsel %vm1341, %v3780, -inf
      %v3866 = vmax.f32 %v3858, %v3865
      %v3867 = vsel %vm1341, %v3785, -inf
      %v3868 = vmax.f32 %v3860, %v3867
      %v3869 = vsel %vm1341, %v3790, -inf
      %v3870 = vmax.f32 %v3862, %v3869
      %v3871 = vsel %vm1341, %v3795, -inf
      %v3872 = vmax.f32 %v3864, %v3871
      %v3873 = vsel %vm1341, %v3800, -inf
      %v3874 = vmax.f32 %v3866, %v3873
      %v3875 = vsel %vm1341, %v3805, -inf
      %v3876 = vmax.f32 %v3868, %v3875
      %v3877 = vsel %vm1341, %v3810, -inf
      %v3878 = vmax.f32 %v3870, %v3877
      %v3879 = vsel %vm1341, %v3815, -inf
      %v3880 = vmax.f32 %v3872, %v3879
      %v3881 = vsel %vm1341, %v3820, -inf
      %v3882 = vmax.f32 %v3874, %v3881
      %v3883 = vmax.f32 %v3876, %v3878
      %v3884 = vmax.f32 %v3880, %v3882
      %v3885 = vmax.f32 %v3883, %v3884
      %v3886 = vrot.slane %v3885, 4
      %v3887 = vmax.f32 %v3885, %v3886
      %v3888 = vrot.slane %v3887, 2
      %v3889 = vmax.f32 %v3887, %v3888
      %v3890 = vrot.slane %v3889, 1
      %v3891 = vmax.f32 %v3889, %v3890
      %v3892 = vsel %vm1341, %v3665, 0.0
      %v3893 = vsel %vm1341, %v3670, 0.0
      %v3894 = vadd.f32 %v3892, %v3893
      %v3895 = vsel %vm1341, %v3675, 0.0
      %v3896 = vadd.f32 %v3894, %v3895
      %v3897 = vsel %vm1341, %v3680, 0.0
      %v3898 = vadd.f32 %v3896, %v3897
      %v3899 = vsel %vm1341, %v3685, 0.0
      %v3900 = vadd.f32 %v3898, %v3899
      %v3901 = vsel %vm1341, %v3690, 0.0
      %v3902 = vadd.f32 %v3900, %v3901
      %v3903 = vsel %vm1341, %v3695, 0.0
      %v3904 = vadd.f32 %v3902, %v3903
      %v3905 = vsel %vm1341, %v3700, 0.0
      %v3906 = vadd.f32 %v3904, %v3905
      %v3907 = vsel %vm1341, %v3705, 0.0
      %v3908 = vadd.f32 %v3906, %v3907
      %v3909 = vsel %vm1341, %v3710, 0.0
      %v3910 = vadd.f32 %v3908, %v3909
      %v3911 = vsel %vm1341, %v3715, 0.0
      %v3912 = vadd.f32 %v3910, %v3911
      %v3913 = vsel %vm1341, %v3720, 0.0
      %v3914 = vadd.f32 %v3912, %v3913
      %v3915 = vsel %vm1341, %v3725, 0.0
      %v3916 = vadd.f32 %v3914, %v3915
      %v3917 = vsel %vm1341, %v3730, 0.0
      %v3918 = vadd.f32 %v3916, %v3917
      %v3919 = vsel %vm1341, %v3735, 0.0
      %v3920 = vadd.f32 %v3918, %v3919
      %v3921 = vsel %vm1341, %v3740, 0.0
      %v3922 = vadd.f32 %v3920, %v3921
      %v3923 = vsel %vm1341, %v3745, 0.0
      %v3924 = vadd.f32 %v3922, %v3923
      %v3925 = vsel %vm1341, %v3750, 0.0
      %v3926 = vadd.f32 %v3924, %v3925
      %v3927 = vsel %vm1341, %v3755, 0.0
      %v3928 = vadd.f32 %v3926, %v3927
      %v3929 = vsel %vm1341, %v3760, 0.0
      %v3930 = vadd.f32 %v3928, %v3929
      %v3931 = vsel %vm1341, %v3765, 0.0
      %v3932 = vadd.f32 %v3930, %v3931
      %v3933 = vsel %vm1341, %v3770, 0.0
      %v3934 = vadd.f32 %v3932, %v3933
      %v3935 = vsel %vm1341, %v3775, 0.0
      %v3936 = vadd.f32 %v3934, %v3935
      %v3937 = vsel %vm1341, %v3780, 0.0
      %v3938 = vadd.f32 %v3936, %v3937
      %v3939 = vsel %vm1341, %v3785, 0.0
      %v3940 = vadd.f32 %v3938, %v3939
      %v3941 = vsel %vm1341, %v3790, 0.0
      %v3942 = vadd.f32 %v3940, %v3941
      %v3943 = vsel %vm1341, %v3795, 0.0
      %v3944 = vadd.f32 %v3942, %v3943
      %v3945 = vsel %vm1341, %v3800, 0.0
      %v3946 = vadd.f32 %v3944, %v3945
      %v3947 = vsel %vm1341, %v3805, 0.0
      %v3948 = vadd.f32 %v3946, %v3947
      %v3949 = vsel %vm1341, %v3810, 0.0
      %v3950 = vadd.f32 %v3948, %v3949
      %v3951 = vsel %vm1341, %v3815, 0.0
      %v3952 = vadd.f32 %v3950, %v3951
      %v3953 = vsel %vm1341, %v3820, 0.0
      %v3954 = vadd.f32 %v3952, %v3953
      %v3955 = vrot.slane %v3954, 4
      %v3956 = vadd.f32 %v3954, %v3955
      %v3957 = vrot.slane %v3956, 2
      %v3958 = vadd.f32 %v3956, %v3957
      %v3959 = vrot.slane %v3958, 1
      %v3960 = vadd.f32 %v3958, %v3959
      %v3961 = vrcp.pop 256.0
      %v3962 = vmul.f32 %v3960, %v3961
      %v3963 = vsel %vm2157, %v3891, %v3962
      %v3964 = vld [vmem:[%s5] sm:$0xff]
      %v3965 = vld [vmem:[%s5 + $0x8] sm:$0xff]
      %v3966 = vld [vmem:[%s5 + $0x10] sm:$0xff]
      %v3967 = vld [vmem:[%s5 + $0x18] sm:$0xff]
      %v3968 = vld [vmem:[%s6] sm:$0x1]
      %v3970 = vlaneseq
      %v3971 = vshrl.u32 %v3970, 7
      %v3972 = vsub.s32 0, %v3971
      %v3973 = vrot.slane %v3968, %v3972
      %v3976 = vsel %vm1341, %v3963, 0
      %3978 = vmatprep.subr.mxu0 0.0
      %3979 = vmatpush1.msra.mxu0 %v3964
      %3980 = vmatprep.subr.mxu0 0.0
      %3981 = vmatpush1.msra.mxu0 %v3965
      %3982 = vmatprep.subr.mxu0 0.0
      %3983 = vmatpush1.msra.mxu0 %v3966
      %3984 = vmatprep.subr.mxu0 0.0
      %3985 = vmatpush1.msra.mxu0 %v3967
      %3986 = vmatprep.subr.mxu0 0.0
      %3987 = vmatpush1.msra.mxu0 0.0
      %3988 = vmatprep.subr.mxu0 0.0
      %3989 = vmatpush1.msra.mxu0 0.0
      %3990 = vmatprep.subr.mxu0 0.0
      %3991 = vmatpush1.msra.mxu0 0.0
      %3992 = vmatprep.subr.mxu0 0.0
      %3993 = vmatpush1.msra.mxu0 0.0
      %3994 = vmatprep.subr.mxu0 0.0
      %3995 = vmatpush1.msra.mxu0 0.0
      %3996 = vmatprep.subr.mxu0 0.0
      %3997 = vmatpush1.msra.mxu0 0.0
      %3998 = vmatprep.subr.mxu0 0.0
      %3999 = vmatpush1.msra.mxu0 0.0
      %4000 = vmatprep.subr.mxu0 0.0
      %4001 = vmatpush1.msra.mxu0 0.0
      %4002 = vmatprep.subr.mxu0 0.0
      %4003 = vmatpush1.msra.mxu0 0.0
      %4004 = vmatprep.subr.mxu0 0.0
      %4005 = vmatpush1.msra.mxu0 0.0
      %4006 = vmatprep.subr.mxu0 0.0
      %4007 = vmatpush1.msra.mxu0 0.0
      %4008 = vmatprep.subr.mxu0 0.0
      %4009 = vmatpush1.msra.mxu0 0.0
      %4010 = vmatprep.subr.mxu0 0.0
      %4011 = vmatpush1.msra.mxu0 0.0
      %4012 = vmatprep.subr.mxu0 0.0
      %4013 = vmatpush1.msra.mxu0 0.0
      %4014 = vmatprep.subr.mxu0 0.0
      %4015 = vmatpush1.msra.mxu0 0.0
      %4016 = vmatprep.subr.mxu0 0.0
      %4017 = vmatpush1.msra.mxu0 0.0
      %4018 = vmatprep.subr.mxu0 0.0
      %4019 = vmatpush1.msra.mxu0 0.0
      %4020 = vmatprep.subr.mxu0 0.0
      %4021 = vmatpush1.msra.mxu0 0.0
      %4022 = vmatprep.subr.mxu0 0.0
      %4023 = vmatpush1.msra.mxu0 0.0
      %4024 = vmatprep.subr.mxu0 0.0
      %4025 = vmatpush1.msra.mxu0 0.0
      %4026 = vmatprep.subr.mxu0 0.0
      %4027 = vmatpush1.msra.mxu0 0.0
      %4028 = vmatprep.subr.mxu0 0.0
      %4029 = vmatpush1.msra.mxu0 0.0
      %4030 = vmatprep.subr.mxu0 0.0
      %4031 = vmatpush1.msra.mxu0 0.0
      %4032 = vmatprep.subr.mxu0 0.0
      %4033 = vmatpush1.msra.mxu0 0.0
      %4034 = vmatprep.subr.mxu0 0.0
      %4035 = vmatpush1.msra.mxu0 0.0
      %4036 = vmatprep.subr.mxu0 0.0
      %4037 = vmatpush1.msra.mxu0 0.0
      %4038 = vmatprep.subr.mxu0 0.0
      %4039 = vmatpush1.msra.mxu0 0.0
      %4040 = vmatprep.subr.mxu0 0.0
      %4041 = vmatpush1.msra.mxu0 0.0
      %4042 = vmatprep.mubr.f32.mxu0 0.0
      %4043 = vmatmul.mubr.f32.gmra.mrb[0].mxu0 %v3976
      %v4044 = vpop.f32.mrb[0].mxu0
      %v4045 = vadd.f32 %v3973, %v4044
      %v4046 = vpop.f32.mrb[0].mxu0
      %4047 = vdwg.mxu0
      %v4048 = vmax.f32 %v4045, 0.0
      %v4049 = vld [vmem:[%s7] sm:$0x3]
      %v4050 = vld [vmem:[%s8] sm:$0x1]
      %v4052 = vlaneseq
      %v4053 = vshrl.u32 %v4052, 7
      %v4054 = vsub.s32 0, %v4053
      %v4055 = vrot.slane %v4050, %v4054
      %vm4057 = vcmask 15360
      %v4059 = vsel %vm4057, %v4048, 0
      %vm4061 = vcmask 1041408
      %v4063 = vsel %vm4061, %v4049, 0
      %4065 = vmatprep.subr.mxu0 0.0
      %4066 = vmatpush1.msra.mxu0 %v4063
      %4067 = vmatprep.subr.mxu0 0.0
      %4068 = vmatpush1.msra.mxu0 0.0
      %4069 = vmatprep.subr.mxu0 0.0
      %4070 = vmatpush1.msra.mxu0 0.0
      %4071 = vmatprep.subr.mxu0 0.0
      %4072 = vmatpush1.msra.mxu0 0.0
      %4073 = vmatprep.subr.mxu0 0.0
      %4074 = vmatpush1.msra.mxu0 0.0
      %4075 = vmatprep.subr.mxu0 0.0
      %4076 = vmatpush1.msra.mxu0 0.0
      %4077 = vmatprep.subr.mxu0 0.0
      %4078 = vmatpush1.msra.mxu0 0.0
      %4079 = vmatprep.subr.mxu0 0.0
      %4080 = vmatpush1.msra.mxu0 0.0
      %4081 = vmatprep.subr.mxu0 0.0
      %4082 = vmatpush1.msra.mxu0 0.0
      %4083 = vmatprep.subr.mxu0 0.0
      %4084 = vmatpush1.msra.mxu0 0.0
      %4085 = vmatprep.subr.mxu0 0.0
      %4086 = vmatpush1.msra.mxu0 0.0
      %4087 = vmatprep.subr.mxu0 0.0
      %4088 = vmatpush1.msra.mxu0 0.0
      %4089 = vmatprep.subr.mxu0 0.0
      %4090 = vmatpush1.msra.mxu0 0.0
      %4091 = vmatprep.subr.mxu0 0.0
      %4092 = vmatpush1.msra.mxu0 0.0
      %4093 = vmatprep.subr.mxu0 0.0
      %4094 = vmatpush1.msra.mxu0 0.0
      %4095 = vmatprep.subr.mxu0 0.0
      %4096 = vmatpush1.msra.mxu0 0.0
      %4097 = vmatprep.subr.mxu0 0.0
      %4098 = vmatpush1.msra.mxu0 0.0
      %4099 = vmatprep.subr.mxu0 0.0
      %4100 = vmatpush1.msra.mxu0 0.0
      %4101 = vmatprep.subr.mxu0 0.0
      %4102 = vmatpush1.msra.mxu0 0.0
      %4103 = vmatprep.subr.mxu0 0.0
      %4104 = vmatpush1.msra.mxu0 0.0
      %4105 = vmatprep.subr.mxu0 0.0
      %4106 = vmatpush1.msra.mxu0 0.0
      %4107 = vmatprep.subr.mxu0 0.0
      %4108 = vmatpush1.msra.mxu0 0.0
      %4109 = vmatprep.subr.mxu0 0.0
      %4110 = vmatpush1.msra.mxu0 0.0
      %4111 = vmatprep.subr.mxu0 0.0
      %4112 = vmatpush1.msra.mxu0 0.0
      %4113 = vmatprep.subr.mxu0 0.0
      %4114 = vmatpush1.msra.mxu0 0.0
      %4115 = vmatprep.subr.mxu0 0.0
      %4116 = vmatpush1.msra.mxu0 0.0
      %4117 = vmatprep.subr.mxu0 0.0
      %4118 = vmatpush1.msra.mxu0 0.0
      %4119 = vmatprep.subr.mxu0 0.0
      %4120 = vmatpush1.msra.mxu0 0.0
      %4121 = vmatprep.subr.mxu0 0.0
      %4122 = vmatpush1.msra.mxu0 0.0
      %4123 = vmatprep.subr.mxu0 0.0
      %4124 = vmatpush1.msra.mxu0 0.0
      %4125 = vmatprep.subr.mxu0 0.0
      %4126 = vmatpush1.msra.mxu0 0.0
      %4127 = vmatprep.subr.mxu0 0.0
      %4128 = vmatpush1.msra.mxu0 0.0
      %4129 = vmatprep.mubr.f32.mxu0 0.0
      %4130 = vmatmul.mubr.f32.gmra.mrb[0].mxu0 %v4059
      %v4131 = vpop.f32.mrb[0].mxu0
      %v4132 = vadd.f32 %v4055, %v4131
      %v4133 = vpop.f32.mrb[0].mxu0
      %4134 = vdwg.mxu0
      %v4136 = vrot.slane %v4132, 1
      %v4138 = vadd.f32 %v4132, %v4136
      %v4139 = vsub.f32 0.0, %v4138
      %v4140 = vmul.f32 %v4139, 1.442695
      %v4141 = vpow.pop %v4140
      %v4142 = vadd.f32 %v4141, 1.0
      %v4143 = vrcp.pop %v4142
      %v4144 = vmul.f32 1.0, %v4143
      %v4145 = vlaneseq
      %v4146 = vshrl.u32 %v4145, 7
      %v4147 = vsub.s32 0, %v4146
      %v4148 = vrot.slane %v4144, %v4147
      %v4149 = vmul.f32 %v3665, %v4148
      %v4150 = vmul.f32 %v3670, %v4148
      %v4151 = vmul.f32 %v3675, %v4148
      %v4152 = vmul.f32 %v3680, %v4148
      %v4153 = vmul.f32 %v3685, %v4148
      %v4154 = vmul.f32 %v3690, %v4148
      %v4155 = vmul.f32 %v3695, %v4148
      %v4156 = vmul.f32 %v3700, %v4148
      %v4157 = vmul.f32 %v3705, %v4148
      %v4158 = vmul.f32 %v3710, %v4148
      %v4159 = vmul.f32 %v3715, %v4148
      %v4160 = vmul.f32 %v3720, %v4148
      %v4161 = vmul.f32 %v3725, %v4148
      %v4162 = vmul.f32 %v3730, %v4148
      %v4163 = vmul.f32 %v3735, %v4148
      %v4164 = vmul.f32 %v3740, %v4148
      %v4165 = vmul.f32 %v3745, %v4148
      %v4166 = vmul.f32 %v3750, %v4148
      %v4167 = vmul.f32 %v3755, %v4148
      %v4168 = vmul.f32 %v3760, %v4148
      %v4169 = vmul.f32 %v3765, %v4148
      %v4170 = vmul.f32 %v3770, %v4148
      %v4171 = vmul.f32 %v3775, %v4148
      %v4172 = vmul.f32 %v3780, %v4148
      %v4173 = vmul.f32 %v3785, %v4148
      %v4174 = vmul.f32 %v3790, %v4148
      %v4175 = vmul.f32 %v3795, %v4148
      %v4176 = vmul.f32 %v3800, %v4148
      %v4177 = vmul.f32 %v3805, %v4148
      %v4178 = vmul.f32 %v3810, %v4148
      %v4179 = vmul.f32 %v3815, %v4148
      %v4180 = vmul.f32 %v3820, %v4148
      %v4181 = vsel %vm1341, %v4149, -inf
      %4182 = vmax.xlane.f32.xlu0 %v4181
      %v4183 = vpop.xlane.xlu0 %4182
      %v4184 = vsel %vm1341, %v4150, -inf
      %4185 = vmax.xlane.f32.xlu0 %v4184
      %v4186 = vpop.xlane.xlu0 %4185
      %v4187 = vsel %vm1341, %v4151, -inf
      %4188 = vmax.xlane.f32.xlu0 %v4187
      %v4189 = vpop.xlane.xlu0 %4188
      %v4190 = vsel %vm1341, %v4152, -inf
      %4191 = vmax.xlane.f32.xlu0 %v4190
      %v4192 = vpop.xlane.xlu0 %4191
      %v4193 = vsel %vm1341, %v4153, -inf
      %4194 = vmax.xlane.f32.xlu0 %v4193
      %v4195 = vpop.xlane.xlu0 %4194
      %v4196 = vsel %vm1341, %v4154, -inf
      %4197 = vmax.xlane.f32.xlu0 %v4196
      %v4198 = vpop.xlane.xlu0 %4197
      %v4199 = vsel %vm1341, %v4155, -inf
      %4200 = vmax.xlane.f32.xlu0 %v4199
      %v4201 = vpop.xlane.xlu0 %4200
      %v4202 = vsel %vm1341, %v4156, -inf
      %4203 = vmax.xlane.f32.xlu0 %v4202
      %v4204 = vpop.xlane.xlu0 %4203
      %v4205 = vsel %vm1341, %v4157, -inf
      %4206 = vmax.xlane.f32.xlu0 %v4205
      %v4207 = vpop.xlane.xlu0 %4206
      %v4208 = vsel %vm1341, %v4158, -inf
      %4209 = vmax.xlane.f32.xlu0 %v4208
      %v4210 = vpop.xlane.xlu0 %4209
      %v4211 = vsel %vm1341, %v4159, -inf
      %4212 = vmax.xlane.f32.xlu0 %v4211
      %v4213 = vpop.xlane.xlu0 %4212
      %v4214 = vsel %vm1341, %v4160, -inf
      %4215 = vmax.xlane.f32.xlu0 %v4214
      %v4216 = vpop.xlane.xlu0 %4215
      %v4217 = vsel %vm1341, %v4161, -inf
      %4218 = vmax.xlane.f32.xlu0 %v4217
      %v4219 = vpop.xlane.xlu0 %4218
      %v4220 = vsel %vm1341, %v4162, -inf
      %4221 = vmax.xlane.f32.xlu0 %v4220
      %v4222 = vpop.xlane.xlu0 %4221
      %v4223 = vsel %vm1341, %v4163, -inf
      %4224 = vmax.xlane.f32.xlu0 %v4223
      %v4225 = vpop.xlane.xlu0 %4224
      %v4226 = vsel %vm1341, %v4164, -inf
      %4227 = vmax.xlane.f32.xlu0 %v4226
      %v4228 = vpop.xlane.xlu0 %4227
      %v4229 = vsel %vm1341, %v4165, -inf
      %4230 = vmax.xlane.f32.xlu0 %v4229
      %v4231 = vpop.xlane.xlu0 %4230
      %v4232 = vsel %vm1341, %v4166, -inf
      %4233 = vmax.xlane.f32.xlu0 %v4232
      %v4234 = vpop.xlane.xlu0 %4233
      %v4235 = vsel %vm1341, %v4167, -inf
      %4236 = vmax.xlane.f32.xlu0 %v4235
      %v4237 = vpop.xlane.xlu0 %4236
      %v4238 = vsel %vm1341, %v4168, -inf
      %4239 = vmax.xlane.f32.xlu0 %v4238
      %v4240 = vpop.xlane.xlu0 %4239
      %v4241 = vsel %vm1341, %v4169, -inf
      %4242 = vmax.xlane.f32.xlu0 %v4241
      %v4243 = vpop.xlane.xlu0 %4242
      %v4244 = vsel %vm1341, %v4170, -inf
      %4245 = vmax.xlane.f32.xlu0 %v4244
      %v4246 = vpop.xlane.xlu0 %4245
      %v4247 = vsel %vm1341, %v4171, -inf
      %4248 = vmax.xlane.f32.xlu0 %v4247
      %v4249 = vpop.xlane.xlu0 %4248
      %v4250 = vsel %vm1341, %v4172, -inf
      %4251 = vmax.xlane.f32.xlu0 %v4250
      %v4252 = vpop.xlane.xlu0 %4251
      %v4253 = vsel %vm1341, %v4173, -inf
      %4254 = vmax.xlane.f32.xlu0 %v4253
      %v4255 = vpop.xlane.xlu0 %4254
      %v4256 = vsel %vm1341, %v4174, -inf
      %4257 = vmax.xlane.f32.xlu0 %v4256
      %v4258 = vpop.xlane.xlu0 %4257
      %v4259 = vsel %vm1341, %v4175, -inf
      %4260 = vmax.xlane.f32.xlu0 %v4259
      %v4261 = vpop.xlane.xlu0 %4260
      %v4262 = vsel %vm1341, %v4176, -inf
      %4263 = vmax.xlane.f32.xlu0 %v4262
      %v4264 = vpop.xlane.xlu0 %4263
      %v4265 = vsel %vm1341, %v4177, -inf
      %4266 = vmax.xlane.f32.xlu0 %v4265
      %v4267 = vpop.xlane.xlu0 %4266
      %v4268 = vsel %vm1341, %v4178, -inf
      %4269 = vmax.xlane.f32.xlu0 %v4268
      %v4270 = vpop.xlane.xlu0 %4269
      %v4271 = vsel %vm1341, %v4179, -inf
      %4272 = vmax.xlane.f32.xlu0 %v4271
      %v4273 = vpop.xlane.xlu0 %4272
      %v4274 = vsel %vm1341, %v4180, -inf
      %4275 = vmax.xlane.f32.xlu0 %v4274
      %v4276 = vpop.xlane.xlu0 %4275
      %v4277 = vsel %vm1341, %v4149, 0.0
      %4278 = vadd.xlane.f32.xlu0 %v4277
      %v4279 = vpop.xlane.xlu0 %4278
      %v4280 = vsel %vm1341, %v4150, 0.0
      %4281 = vadd.xlane.f32.xlu0 %v4280
      %v4282 = vpop.xlane.xlu0 %4281
      %v4283 = vsel %vm1341, %v4151, 0.0
      %4284 = vadd.xlane.f32.xlu0 %v4283
      %v4285 = vpop.xlane.xlu0 %4284
      %v4286 = vsel %vm1341, %v4152, 0.0
      %4287 = vadd.xlane.f32.xlu0 %v4286
      %v4288 = vpop.xlane.xlu0 %4287
      %v4289 = vsel %vm1341, %v4153, 0.0
      %4290 = vadd.xlane.f32.xlu0 %v4289
      %v4291 = vpop.xlane.xlu0 %4290
      %v4292 = vsel %vm1341, %v4154, 0.0
      %4293 = vadd.xlane.f32.xlu0 %v4292
      %v4294 = vpop.xlane.xlu0 %4293
      %v4295 = vsel %vm1341, %v4155, 0.0
      %4296 = vadd.xlane.f32.xlu0 %v4295
      %v4297 = vpop.xlane.xlu0 %4296
      %v4298 = vsel %vm1341, %v4156, 0.0
      %4299 = vadd.xlane.f32.xlu0 %v4298
      %v4300 = vpop.xlane.xlu0 %4299
      %v4301 = vsel %vm1341, %v4157, 0.0
      %4302 = vadd.xlane.f32.xlu0 %v4301
      %v4303 = vpop.xlane.xlu0 %4302
      %v4304 = vsel %vm1341, %v4158, 0.0
      %4305 = vadd.xlane.f32.xlu0 %v4304
      %v4306 = vpop.xlane.xlu0 %4305
      %v4307 = vsel %vm1341, %v4159, 0.0
      %4308 = vadd.xlane.f32.xlu0 %v4307
      %v4309 = vpop.xlane.xlu0 %4308
      %v4310 = vsel %vm1341, %v4160, 0.0
      %4311 = vadd.xlane.f32.xlu0 %v4310
      %v4312 = vpop.xlane.xlu0 %4311
      %v4313 = vsel %vm1341, %v4161, 0.0
      %4314 = vadd.xlane.f32.xlu0 %v4313
      %v4315 = vpop.xlane.xlu0 %4314
      %v4316 = vsel %vm1341, %v4162, 0.0
      %4317 = vadd.xlane.f32.xlu0 %v4316
      %v4318 = vpop.xlane.xlu0 %4317
      %v4319 = vsel %vm1341, %v4163, 0.0
      %4320 = vadd.xlane.f32.xlu0 %v4319
      %v4321 = vpop.xlane.xlu0 %4320
      %v4322 = vsel %vm1341, %v4164, 0.0
      %4323 = vadd.xlane.f32.xlu0 %v4322
      %v4324 = vpop.xlane.xlu0 %4323
      %v4325 = vsel %vm1341, %v4165, 0.0
      %4326 = vadd.xlane.f32.xlu0 %v4325
      %v4327 = vpop.xlane.xlu0 %4326
      %v4328 = vsel %vm1341, %v4166, 0.0
      %4329 = vadd.xlane.f32.xlu0 %v4328
      %v4330 = vpop.xlane.xlu0 %4329
      %v4331 = vsel %vm1341, %v4167, 0.0
      %4332 = vadd.xlane.f32.xlu0 %v4331
      %v4333 = vpop.xlane.xlu0 %4332
      %v4334 = vsel %vm1341, %v4168, 0.0
      %4335 = vadd.xlane.f32.xlu0 %v4334
      %v4336 = vpop.xlane.xlu0 %4335
      %v4337 = vsel %vm1341, %v4169, 0.0
      %4338 = vadd.xlane.f32.xlu0 %v4337
      %v4339 = vpop.xlane.xlu0 %4338
      %v4340 = vsel %vm1341, %v4170, 0.0
      %4341 = vadd.xlane.f32.xlu0 %v4340
      %v4342 = vpop.xlane.xlu0 %4341
      %v4343 = vsel %vm1341, %v4171, 0.0
      %4344 = vadd.xlane.f32.xlu0 %v4343
      %v4345 = vpop.xlane.xlu0 %4344
      %v4346 = vsel %vm1341, %v4172, 0.0
      %4347 = vadd.xlane.f32.xlu0 %v4346
      %v4348 = vpop.xlane.xlu0 %4347
      %v4349 = vsel %vm1341, %v4173, 0.0
      %4350 = vadd.xlane.f32.xlu0 %v4349
      %v4351 = vpop.xlane.xlu0 %4350
      %v4352 = vsel %vm1341, %v4174, 0.0
      %4353 = vadd.xlane.f32.xlu0 %v4352
      %v4354 = vpop.xlane.xlu0 %4353
      %v4355 = vsel %vm1341, %v4175, 0.0
      %4356 = vadd.xlane.f32.xlu0 %v4355
      %v4357 = vpop.xlane.xlu0 %4356
      %v4358 = vsel %vm1341, %v4176, 0.0
      %4359 = vadd.xlane.f32.xlu0 %v4358
      %v4360 = vpop.xlane.xlu0 %4359
      %v4361 = vsel %vm1341, %v4177, 0.0
      %4362 = vadd.xlane.f32.xlu0 %v4361
      %v4363 = vpop.xlane.xlu0 %4362
      %v4364 = vsel %vm1341, %v4178, 0.0
      %4365 = vadd.xlane.f32.xlu0 %v4364
      %v4366 = vpop.xlane.xlu0 %4365
      %v4367 = vsel %vm1341, %v4179, 0.0
      %4368 = vadd.xlane.f32.xlu0 %v4367
      %v4369 = vpop.xlane.xlu0 %4368
      %v4370 = vsel %vm1341, %v4180, 0.0
      %4371 = vadd.xlane.f32.xlu0 %v4370
      %v4372 = vpop.xlane.xlu0 %4371
      %v4373 = vrcp.pop 32.0
      %v4374 = vmul.f32 %v4279, %v4373
      %v4375 = vmul.f32 %v4282, %v4373
      %v4376 = vmul.f32 %v4285, %v4373
      %v4377 = vmul.f32 %v4288, %v4373
      %v4378 = vmul.f32 %v4291, %v4373
      %v4379 = vmul.f32 %v4294, %v4373
      %v4380 = vmul.f32 %v4297, %v4373
      %v4381 = vmul.f32 %v4300, %v4373
      %v4382 = vmul.f32 %v4303, %v4373
      %v4383 = vmul.f32 %v4306, %v4373
      %v4384 = vmul.f32 %v4309, %v4373
      %v4385 = vmul.f32 %v4312, %v4373
      %v4386 = vmul.f32 %v4315, %v4373
      %v4387 = vmul.f32 %v4318, %v4373
      %v4388 = vmul.f32 %v4321, %v4373
      %v4389 = vmul.f32 %v4324, %v4373
      %v4390 = vmul.f32 %v4327, %v4373
      %v4391 = vmul.f32 %v4330, %v4373
      %v4392 = vmul.f32 %v4333, %v4373
      %v4393 = vmul.f32 %v4336, %v4373
      %v4394 = vmul.f32 %v4339, %v4373
      %v4395 = vmul.f32 %v4342, %v4373
      %v4396 = vmul.f32 %v4345, %v4373
      %v4397 = vmul.f32 %v4348, %v4373
      %v4398 = vmul.f32 %v4351, %v4373
      %v4399 = vmul.f32 %v4354, %v4373
      %v4400 = vmul.f32 %v4357, %v4373
      %v4401 = vmul.f32 %v4360, %v4373
      %v4402 = vmul.f32 %v4363, %v4373
      %v4403 = vmul.f32 %v4366, %v4373
      %v4404 = vmul.f32 %v4369, %v4373
      %v4405 = vmul.f32 %v4372, %v4373
      %vm4406 = vcmask 7168
      %v4407 = vsel %vm4406, %v4183, %v4374
      %v4408 = vsel %vm4406, %v4186, %v4375
      %v4409 = vsel %vm4406, %v4189, %v4376
      %v4410 = vsel %vm4406, %v4192, %v4377
      %v4411 = vsel %vm4406, %v4195, %v4378
      %v4412 = vsel %vm4406, %v4198, %v4379
      %v4413 = vsel %vm4406, %v4201, %v4380
      %v4414 = vsel %vm4406, %v4204, %v4381
      %v4415 = vsel %vm4406, %v4207, %v4382
      %v4416 = vsel %vm4406, %v4210, %v4383
      %v4417 = vsel %vm4406, %v4213, %v4384
      %v4418 = vsel %vm4406, %v4216, %v4385
      %v4419 = vsel %vm4406, %v4219, %v4386
      %v4420 = vsel %vm4406, %v4222, %v4387
      %v4421 = vsel %vm4406, %v4225, %v4388
      %v4422 = vsel %vm4406, %v4228, %v4389
      %v4423 = vsel %vm4406, %v4231, %v4390
      %v4424 = vsel %vm4406, %v4234, %v4391
      %v4425 = vsel %vm4406, %v4237, %v4392
      %v4426 = vsel %vm4406, %v4240, %v4393
      %v4427 = vsel %vm4406, %v4243, %v4394
      %v4428 = vsel %vm4406, %v4246, %v4395
      %v4429 = vsel %vm4406, %v4249, %v4396
      %v4430 = vsel %vm4406, %v4252, %v4397
      %v4431 = vsel %vm4406, %v4255, %v4398
      %v4432 = vsel %vm4406, %v4258, %v4399
      %v4433 = vsel %vm4406, %v4261, %v4400
      %v4434 = vsel %vm4406, %v4264, %v4401
      %v4435 = vsel %vm4406, %v4267, %v4402
      %v4436 = vsel %vm4406, %v4270, %v4403
      %v4437 = vsel %vm4406, %v4273, %v4404
      %v4438 = vsel %vm4406, %v4276, %v4405
      %v4471 = vrot.slane %v4407, 7
      %v4472 = vrot.slane %v4408, 7
      %v4473 = vsel %vm2157, %v4471, %v4472
      %v4474 = vrot.slane %v4409, 7
      %v4475 = vrot.slane %v4410, 7
      %v4476 = vsel %vm2157, %v4474, %v4475
      %v4477 = vrot.slane %v4411, 7
      %v4478 = vrot.slane %v4412, 7
      %v4479 = vsel %vm2157, %v4477, %v4478
      %v4480 = vrot.slane %v4413, 7
      %v4481 = vrot.slane %v4414, 7
      %v4482 = vsel %vm2157, %v4480, %v4481
      %v4483 = vrot.slane %v4415, 7
      %v4484 = vrot.slane %v4416, 7
      %v4485 = vsel %vm2157, %v4483, %v4484
      %v4486 = vrot.slane %v4417, 7
      %v4487 = vrot.slane %v4418, 7
      %v4488 = vsel %vm2157, %v4486, %v4487
      %v4489 = vrot.slane %v4419, 7
      %v4490 = vrot.slane %v4420, 7
      %v4491 = vsel %vm2157, %v4489, %v4490
      %v4492 = vrot.slane %v4421, 7
      %v4493 = vrot.slane %v4422, 7
      %v4494 = vsel %vm2157, %v4492, %v4493
      %v4495 = vrot.slane %v4423, 7
      %v4496 = vrot.slane %v4424, 7
      %v4497 = vsel %vm2157, %v4495, %v4496
      %v4498 = vrot.slane %v4425, 7
      %v4499 = vrot.slane %v4426, 7
      %v4500 = vsel %vm2157, %v4498, %v4499
      %v4501 = vrot.slane %v4427, 7
      %v4502 = vrot.slane %v4428, 7
      %v4503 = vsel %vm2157, %v4501, %v4502
      %v4504 = vrot.slane %v4429, 7
      %v4505 = vrot.slane %v4430, 7
      %v4506 = vsel %vm2157, %v4504, %v4505
      %v4507 = vrot.slane %v4431, 7
      %v4508 = vrot.slane %v4432, 7
      %v4509 = vsel %vm2157, %v4507, %v4508
      %v4510 = vrot.slane %v4433, 7
      %v4511 = vrot.slane %v4434, 7
      %v4512 = vsel %vm2157, %v4510, %v4511
      %v4513 = vrot.slane %v4435, 7
      %v4514 = vrot.slane %v4436, 7
      %v4515 = vsel %vm2157, %v4513, %v4514
      %v4516 = vrot.slane %v4437, 7
      %v4517 = vrot.slane %v4438, 7
      %v4518 = vsel %vm2157, %v4516, %v4517
      %v4566 = vsel %vm2157, 0.0, %v4471
      %v4567 = vsel %vm2157, 0.0, %v4474
      %v4568 = vsel %vm2157, 0.0, %v4477
      %v4569 = vsel %vm2157, 0.0, %v4480
      %v4570 = vsel %vm2157, 0.0, %v4483
      %v4571 = vsel %vm2157, 0.0, %v4486
      %v4572 = vsel %vm2157, 0.0, %v4489
      %v4573 = vsel %vm2157, 0.0, %v4492
      %v4574 = vsel %vm2157, 0.0, %v4495
      %v4575 = vsel %vm2157, 0.0, %v4498
      %v4576 = vsel %vm2157, 0.0, %v4501
      %v4577 = vsel %vm2157, 0.0, %v4504
      %v4578 = vsel %vm2157, 0.0, %v4507
      %v4579 = vsel %vm2157, 0.0, %v4510
      %v4580 = vsel %vm2157, 0.0, %v4513
      %v4581 = vsel %vm2157, 0.0, %v4516
      %v4582 = vsel %vm2157, %v4472, 0.0
      %v4583 = vsel %vm2157, %v4475, 0.0
      %v4584 = vsel %vm2157, %v4478, 0.0
      %v4585 = vsel %vm2157, %v4481, 0.0
      %v4586 = vsel %vm2157, %v4484, 0.0
      %v4587 = vsel %vm2157, %v4487, 0.0
      %v4588 = vsel %vm2157, %v4490, 0.0
      %v4589 = vsel %vm2157, %v4493, 0.0
      %v4590 = vsel %vm2157, %v4496, 0.0
      %v4591 = vsel %vm2157, %v4499, 0.0
      %v4592 = vsel %vm2157, %v4502, 0.0
      %v4593 = vsel %vm2157, %v4505, 0.0
      %v4594 = vsel %vm2157, %v4508, 0.0
      %v4595 = vsel %vm2157, %v4511, 0.0
      %v4596 = vsel %vm2157, %v4514, 0.0
      %v4597 = vsel %vm2157, %v4517, 0.0
      %v4628 = vrot.slane %v4566, 1
      %v4629 = vrot.slane %v4473, 1
      %v4630 = vsel %vm545, %v4628, %v4629
      %v4631 = vrot.slane %v4582, 1
      %v4632 = vsel %vm545, %v4629, %v4631
      %v4633 = vrot.slane %v4567, 1
      %v4634 = vrot.slane %v4476, 1
      %v4635 = vsel %vm545, %v4633, %v4634
      %v4636 = vrot.slane %v4583, 1
      %v4637 = vsel %vm545, %v4634, %v4636
      %v4638 = vrot.slane %v4568, 1
      %v4639 = vrot.slane %v4479, 1
      %v4640 = vsel %vm545, %v4638, %v4639
      %v4641 = vrot.slane %v4584, 1
      %v4642 = vsel %vm545, %v4639, %v4641
      %v4643 = vrot.slane %v4569, 1
      %v4644 = vrot.slane %v4482, 1
      %v4645 = vsel %vm545, %v4643, %v4644
      %v4646 = vrot.slane %v4585, 1
      %v4647 = vsel %vm545, %v4644, %v4646
      %v4648 = vrot.slane %v4570, 1
      %v4649 = vrot.slane %v4485, 1
      %v4650 = vsel %vm545, %v4648, %v4649
      %v4651 = vrot.slane %v4586, 1
      %v4652 = vsel %vm545, %v4649, %v4651
      %v4653 = vrot.slane %v4571, 1
      %v4654 = vrot.slane %v4488, 1
      %v4655 = vsel %vm545, %v4653, %v4654
      %v4656 = vrot.slane %v4587, 1
      %v4657 = vsel %vm545, %v4654, %v4656
      %v4658 = vrot.slane %v4572, 1
      %v4659 = vrot.slane %v4491, 1
      %v4660 = vsel %vm545, %v4658, %v4659
      %v4661 = vrot.slane %v4588, 1
      %v4662 = vsel %vm545, %v4659, %v4661
      %v4663 = vrot.slane %v4573, 1
      %v4664 = vrot.slane %v4494, 1
      %v4665 = vsel %vm545, %v4663, %v4664
      %v4666 = vrot.slane %v4589, 1
      %v4667 = vsel %vm545, %v4664, %v4666
      %v4668 = vrot.slane %v4574, 1
      %v4669 = vrot.slane %v4497, 1
      %v4670 = vsel %vm545, %v4668, %v4669
      %v4671 = vrot.slane %v4590, 1
      %v4672 = vsel %vm545, %v4669, %v4671
      %v4673 = vrot.slane %v4575, 1
      %v4674 = vrot.slane %v4500, 1
      %v4675 = vsel %vm545, %v4673, %v4674
      %v4676 = vrot.slane %v4591, 1
      %v4677 = vsel %vm545, %v4674, %v4676
      %v4678 = vrot.slane %v4576, 1
      %v4679 = vrot.slane %v4503, 1
      %v4680 = vsel %vm545, %v4678, %v4679
      %v4681 = vrot.slane %v4592, 1
      %v4682 = vsel %vm545, %v4679, %v4681
      %v4683 = vrot.slane %v4577, 1
      %v4684 = vrot.slane %v4506, 1
      %v4685 = vsel %vm545, %v4683, %v4684
      %v4686 = vrot.slane %v4593, 1
      %v4687 = vsel %vm545, %v4684, %v4686
      %v4688 = vrot.slane %v4578, 1
      %v4689 = vrot.slane %v4509, 1
      %v4690 = vsel %vm545, %v4688, %v4689
      %v4691 = vrot.slane %v4594, 1
      %v4692 = vsel %vm545, %v4689, %v4691
      %v4693 = vrot.slane %v4579, 1
      %v4694 = vrot.slane %v4512, 1
      %v4695 = vsel %vm545, %v4693, %v4694
      %v4696 = vrot.slane %v4595, 1
      %v4697 = vsel %vm545, %v4694, %v4696
      %v4698 = vrot.slane %v4580, 1
      %v4699 = vrot.slane %v4515, 1
      %v4700 = vsel %vm545, %v4698, %v4699
      %v4701 = vrot.slane %v4596, 1
      %v4702 = vsel %vm545, %v4699, %v4701
      %v4703 = vrot.slane %v4566, 2
      %v4704 = vrot.slane %v4473, 2
      %v4705 = vsel %vm626, %v4703, %v4704
      %v4706 = vrot.slane %v4582, 2
      %v4707 = vsel %vm626, %v4704, %v4706
      %v4708 = vrot.slane %v4567, 2
      %v4709 = vrot.slane %v4476, 2
      %v4710 = vsel %vm626, %v4708, %v4709
      %v4711 = vrot.slane %v4583, 2
      %v4712 = vsel %vm626, %v4709, %v4711
      %v4713 = vrot.slane %v4568, 2
      %v4714 = vrot.slane %v4479, 2
      %v4715 = vsel %vm626, %v4713, %v4714
      %v4716 = vrot.slane %v4584, 2
      %v4717 = vsel %vm626, %v4714, %v4716
      %v4718 = vrot.slane %v4569, 2
      %v4719 = vrot.slane %v4482, 2
      %v4720 = vsel %vm626, %v4718, %v4719
      %v4721 = vrot.slane %v4585, 2
      %v4722 = vsel %vm626, %v4719, %v4721
      %v4723 = vrot.slane %v4570, 2
      %v4724 = vrot.slane %v4485, 2
      %v4725 = vsel %vm626, %v4723, %v4724
      %v4726 = vrot.slane %v4586, 2
      %v4727 = vsel %vm626, %v4724, %v4726
      %v4728 = vrot.slane %v4571, 2
      %v4729 = vrot.slane %v4488, 2
      %v4730 = vsel %vm626, %v4728, %v4729
      %v4731 = vrot.slane %v4587, 2
      %v4732 = vsel %vm626, %v4729, %v4731
      %v4733 = vrot.slane %v4572, 2
      %v4734 = vrot.slane %v4491, 2
      %v4735 = vsel %vm626, %v4733, %v4734
      %v4736 = vrot.slane %v4588, 2
      %v4737 = vsel %vm626, %v4734, %v4736
      %v4738 = vrot.slane %v4573, 2
      %v4739 = vrot.slane %v4494, 2
      %v4740 = vsel %vm626, %v4738, %v4739
      %v4741 = vrot.slane %v4589, 2
      %v4742 = vsel %vm626, %v4739, %v4741
      %v4743 = vrot.slane %v4574, 2
      %v4744 = vrot.slane %v4497, 2
      %v4745 = vsel %vm626, %v4743, %v4744
      %v4746 = vrot.slane %v4590, 2
      %v4747 = vsel %vm626, %v4744, %v4746
      %v4748 = vrot.slane %v4575, 2
      %v4749 = vrot.slane %v4500, 2
      %v4750 = vsel %vm626, %v4748, %v4749
      %v4751 = vrot.slane %v4591, 2
      %v4752 = vsel %vm626, %v4749, %v4751
      %v4753 = vrot.slane %v4576, 2
      %v4754 = vrot.slane %v4503, 2
      %v4755 = vsel %vm626, %v4753, %v4754
      %v4756 = vrot.slane %v4592, 2
      %v4757 = vsel %vm626, %v4754, %v4756
      %v4758 = vrot.slane %v4577, 2
      %v4759 = vrot.slane %v4506, 2
      %v4760 = vsel %vm626, %v4758, %v4759
      %v4761 = vrot.slane %v4593, 2
      %v4762 = vsel %vm626, %v4759, %v4761
      %v4763 = vrot.slane %v4578, 2
      %v4764 = vrot.slane %v4509, 2
      %v4765 = vsel %vm626, %v4763, %v4764
      %v4766 = vrot.slane %v4594, 2
      %v4767 = vsel %vm626, %v4764, %v4766
      %v4768 = vrot.slane %v4579, 2
      %v4769 = vrot.slane %v4512, 2
      %v4770 = vsel %vm626, %v4768, %v4769
      %v4771 = vrot.slane %v4595, 2
      %v4772 = vsel %vm626, %v4769, %v4771
      %v4773 = vrot.slane %v4580, 2
      %v4774 = vrot.slane %v4515, 2
      %v4775 = vsel %vm626, %v4773, %v4774
      %v4776 = vrot.slane %v4596, 2
      %v4777 = vsel %vm626, %v4774, %v4776
      %v4780 = vrot.slane %v4581, 1
      %v4781 = vrot.slane %v4518, 1
      %v4782 = vsel %vm545, %v4780, %v4781
      %v4783 = vrot.slane %v4597, 1
      %v4784 = vsel %vm545, %v4781, %v4783
      %v4785 = vrot.slane %v4581, 2
      %v4786 = vrot.slane %v4518, 2
      %v4787 = vsel %vm626, %v4785, %v4786
      %v4788 = vrot.slane %v4597, 2
      %v4789 = vsel %vm626, %v4786, %v4788
      %4790 = vrot.lane.b32.xlu0 %v2317, 2
      %v4791 = vpop.permute.xlu0 %4790
      %4792 = vrot.lane.b32.xlu0 %v4630, 2
      %v4793 = vpop.permute.xlu0 %4792
      %4794 = vrot.lane.b32.xlu0 %v4632, 2
      %v4795 = vpop.permute.xlu0 %4794
      %4796 = vrot.lane.b32.xlu0 %v4635, 2
      %v4797 = vpop.permute.xlu0 %4796
      %4798 = vrot.lane.b32.xlu0 %v4637, 2
      %v4799 = vpop.permute.xlu0 %4798
      %4800 = vrot.lane.b32.xlu0 %v4640, 2
      %v4801 = vpop.permute.xlu0 %4800
      %4802 = vrot.lane.b32.xlu0 %v4642, 2
      %v4803 = vpop.permute.xlu0 %4802
      %4804 = vrot.lane.b32.xlu0 %v4645, 2
      %v4805 = vpop.permute.xlu0 %4804
      %4806 = vrot.lane.b32.xlu0 %v4647, 2
      %v4807 = vpop.permute.xlu0 %4806
      %4808 = vrot.lane.b32.xlu0 %v4650, 2
      %v4809 = vpop.permute.xlu0 %4808
      %4810 = vrot.lane.b32.xlu0 %v4652, 2
      %v4811 = vpop.permute.xlu0 %4810
      %4812 = vrot.lane.b32.xlu0 %v4655, 2
      %v4813 = vpop.permute.xlu0 %4812
      %4814 = vrot.lane.b32.xlu0 %v4657, 2
      %v4815 = vpop.permute.xlu0 %4814
      %4816 = vrot.lane.b32.xlu0 %v4660, 2
      %v4817 = vpop.permute.xlu0 %4816
      %4818 = vrot.lane.b32.xlu0 %v4662, 2
      %v4819 = vpop.permute.xlu0 %4818
      %4820 = vrot.lane.b32.xlu0 %v4665, 2
      %v4821 = vpop.permute.xlu0 %4820
      %4822 = vrot.lane.b32.xlu0 %v4667, 2
      %v4823 = vpop.permute.xlu0 %4822
      %4824 = vrot.lane.b32.xlu0 %v4670, 2
      %v4825 = vpop.permute.xlu0 %4824
      %4826 = vrot.lane.b32.xlu0 %v4672, 2
      %v4827 = vpop.permute.xlu0 %4826
      %4828 = vrot.lane.b32.xlu0 %v4675, 2
      %v4829 = vpop.permute.xlu0 %4828
      %4830 = vrot.lane.b32.xlu0 %v4677, 2
      %v4831 = vpop.permute.xlu0 %4830
      %4832 = vrot.lane.b32.xlu0 %v4680, 2
      %v4833 = vpop.permute.xlu0 %4832
      %4834 = vrot.lane.b32.xlu0 %v4682, 2
      %v4835 = vpop.permute.xlu0 %4834
      %4836 = vrot.lane.b32.xlu0 %v4685, 2
      %v4837 = vpop.permute.xlu0 %4836
      %4838 = vrot.lane.b32.xlu0 %v4687, 2
      %v4839 = vpop.permute.xlu0 %4838
      %4840 = vrot.lane.b32.xlu0 %v4690, 2
      %v4841 = vpop.permute.xlu0 %4840
      %4842 = vrot.lane.b32.xlu0 %v4692, 2
      %v4843 = vpop.permute.xlu0 %4842
      %4844 = vrot.lane.b32.xlu0 %v4695, 2
      %v4845 = vpop.permute.xlu0 %4844
      %4846 = vrot.lane.b32.xlu0 %v4697, 2
      %v4847 = vpop.permute.xlu0 %4846
      %4848 = vrot.lane.b32.xlu0 %v4700, 2
      %v4849 = vpop.permute.xlu0 %4848
      %4850 = vrot.lane.b32.xlu0 %v4702, 2
      %v4851 = vpop.permute.xlu0 %4850
      %4883 = vrot.lane.b32.xlu0 %v2394, 4
      %v4884 = vpop.permute.xlu0 %4883
      %4885 = vrot.lane.b32.xlu0 %v4705, 4
      %v4886 = vpop.permute.xlu0 %4885
      %4887 = vrot.lane.b32.xlu0 %v4707, 4
      %v4888 = vpop.permute.xlu0 %4887
      %4889 = vrot.lane.b32.xlu0 %v4710, 4
      %v4890 = vpop.permute.xlu0 %4889
      %4891 = vrot.lane.b32.xlu0 %v4712, 4
      %v4892 = vpop.permute.xlu0 %4891
      %4893 = vrot.lane.b32.xlu0 %v4715, 4
      %v4894 = vpop.permute.xlu0 %4893
      %4895 = vrot.lane.b32.xlu0 %v4717, 4
      %v4896 = vpop.permute.xlu0 %4895
      %4897 = vrot.lane.b32.xlu0 %v4720, 4
      %v4898 = vpop.permute.xlu0 %4897
      %4899 = vrot.lane.b32.xlu0 %v4722, 4
      %v4900 = vpop.permute.xlu0 %4899
      %4901 = vrot.lane.b32.xlu0 %v4725, 4
      %v4902 = vpop.permute.xlu0 %4901
      %4903 = vrot.lane.b32.xlu0 %v4727, 4
      %v4904 = vpop.permute.xlu0 %4903
      %4905 = vrot.lane.b32.xlu0 %v4730, 4
      %v4906 = vpop.permute.xlu0 %4905
      %4907 = vrot.lane.b32.xlu0 %v4732, 4
      %v4908 = vpop.permute.xlu0 %4907
      %4909 = vrot.lane.b32.xlu0 %v4735, 4
      %v4910 = vpop.permute.xlu0 %4909
      %4911 = vrot.lane.b32.xlu0 %v4737, 4
      %v4912 = vpop.permute.xlu0 %4911
      %4913 = vrot.lane.b32.xlu0 %v4740, 4
      %v4914 = vpop.permute.xlu0 %4913
      %4915 = vrot.lane.b32.xlu0 %v4742, 4
      %v4916 = vpop.permute.xlu0 %4915
      %4917 = vrot.lane.b32.xlu0 %v4745, 4
      %v4918 = vpop.permute.xlu0 %4917
      %4919 = vrot.lane.b32.xlu0 %v4747, 4
      %v4920 = vpop.permute.xlu0 %4919
      %4921 = vrot.lane.b32.xlu0 %v4750, 4
      %v4922 = vpop.permute.xlu0 %4921
      %4923 = vrot.lane.b32.xlu0 %v4752, 4
      %v4924 = vpop.permute.xlu0 %4923
      %4925 = vrot.lane.b32.xlu0 %v4755, 4
      %v4926 = vpop.permute.xlu0 %4925
      %4927 = vrot.lane.b32.xlu0 %v4757, 4
      %v4928 = vpop.permute.xlu0 %4927
      %4929 = vrot.lane.b32.xlu0 %v4760, 4
      %v4930 = vpop.permute.xlu0 %4929
      %4931 = vrot.lane.b32.xlu0 %v4762, 4
      %v4932 = vpop.permute.xlu0 %4931
      %4933 = vrot.lane.b32.xlu0 %v4765, 4
      %v4934 = vpop.permute.xlu0 %4933
      %4935 = vrot.lane.b32.xlu0 %v4767, 4
      %v4936 = vpop.permute.xlu0 %4935
      %4937 = vrot.lane.b32.xlu0 %v4770, 4
      %v4938 = vpop.permute.xlu0 %4937
      %4939 = vrot.lane.b32.xlu0 %v4772, 4
      %v4940 = vpop.permute.xlu0 %4939
      %4941 = vrot.lane.b32.xlu0 %v4775, 4
      %v4942 = vpop.permute.xlu0 %4941
      %4943 = vrot.lane.b32.xlu0 %v4777, 4
      %v4944 = vpop.permute.xlu0 %4943
      %4976 = vrot.lane.b32.xlu0 %v4566, 6
      %v4977 = vpop.permute.xlu0 %4976
      %4978 = vrot.lane.b32.xlu0 %v4473, 6
      %v4979 = vpop.permute.xlu0 %4978
      %4980 = vrot.lane.b32.xlu0 %v4567, 6
      %v4981 = vpop.permute.xlu0 %4980
      %4982 = vrot.lane.b32.xlu0 %v4476, 6
      %v4983 = vpop.permute.xlu0 %4982
      %4984 = vrot.lane.b32.xlu0 %v4568, 6
      %v4985 = vpop.permute.xlu0 %4984
      %4986 = vrot.lane.b32.xlu0 %v4479, 6
      %v4987 = vpop.permute.xlu0 %4986
      %4988 = vrot.lane.b32.xlu0 %v4569, 6
      %v4989 = vpop.permute.xlu0 %4988
      %4990 = vrot.lane.b32.xlu0 %v4482, 6
      %v4991 = vpop.permute.xlu0 %4990
      %4992 = vrot.lane.b32.xlu0 %v4570, 6
      %v4993 = vpop.permute.xlu0 %4992
      %4994 = vrot.lane.b32.xlu0 %v4485, 6
      %v4995 = vpop.permute.xlu0 %4994
      %4996 = vrot.lane.b32.xlu0 %v4571, 6
      %v4997 = vpop.permute.xlu0 %4996
      %4998 = vrot.lane.b32.xlu0 %v4488, 6
      %v4999 = vpop.permute.xlu0 %4998
      %5000 = vrot.lane.b32.xlu0 %v4572, 6
      %v5001 = vpop.permute.xlu0 %5000
      %5002 = vrot.lane.b32.xlu0 %v4491, 6
      %v5003 = vpop.permute.xlu0 %5002
      %5004 = vrot.lane.b32.xlu0 %v4573, 6
      %v5005 = vpop.permute.xlu0 %5004
      %5006 = vrot.lane.b32.xlu0 %v4494, 6
      %v5007 = vpop.permute.xlu0 %5006
      %5008 = vrot.lane.b32.xlu0 %v4574, 6
      %v5009 = vpop.permute.xlu0 %5008
      %5010 = vrot.lane.b32.xlu0 %v4497, 6
      %v5011 = vpop.permute.xlu0 %5010
      %5012 = vrot.lane.b32.xlu0 %v4575, 6
      %v5013 = vpop.permute.xlu0 %5012
      %5014 = vrot.lane.b32.xlu0 %v4500, 6
      %v5015 = vpop.permute.xlu0 %5014
      %5016 = vrot.lane.b32.xlu0 %v4576, 6
      %v5017 = vpop.permute.xlu0 %5016
      %5018 = vrot.lane.b32.xlu0 %v4503, 6
      %v5019 = vpop.permute.xlu0 %5018
      %5020 = vrot.lane.b32.xlu0 %v4577, 6
      %v5021 = vpop.permute.xlu0 %5020
      %5022 = vrot.lane.b32.xlu0 %v4506, 6
      %v5023 = vpop.permute.xlu0 %5022
      %5024 = vrot.lane.b32.xlu0 %v4578, 6
      %v5025 = vpop.permute.xlu0 %5024
      %5026 = vrot.lane.b32.xlu0 %v4509, 6
      %v5027 = vpop.permute.xlu0 %5026
      %5028 = vrot.lane.b32.xlu0 %v4579, 6
      %v5029 = vpop.permute.xlu0 %5028
      %5030 = vrot.lane.b32.xlu0 %v4512, 6
      %v5031 = vpop.permute.xlu0 %5030
      %5032 = vrot.lane.b32.xlu0 %v4580, 6
      %v5033 = vpop.permute.xlu0 %5032
      %5034 = vrot.lane.b32.xlu0 %v4515, 6
      %v5035 = vpop.permute.xlu0 %5034
      %5036 = vrot.lane.b32.xlu0 %v4581, 6
      %v5037 = vpop.permute.xlu0 %5036
      %5038 = vrot.lane.b32.xlu0 %v4518, 6
      %v5039 = vpop.permute.xlu0 %5038
      %5072 = vrot.lane.b32.xlu0 %v4630, 8
      %v5073 = vpop.permute.xlu0 %5072
      %5074 = vrot.lane.b32.xlu0 %v4632, 8
      %v5075 = vpop.permute.xlu0 %5074
      %5076 = vrot.lane.b32.xlu0 %v4635, 8
      %v5077 = vpop.permute.xlu0 %5076
      %5078 = vrot.lane.b32.xlu0 %v4637, 8
      %v5079 = vpop.permute.xlu0 %5078
      %5080 = vrot.lane.b32.xlu0 %v4640, 8
      %v5081 = vpop.permute.xlu0 %5080
      %5082 = vrot.lane.b32.xlu0 %v4642, 8
      %v5083 = vpop.permute.xlu0 %5082
      %5084 = vrot.lane.b32.xlu0 %v4645, 8
      %v5085 = vpop.permute.xlu0 %5084
      %5086 = vrot.lane.b32.xlu0 %v4647, 8
      %v5087 = vpop.permute.xlu0 %5086
      %5088 = vrot.lane.b32.xlu0 %v4650, 8
      %v5089 = vpop.permute.xlu0 %5088
      %5090 = vrot.lane.b32.xlu0 %v4652, 8
      %v5091 = vpop.permute.xlu0 %5090
      %5092 = vrot.lane.b32.xlu0 %v4655, 8
      %v5093 = vpop.permute.xlu0 %5092
      %5094 = vrot.lane.b32.xlu0 %v4657, 8
      %v5095 = vpop.permute.xlu0 %5094
      %5096 = vrot.lane.b32.xlu0 %v4660, 8
      %v5097 = vpop.permute.xlu0 %5096
      %5098 = vrot.lane.b32.xlu0 %v4662, 8
      %v5099 = vpop.permute.xlu0 %5098
      %5100 = vrot.lane.b32.xlu0 %v4665, 8
      %v5101 = vpop.permute.xlu0 %5100
      %5102 = vrot.lane.b32.xlu0 %v4667, 8
      %v5103 = vpop.permute.xlu0 %5102
      %5104 = vrot.lane.b32.xlu0 %v4670, 8
      %v5105 = vpop.permute.xlu0 %5104
      %5106 = vrot.lane.b32.xlu0 %v4672, 8
      %v5107 = vpop.permute.xlu0 %5106
      %5108 = vrot.lane.b32.xlu0 %v4675, 8
      %v5109 = vpop.permute.xlu0 %5108
      %5110 = vrot.lane.b32.xlu0 %v4677, 8
      %v5111 = vpop.permute.xlu0 %5110
      %5112 = vrot.lane.b32.xlu0 %v4680, 8
      %v5113 = vpop.permute.xlu0 %5112
      %5114 = vrot.lane.b32.xlu0 %v4682, 8
      %v5115 = vpop.permute.xlu0 %5114
      %5116 = vrot.lane.b32.xlu0 %v4685, 8
      %v5117 = vpop.permute.xlu0 %5116
      %5118 = vrot.lane.b32.xlu0 %v4687, 8
      %v5119 = vpop.permute.xlu0 %5118
      %5120 = vrot.lane.b32.xlu0 %v4690, 8
      %v5121 = vpop.permute.xlu0 %5120
      %5122 = vrot.lane.b32.xlu0 %v4692, 8
      %v5123 = vpop.permute.xlu0 %5122
      %5124 = vrot.lane.b32.xlu0 %v4695, 8
      %v5125 = vpop.permute.xlu0 %5124
      %5126 = vrot.lane.b32.xlu0 %v4697, 8
      %v5127 = vpop.permute.xlu0 %5126
      %5128 = vrot.lane.b32.xlu0 %v4700, 8
      %v5129 = vpop.permute.xlu0 %5128
      %5130 = vrot.lane.b32.xlu0 %v4702, 8
      %v5131 = vpop.permute.xlu0 %5130
      %5132 = vrot.lane.b32.xlu0 %v4782, 8
      %v5133 = vpop.permute.xlu0 %5132
      %5134 = vrot.lane.b32.xlu0 %v4784, 8
      %v5135 = vpop.permute.xlu0 %5134
      %5168 = vrot.lane.b32.xlu0 %v4705, 10
      %v5169 = vpop.permute.xlu0 %5168
      %5170 = vrot.lane.b32.xlu0 %v4707, 10
      %v5171 = vpop.permute.xlu0 %5170
      %5172 = vrot.lane.b32.xlu0 %v4710, 10
      %v5173 = vpop.permute.xlu0 %5172
      %5174 = vrot.lane.b32.xlu0 %v4712, 10
      %v5175 = vpop.permute.xlu0 %5174
      %5176 = vrot.lane.b32.xlu0 %v4715, 10
      %v5177 = vpop.permute.xlu0 %5176
      %5178 = vrot.lane.b32.xlu0 %v4717, 10
      %v5179 = vpop.permute.xlu0 %5178
      %5180 = vrot.lane.b32.xlu0 %v4720, 10
      %v5181 = vpop.permute.xlu0 %5180
      %5182 = vrot.lane.b32.xlu0 %v4722, 10
      %v5183 = vpop.permute.xlu0 %5182
      %5184 = vrot.lane.b32.xlu0 %v4725, 10
      %v5185 = vpop.permute.xlu0 %5184
      %5186 = vrot.lane.b32.xlu0 %v4727, 10
      %v5187 = vpop.permute.xlu0 %5186
      %5188 = vrot.lane.b32.xlu0 %v4730, 10
      %v5189 = vpop.permute.xlu0 %5188
      %5190 = vrot.lane.b32.xlu0 %v4732, 10
      %v5191 = vpop.permute.xlu0 %5190
      %5192 = vrot.lane.b32.xlu0 %v4735, 10
      %v5193 = vpop.permute.xlu0 %5192
      %5194 = vrot.lane.b32.xlu0 %v4737, 10
      %v5195 = vpop.permute.xlu0 %5194
      %5196 = vrot.lane.b32.xlu0 %v4740, 10
      %v5197 = vpop.permute.xlu0 %5196
      %5198 = vrot.lane.b32.xlu0 %v4742, 10
      %v5199 = vpop.permute.xlu0 %5198
      %5200 = vrot.lane.b32.xlu0 %v4745, 10
      %v5201 = vpop.permute.xlu0 %5200
      %5202 = vrot.lane.b32.xlu0 %v4747, 10
      %v5203 = vpop.permute.xlu0 %5202
      %5204 = vrot.lane.b32.xlu0 %v4750, 10
      %v5205 = vpop.permute.xlu0 %5204
      %5206 = vrot.lane.b32.xlu0 %v4752, 10
      %v5207 = vpop.permute.xlu0 %5206
      %5208 = vrot.lane.b32.xlu0 %v4755, 10
      %v5209 = vpop.permute.xlu0 %5208
      %5210 = vrot.lane.b32.xlu0 %v4757, 10
      %v5211 = vpop.permute.xlu0 %5210
      %5212 = vrot.lane.b32.xlu0 %v4760, 10
      %v5213 = vpop.permute.xlu0 %5212
      %5214 = vrot.lane.b32.xlu0 %v4762, 10
      %v5215 = vpop.permute.xlu0 %5214
      %5216 = vrot.lane.b32.xlu0 %v4765, 10
      %v5217 = vpop.permute.xlu0 %5216
      %5218 = vrot.lane.b32.xlu0 %v4767, 10
      %v5219 = vpop.permute.xlu0 %5218
      %5220 = vrot.lane.b32.xlu0 %v4770, 10
      %v5221 = vpop.permute.xlu0 %5220
      %5222 = vrot.lane.b32.xlu0 %v4772, 10
      %v5223 = vpop.permute.xlu0 %5222
      %5224 = vrot.lane.b32.xlu0 %v4775, 10
      %v5225 = vpop.permute.xlu0 %5224
      %5226 = vrot.lane.b32.xlu0 %v4777, 10
      %v5227 = vpop.permute.xlu0 %5226
      %5228 = vrot.lane.b32.xlu0 %v4787, 10
      %v5229 = vpop.permute.xlu0 %5228
      %5230 = vrot.lane.b32.xlu0 %v4789, 10
      %v5231 = vpop.permute.xlu0 %5230
      %5264 = vrot.lane.b32.xlu0 %v4567, 12
      %v5265 = vpop.permute.xlu0 %5264
      %5266 = vrot.lane.b32.xlu0 %v4476, 12
      %v5267 = vpop.permute.xlu0 %5266
      %5268 = vrot.lane.b32.xlu0 %v4568, 12
      %v5269 = vpop.permute.xlu0 %5268
      %5270 = vrot.lane.b32.xlu0 %v4479, 12
      %v5271 = vpop.permute.xlu0 %5270
      %5272 = vrot.lane.b32.xlu0 %v4569, 12
      %v5273 = vpop.permute.xlu0 %5272
      %5274 = vrot.lane.b32.xlu0 %v4482, 12
      %v5275 = vpop.permute.xlu0 %5274
      %5276 = vrot.lane.b32.xlu0 %v4570, 12
      %v5277 = vpop.permute.xlu0 %5276
      %5278 = vrot.lane.b32.xlu0 %v4485, 12
      %v5279 = vpop.permute.xlu0 %5278
      %5280 = vrot.lane.b32.xlu0 %v4571, 12
      %v5281 = vpop.permute.xlu0 %5280
      %5282 = vrot.lane.b32.xlu0 %v4488, 12
      %v5283 = vpop.permute.xlu0 %5282
      %5284 = vrot.lane.b32.xlu0 %v4572, 12
      %v5285 = vpop.permute.xlu0 %5284
      %5286 = vrot.lane.b32.xlu0 %v4491, 12
      %v5287 = vpop.permute.xlu0 %5286
      %5288 = vrot.lane.b32.xlu0 %v4573, 12
      %v5289 = vpop.permute.xlu0 %5288
      %5290 = vrot.lane.b32.xlu0 %v4494, 12
      %v5291 = vpop.permute.xlu0 %5290
      %5292 = vrot.lane.b32.xlu0 %v4574, 12
      %v5293 = vpop.permute.xlu0 %5292
      %5294 = vrot.lane.b32.xlu0 %v4497, 12
      %v5295 = vpop.permute.xlu0 %5294
      %5296 = vrot.lane.b32.xlu0 %v4575, 12
      %v5297 = vpop.permute.xlu0 %5296
      %5298 = vrot.lane.b32.xlu0 %v4500, 12
      %v5299 = vpop.permute.xlu0 %5298
      %5300 = vrot.lane.b32.xlu0 %v4576, 12
      %v5301 = vpop.permute.xlu0 %5300
      %5302 = vrot.lane.b32.xlu0 %v4503, 12
      %v5303 = vpop.permute.xlu0 %5302
      %5304 = vrot.lane.b32.xlu0 %v4577, 12
      %v5305 = vpop.permute.xlu0 %5304
      %5306 = vrot.lane.b32.xlu0 %v4506, 12
      %v5307 = vpop.permute.xlu0 %5306
      %5308 = vrot.lane.b32.xlu0 %v4578, 12
      %v5309 = vpop.permute.xlu0 %5308
      %5310 = vrot.lane.b32.xlu0 %v4509, 12
      %v5311 = vpop.permute.xlu0 %5310
      %5312 = vrot.lane.b32.xlu0 %v4579, 12
      %v5313 = vpop.permute.xlu0 %5312
      %5314 = vrot.lane.b32.xlu0 %v4512, 12
      %v5315 = vpop.permute.xlu0 %5314
      %5316 = vrot.lane.b32.xlu0 %v4580, 12
      %v5317 = vpop.permute.xlu0 %5316
      %5318 = vrot.lane.b32.xlu0 %v4515, 12
      %v5319 = vpop.permute.xlu0 %5318
      %5320 = vrot.lane.b32.xlu0 %v4581, 12
      %v5321 = vpop.permute.xlu0 %5320
      %5322 = vrot.lane.b32.xlu0 %v4518, 12
      %v5323 = vpop.permute.xlu0 %5322
      %5324 = vrot.lane.b32.xlu0 0.0, 12
      %v5325 = vpop.permute.xlu0 %5324
      %5357 = vrot.lane.b32.xlu0 %v4635, 14
      %v5358 = vpop.permute.xlu0 %5357
      %5359 = vrot.lane.b32.xlu0 %v4637, 14
      %v5360 = vpop.permute.xlu0 %5359
      %5361 = vrot.lane.b32.xlu0 %v4640, 14
      %v5362 = vpop.permute.xlu0 %5361
      %5363 = vrot.lane.b32.xlu0 %v4642, 14
      %v5364 = vpop.permute.xlu0 %5363
      %5365 = vrot.lane.b32.xlu0 %v4645, 14
      %v5366 = vpop.permute.xlu0 %5365
      %5367 = vrot.lane.b32.xlu0 %v4647, 14
      %v5368 = vpop.permute.xlu0 %5367
      %5369 = vrot.lane.b32.xlu0 %v4650, 14
      %v5370 = vpop.permute.xlu0 %5369
      %5371 = vrot.lane.b32.xlu0 %v4652, 14
      %v5372 = vpop.permute.xlu0 %5371
      %5373 = vrot.lane.b32.xlu0 %v4655, 14
      %v5374 = vpop.permute.xlu0 %5373
      %5375 = vrot.lane.b32.xlu0 %v4657, 14
      %v5376 = vpop.permute.xlu0 %5375
      %5377 = vrot.lane.b32.xlu0 %v4660, 14
      %v5378 = vpop.permute.xlu0 %5377
      %5379 = vrot.lane.b32.xlu0 %v4662, 14
      %v5380 = vpop.permute.xlu0 %5379
      %5381 = vrot.lane.b32.xlu0 %v4665, 14
      %v5382 = vpop.permute.xlu0 %5381
      %5383 = vrot.lane.b32.xlu0 %v4667, 14
      %v5384 = vpop.permute.xlu0 %5383
      %5385 = vrot.lane.b32.xlu0 %v4670, 14
      %v5386 = vpop.permute.xlu0 %5385
      %5387 = vrot.lane.b32.xlu0 %v4672, 14
      %v5388 = vpop.permute.xlu0 %5387
      %5389 = vrot.lane.b32.xlu0 %v4675, 14
      %v5390 = vpop.permute.xlu0 %5389
      %5391 = vrot.lane.b32.xlu0 %v4677, 14
      %v5392 = vpop.permute.xlu0 %5391
      %5393 = vrot.lane.b32.xlu0 %v4680, 14
      %v5394 = vpop.permute.xlu0 %5393
      %5395 = vrot.lane.b32.xlu0 %v4682, 14
      %v5396 = vpop.permute.xlu0 %5395
      %5397 = vrot.lane.b32.xlu0 %v4685, 14
      %v5398 = vpop.permute.xlu0 %5397
      %5399 = vrot.lane.b32.xlu0 %v4687, 14
      %v5400 = vpop.permute.xlu0 %5399
      %5401 = vrot.lane.b32.xlu0 %v4690, 14
      %v5402 = vpop.permute.xlu0 %5401
      %5403 = vrot.lane.b32.xlu0 %v4692, 14
      %v5404 = vpop.permute.xlu0 %5403
      %5405 = vrot.lane.b32.xlu0 %v4695, 14
      %v5406 = vpop.permute.xlu0 %5405
      %5407 = vrot.lane.b32.xlu0 %v4697, 14
      %v5408 = vpop.permute.xlu0 %5407
      %5409 = vrot.lane.b32.xlu0 %v4700, 14
      %v5410 = vpop.permute.xlu0 %5409
      %5411 = vrot.lane.b32.xlu0 %v4702, 14
      %v5412 = vpop.permute.xlu0 %5411
      %5413 = vrot.lane.b32.xlu0 %v4782, 14
      %v5414 = vpop.permute.xlu0 %5413
      %5415 = vrot.lane.b32.xlu0 %v4784, 14
      %v5416 = vpop.permute.xlu0 %5415
      %5417 = vrot.lane.b32.xlu0 %v2317, 14
      %v5418 = vpop.permute.xlu0 %5417
      %5450 = vrot.lane.b32.xlu0 %v4710, 16
      %v5451 = vpop.permute.xlu0 %5450
      %5452 = vrot.lane.b32.xlu0 %v4712, 16
      %v5453 = vpop.permute.xlu0 %5452
      %5454 = vrot.lane.b32.xlu0 %v4715, 16
      %v5455 = vpop.permute.xlu0 %5454
      %5456 = vrot.lane.b32.xlu0 %v4717, 16
      %v5457 = vpop.permute.xlu0 %5456
      %5458 = vrot.lane.b32.xlu0 %v4720, 16
      %v5459 = vpop.permute.xlu0 %5458
      %5460 = vrot.lane.b32.xlu0 %v4722, 16
      %v5461 = vpop.permute.xlu0 %5460
      %5462 = vrot.lane.b32.xlu0 %v4725, 16
      %v5463 = vpop.permute.xlu0 %5462
      %5464 = vrot.lane.b32.xlu0 %v4727, 16
      %v5465 = vpop.permute.xlu0 %5464
      %5466 = vrot.lane.b32.xlu0 %v4730, 16
      %v5467 = vpop.permute.xlu0 %5466
      %5468 = vrot.lane.b32.xlu0 %v4732, 16
      %v5469 = vpop.permute.xlu0 %5468
      %5470 = vrot.lane.b32.xlu0 %v4735, 16
      %v5471 = vpop.permute.xlu0 %5470
      %5472 = vrot.lane.b32.xlu0 %v4737, 16
      %v5473 = vpop.permute.xlu0 %5472
      %5474 = vrot.lane.b32.xlu0 %v4740, 16
      %v5475 = vpop.permute.xlu0 %5474
      %5476 = vrot.lane.b32.xlu0 %v4742, 16
      %v5477 = vpop.permute.xlu0 %5476
      %5478 = vrot.lane.b32.xlu0 %v4745, 16
      %v5479 = vpop.permute.xlu0 %5478
      %5480 = vrot.lane.b32.xlu0 %v4747, 16
      %v5481 = vpop.permute.xlu0 %5480
      %5482 = vrot.lane.b32.xlu0 %v4750, 16
      %v5483 = vpop.permute.xlu0 %5482
      %5484 = vrot.lane.b32.xlu0 %v4752, 16
      %v5485 = vpop.permute.xlu0 %5484
      %5486 = vrot.lane.b32.xlu0 %v4755, 16
      %v5487 = vpop.permute.xlu0 %5486
      %5488 = vrot.lane.b32.xlu0 %v4757, 16
      %v5489 = vpop.permute.xlu0 %5488
      %5490 = vrot.lane.b32.xlu0 %v4760, 16
      %v5491 = vpop.permute.xlu0 %5490
      %5492 = vrot.lane.b32.xlu0 %v4762, 16
      %v5493 = vpop.permute.xlu0 %5492
      %5494 = vrot.lane.b32.xlu0 %v4765, 16
      %v5495 = vpop.permute.xlu0 %5494
      %5496 = vrot.lane.b32.xlu0 %v4767, 16
      %v5497 = vpop.permute.xlu0 %5496
      %5498 = vrot.lane.b32.xlu0 %v4770, 16
      %v5499 = vpop.permute.xlu0 %5498
      %5500 = vrot.lane.b32.xlu0 %v4772, 16
      %v5501 = vpop.permute.xlu0 %5500
      %5502 = vrot.lane.b32.xlu0 %v4775, 16
      %v5503 = vpop.permute.xlu0 %5502
      %5504 = vrot.lane.b32.xlu0 %v4777, 16
      %v5505 = vpop.permute.xlu0 %5504
      %5506 = vrot.lane.b32.xlu0 %v4787, 16
      %v5507 = vpop.permute.xlu0 %5506
      %5508 = vrot.lane.b32.xlu0 %v4789, 16
      %v5509 = vpop.permute.xlu0 %5508
      %5510 = vrot.lane.b32.xlu0 %v2394, 16
      %v5511 = vpop.permute.xlu0 %5510
      %v5543 = vsel %vm4057, 0.0, %v4791
      %v5544 = vsel %vm4057, %v4566, %v4793
      %v5545 = vsel %vm4057, %v4473, %v4795
      %v5546 = vsel %vm4057, %v4567, %v4797
      %v5547 = vsel %vm4057, %v4476, %v4799
      %v5548 = vsel %vm4057, %v4568, %v4801
      %v5549 = vsel %vm4057, %v4479, %v4803
      %v5550 = vsel %vm4057, %v4569, %v4805
      %v5551 = vsel %vm4057, %v4482, %v4807
      %v5552 = vsel %vm4057, %v4570, %v4809
      %v5553 = vsel %vm4057, %v4485, %v4811
      %v5554 = vsel %vm4057, %v4571, %v4813
      %v5555 = vsel %vm4057, %v4488, %v4815
      %v5556 = vsel %vm4057, %v4572, %v4817
      %v5557 = vsel %vm4057, %v4491, %v4819
      %v5558 = vsel %vm4057, %v4573, %v4821
      %v5559 = vsel %vm4057, %v4494, %v4823
      %v5560 = vsel %vm4057, %v4574, %v4825
      %v5561 = vsel %vm4057, %v4497, %v4827
      %v5562 = vsel %vm4057, %v4575, %v4829
      %v5563 = vsel %vm4057, %v4500, %v4831
      %v5564 = vsel %vm4057, %v4576, %v4833
      %v5565 = vsel %vm4057, %v4503, %v4835
      %v5566 = vsel %vm4057, %v4577, %v4837
      %v5567 = vsel %vm4057, %v4506, %v4839
      %v5568 = vsel %vm4057, %v4578, %v4841
      %v5569 = vsel %vm4057, %v4509, %v4843
      %v5570 = vsel %vm4057, %v4579, %v4845
      %v5571 = vsel %vm4057, %v4512, %v4847
      %v5572 = vsel %vm4057, %v4580, %v4849
      %v5573 = vsel %vm4057, %v4515, %v4851
      %vm5574 = vcmask 31744
      %v5575 = vsel %vm5574, %v5543, %v4884
      %v5576 = vsel %vm5574, %v5544, %v4886
      %v5577 = vsel %vm5574, %v5545, %v4888
      %v5578 = vsel %vm5574, %v5546, %v4890
      %v5579 = vsel %vm5574, %v5547, %v4892
      %v5580 = vsel %vm5574, %v5548, %v4894
      %v5581 = vsel %vm5574, %v5549, %v4896
      %v5582 = vsel %vm5574, %v5550, %v4898
      %v5583 = vsel %vm5574, %v5551, %v4900
      %v5584 = vsel %vm5574, %v5552, %v4902
      %v5585 = vsel %vm5574, %v5553, %v4904
      %v5586 = vsel %vm5574, %v5554, %v4906
      %v5587 = vsel %vm5574, %v5555, %v4908
      %v5588 = vsel %vm5574, %v5556, %v4910
      %v5589 = vsel %vm5574, %v5557, %v4912
      %v5590 = vsel %vm5574, %v5558, %v4914
      %v5591 = vsel %vm5574, %v5559, %v4916
      %v5592 = vsel %vm5574, %v5560, %v4918
      %v5593 = vsel %vm5574, %v5561, %v4920
      %v5594 = vsel %vm5574, %v5562, %v4922
      %v5595 = vsel %vm5574, %v5563, %v4924
      %v5596 = vsel %vm5574, %v5564, %v4926
      %v5597 = vsel %vm5574, %v5565, %v4928
      %v5598 = vsel %vm5574, %v5566, %v4930
      %v5599 = vsel %vm5574, %v5567, %v4932
      %v5600 = vsel %vm5574, %v5568, %v4934
      %v5601 = vsel %vm5574, %v5569, %v4936
      %v5602 = vsel %vm5574, %v5570, %v4938
      %v5603 = vsel %vm5574, %v5571, %v4940
      %v5604 = vsel %vm5574, %v5572, %v4942
      %v5605 = vsel %vm5574, %v5573, %v4944
      %vm5606 = vcmask 48128
      %v5607 = vsel %vm5606, %v5575, %v4977
      %v5608 = vsel %vm5606, %v5575, %v4979
      %v5609 = vsel %vm5606, %v5576, %v4981
      %v5610 = vsel %vm5606, %v5577, %v4983
      %v5611 = vsel %vm5606, %v5578, %v4985
      %v5612 = vsel %vm5606, %v5579, %v4987
      %v5613 = vsel %vm5606, %v5580, %v4989
      %v5614 = vsel %vm5606, %v5581, %v4991
      %v5615 = vsel %vm5606, %v5582, %v4993
      %v5616 = vsel %vm5606, %v5583, %v4995
      %v5617 = vsel %vm5606, %v5584, %v4997
      %v5618 = vsel %vm5606, %v5585, %v4999
      %v5619 = vsel %vm5606, %v5586, %v5001
      %v5620 = vsel %vm5606, %v5587, %v5003
      %v5621 = vsel %vm5606, %v5588, %v5005
      %v5622 = vsel %vm5606, %v5589, %v5007
      %v5623 = vsel %vm5606, %v5590, %v5009
      %v5624 = vsel %vm5606, %v5591, %v5011
      %v5625 = vsel %vm5606, %v5592, %v5013
      %v5626 = vsel %vm5606, %v5593, %v5015
      %v5627 = vsel %vm5606, %v5594, %v5017
      %v5628 = vsel %vm5606, %v5595, %v5019
      %v5629 = vsel %vm5606, %v5596, %v5021
      %v5630 = vsel %vm5606, %v5597, %v5023
      %v5631 = vsel %vm5606, %v5598, %v5025
      %v5632 = vsel %vm5606, %v5599, %v5027
      %v5633 = vsel %vm5606, %v5600, %v5029
      %v5634 = vsel %vm5606, %v5601, %v5031
      %v5635 = vsel %vm5606, %v5602, %v5033
      %v5636 = vsel %vm5606, %v5603, %v5035
      %v5637 = vsel %vm5606, %v5604, %v5037
      %v5638 = vsel %vm5606, %v5605, %v5039
      %vm5639 = vcmask 64512
      %v5640 = vsel %vm5639, %v5607, %v5073
      %v5641 = vsel %vm5639, %v5608, %v5075
      %v5642 = vsel %vm5639, %v5609, %v5077
      %v5643 = vsel %vm5639, %v5610, %v5079
      %v5644 = vsel %vm5639, %v5611, %v5081
      %v5645 = vsel %vm5639, %v5612, %v5083
      %v5646 = vsel %vm5639, %v5613, %v5085
      %v5647 = vsel %vm5639, %v5614, %v5087
      %v5648 = vsel %vm5639, %v5615, %v5089
      %v5649 = vsel %vm5639, %v5616, %v5091
      %v5650 = vsel %vm5639, %v5617, %v5093
      %v5651 = vsel %vm5639, %v5618, %v5095
      %v5652 = vsel %vm5639, %v5619, %v5097
      %v5653 = vsel %vm5639, %v5620, %v5099
      %v5654 = vsel %vm5639, %v5621, %v5101
      %v5655 = vsel %vm5639, %v5622, %v5103
      %v5656 = vsel %vm5639, %v5623, %v5105
      %v5657 = vsel %vm5639, %v5624, %v5107
      %v5658 = vsel %vm5639, %v5625, %v5109
      %v5659 = vsel %vm5639, %v5626, %v5111
      %v5660 = vsel %vm5639, %v5627, %v5113
      %v5661 = vsel %vm5639, %v5628, %v5115
      %v5662 = vsel %vm5639, %v5629, %v5117
      %v5663 = vsel %vm5639, %v5630, %v5119
      %v5664 = vsel %vm5639, %v5631, %v5121
      %v5665 = vsel %vm5639, %v5632, %v5123
      %v5666 = vsel %vm5639, %v5633, %v5125
      %v5667 = vsel %vm5639, %v5634, %v5127
      %v5668 = vsel %vm5639, %v5635, %v5129
      %v5669 = vsel %vm5639, %v5636, %v5131
      %v5670 = vsel %vm5639, %v5637, %v5133
      %v5671 = vsel %vm5639, %v5638, %v5135
      %vm5672 = vcmask 80896
      %v5673 = vsel %vm5672, %v5640, %v5169
      %v5674 = vsel %vm5672, %v5641, %v5171
      %v5675 = vsel %vm5672, %v5642, %v5173
      %v5676 = vsel %vm5672, %v5643, %v5175
      %v5677 = vsel %vm5672, %v5644, %v5177
      %v5678 = vsel %vm5672, %v5645, %v5179
      %v5679 = vsel %vm5672, %v5646, %v5181
      %v5680 = vsel %vm5672, %v5647, %v5183
      %v5681 = vsel %vm5672, %v5648, %v5185
      %v5682 = vsel %vm5672, %v5649, %v5187
      %v5683 = vsel %vm5672, %v5650, %v5189
      %v5684 = vsel %vm5672, %v5651, %v5191
      %v5685 = vsel %vm5672, %v5652, %v5193
      %v5686 = vsel %vm5672, %v5653, %v5195
      %v5687 = vsel %vm5672, %v5654, %v5197
      %v5688 = vsel %vm5672, %v5655, %v5199
      %v5689 = vsel %vm5672, %v5656, %v5201
      %v5690 = vsel %vm5672, %v5657, %v5203
      %v5691 = vsel %vm5672, %v5658, %v5205
      %v5692 = vsel %vm5672, %v5659, %v5207
      %v5693 = vsel %vm5672, %v5660, %v5209
      %v5694 = vsel %vm5672, %v5661, %v5211
      %v5695 = vsel %vm5672, %v5662, %v5213
      %v5696 = vsel %vm5672, %v5663, %v5215
      %v5697 = vsel %vm5672, %v5664, %v5217
      %v5698 = vsel %vm5672, %v5665, %v5219
      %v5699 = vsel %vm5672, %v5666, %v5221
      %v5700 = vsel %vm5672, %v5667, %v5223
      %v5701 = vsel %vm5672, %v5668, %v5225
      %v5702 = vsel %vm5672, %v5669, %v5227
      %v5703 = vsel %vm5672, %v5670, %v5229
      %v5704 = vsel %vm5672, %v5671, %v5231
      %vm5705 = vcmask 97280
      %v5706 = vsel %vm5705, %v5673, %v5265
      %v5707 = vsel %vm5705, %v5674, %v5267
      %v5708 = vsel %vm5705, %v5675, %v5269
      %v5709 = vsel %vm5705, %v5676, %v5271
      %v5710 = vsel %vm5705, %v5677, %v5273
      %v5711 = vsel %vm5705, %v5678, %v5275
      %v5712 = vsel %vm5705, %v5679, %v5277
      %v5713 = vsel %vm5705, %v5680, %v5279
      %v5714 = vsel %vm5705, %v5681, %v5281
      %v5715 = vsel %vm5705, %v5682, %v5283
      %v5716 = vsel %vm5705, %v5683, %v5285
      %v5717 = vsel %vm5705, %v5684, %v5287
      %v5718 = vsel %vm5705, %v5685, %v5289
      %v5719 = vsel %vm5705, %v5686, %v5291
      %v5720 = vsel %vm5705, %v5687, %v5293
      %v5721 = vsel %vm5705, %v5688, %v5295
      %v5722 = vsel %vm5705, %v5689, %v5297
      %v5723 = vsel %vm5705, %v5690, %v5299
      %v5724 = vsel %vm5705, %v5691, %v5301
      %v5725 = vsel %vm5705, %v5692, %v5303
      %v5726 = vsel %vm5705, %v5693, %v5305
      %v5727 = vsel %vm5705, %v5694, %v5307
      %v5728 = vsel %vm5705, %v5695, %v5309
      %v5729 = vsel %vm5705, %v5696, %v5311
      %v5730 = vsel %vm5705, %v5697, %v5313
      %v5731 = vsel %vm5705, %v5698, %v5315
      %v5732 = vsel %vm5705, %v5699, %v5317
      %v5733 = vsel %vm5705, %v5700, %v5319
      %v5734 = vsel %vm5705, %v5701, %v5321
      %v5735 = vsel %vm5705, %v5702, %v5323
      %v5736 = vsel %vm5705, %v5703, %v5325
      %v5737 = vsel %vm5705, %v5704, %v5325
      %vm5738 = vcmask 113664
      %v5739 = vsel %vm5738, %v5706, %v5358
      %v5740 = vsel %vm5738, %v5707, %v5360
      %v5741 = vsel %vm5738, %v5708, %v5362
      %v5742 = vsel %vm5738, %v5709, %v5364
      %v5743 = vsel %vm5738, %v5710, %v5366
      %v5744 = vsel %vm5738, %v5711, %v5368
      %v5745 = vsel %vm5738, %v5712, %v5370
      %v5746 = vsel %vm5738, %v5713, %v5372
      %v5747 = vsel %vm5738, %v5714, %v5374
      %v5748 = vsel %vm5738, %v5715, %v5376
      %v5749 = vsel %vm5738, %v5716, %v5378
      %v5750 = vsel %vm5738, %v5717, %v5380
      %v5751 = vsel %vm5738, %v5718, %v5382
      %v5752 = vsel %vm5738, %v5719, %v5384
      %v5753 = vsel %vm5738, %v5720, %v5386
      %v5754 = vsel %vm5738, %v5721, %v5388
      %v5755 = vsel %vm5738, %v5722, %v5390
      %v5756 = vsel %vm5738, %v5723, %v5392
      %v5757 = vsel %vm5738, %v5724, %v5394
      %v5758 = vsel %vm5738, %v5725, %v5396
      %v5759 = vsel %vm5738, %v5726, %v5398
      %v5760 = vsel %vm5738, %v5727, %v5400
      %v5761 = vsel %vm5738, %v5728, %v5402
      %v5762 = vsel %vm5738, %v5729, %v5404
      %v5763 = vsel %vm5738, %v5730, %v5406
      %v5764 = vsel %vm5738, %v5731, %v5408
      %v5765 = vsel %vm5738, %v5732, %v5410
      %v5766 = vsel %vm5738, %v5733, %v5412
      %v5767 = vsel %vm5738, %v5734, %v5414
      %v5768 = vsel %vm5738, %v5735, %v5416
      %v5769 = vsel %vm5738, %v5736, %v5418
      %v5770 = vsel %vm5738, %v5737, %v5418
      %vm5771 = vcmask 130048
      %v5772 = vsel %vm5771, %v5739, %v5451
      %v5773 = vsel %vm5771, %v5740, %v5453
      %v5774 = vsel %vm5771, %v5741, %v5455
      %v5775 = vsel %vm5771, %v5742, %v5457
      %v5776 = vsel %vm5771, %v5743, %v5459
      %v5777 = vsel %vm5771, %v5744, %v5461
      %v5778 = vsel %vm5771, %v5745, %v5463
      %v5779 = vsel %vm5771, %v5746, %v5465
      %v5780 = vsel %vm5771, %v5747, %v5467
      %v5781 = vsel %vm5771, %v5748, %v5469
      %v5782 = vsel %vm5771, %v5749, %v5471
      %v5783 = vsel %vm5771, %v5750, %v5473
      %v5784 = vsel %vm5771, %v5751, %v5475
      %v5785 = vsel %vm5771, %v5752, %v5477
      %v5786 = vsel %vm5771, %v5753, %v5479
      %v5787 = vsel %vm5771, %v5754, %v5481
      %v5788 = vsel %vm5771, %v5755, %v5483
      %v5789 = vsel %vm5771, %v5756, %v5485
      %v5790 = vsel %vm5771, %v5757, %v5487
      %v5791 = vsel %vm5771, %v5758, %v5489
      %v5792 = vsel %vm5771, %v5759, %v5491
      %v5793 = vsel %vm5771, %v5760, %v5493
      %v5794 = vsel %vm5771, %v5761, %v5495
      %v5795 = vsel %vm5771, %v5762, %v5497
      %v5796 = vsel %vm5771, %v5763, %v5499
      %v5797 = vsel %vm5771, %v5764, %v5501
      %v5798 = vsel %vm5771, %v5765, %v5503
      %v5799 = vsel %vm5771, %v5766, %v5505
      %v5800 = vsel %vm5771, %v5767, %v5507
      %v5801 = vsel %vm5771, %v5768, %v5509
      %v5802 = vsel %vm5771, %v5769, %v5511
      %v5803 = vsel %vm5771, %v5770, %v5511
      %v5804 = vld [vmem:[%s9] sm:$0x1]
      %v5806 = vlaneseq
      %v5807 = vshrl.u32 %v5806, 7
      %v5808 = vsub.s32 0, %v5807
      %v5809 = vrot.slane %v5804, %v5808
      %v5811 = vmul.f32 %v5772, %v5809
      %v5812 = vmul.f32 %v5773, %v5809
      %v5813 = vmul.f32 %v5774, %v5809
      %v5814 = vmul.f32 %v5775, %v5809
      %v5815 = vmul.f32 %v5776, %v5809
      %v5816 = vmul.f32 %v5777, %v5809
      %v5817 = vmul.f32 %v5778, %v5809
      %v5818 = vmul.f32 %v5779, %v5809
      %v5819 = vmul.f32 %v5780, %v5809
      %v5820 = vmul.f32 %v5781, %v5809
      %v5821 = vmul.f32 %v5782, %v5809
      %v5822 = vmul.f32 %v5783, %v5809
      %v5823 = vmul.f32 %v5784, %v5809
      %v5824 = vmul.f32 %v5785, %v5809
      %v5825 = vmul.f32 %v5786, %v5809
      %v5826 = vmul.f32 %v5787, %v5809
      %v5827 = vmul.f32 %v5788, %v5809
      %v5828 = vmul.f32 %v5789, %v5809
      %v5829 = vmul.f32 %v5790, %v5809
      %v5830 = vmul.f32 %v5791, %v5809
      %v5831 = vmul.f32 %v5792, %v5809
      %v5832 = vmul.f32 %v5793, %v5809
      %v5833 = vmul.f32 %v5794, %v5809
      %v5834 = vmul.f32 %v5795, %v5809
      %v5835 = vmul.f32 %v5796, %v5809
      %v5836 = vmul.f32 %v5797, %v5809
      %v5837 = vmul.f32 %v5798, %v5809
      %v5838 = vmul.f32 %v5799, %v5809
      %v5839 = vmul.f32 %v5800, %v5809
      %v5840 = vmul.f32 %v5801, %v5809
      %v5841 = vmul.f32 %v5802, %v5809
      %v5842 = vmul.f32 %v5803, %v5809
      %vm5843 = vcmask 146432
      %v5844 = vsel %vm5843, %v5811, 0.0
      %5845 = vadd.xlane.f32.xlu0 %v5844
      %v5846 = vpop.xlane.xlu0 %5845
      %v5847 = vsel %vm5843, %v5812, 0.0
      %5848 = vadd.xlane.f32.xlu0 %v5847
      %v5849 = vpop.xlane.xlu0 %5848
      %v5850 = vsel %vm5843, %v5813, 0.0
      %5851 = vadd.xlane.f32.xlu0 %v5850
      %v5852 = vpop.xlane.xlu0 %5851
      %v5853 = vsel %vm5843, %v5814, 0.0
      %5854 = vadd.xlane.f32.xlu0 %v5853
      %v5855 = vpop.xlane.xlu0 %5854
      %v5856 = vsel %vm5843, %v5815, 0.0
      %5857 = vadd.xlane.f32.xlu0 %v5856
      %v5858 = vpop.xlane.xlu0 %5857
      %v5859 = vsel %vm5843, %v5816, 0.0
      %5860 = vadd.xlane.f32.xlu0 %v5859
      %v5861 = vpop.xlane.xlu0 %5860
      %v5862 = vsel %vm5843, %v5817, 0.0
      %5863 = vadd.xlane.f32.xlu0 %v5862
      %v5864 = vpop.xlane.xlu0 %5863
      %v5865 = vsel %vm5843, %v5818, 0.0
      %5866 = vadd.xlane.f32.xlu0 %v5865
      %v5867 = vpop.xlane.xlu0 %5866
      %v5868 = vsel %vm5843, %v5819, 0.0
      %5869 = vadd.xlane.f32.xlu0 %v5868
      %v5870 = vpop.xlane.xlu0 %5869
      %v5871 = vsel %vm5843, %v5820, 0.0
      %5872 = vadd.xlane.f32.xlu0 %v5871
      %v5873 = vpop.xlane.xlu0 %5872
      %v5874 = vsel %vm5843, %v5821, 0.0
      %5875 = vadd.xlane.f32.xlu0 %v5874
      %v5876 = vpop.xlane.xlu0 %5875
      %v5877 = vsel %vm5843, %v5822, 0.0
      %5878 = vadd.xlane.f32.xlu0 %v5877
      %v5879 = vpop.xlane.xlu0 %5878
      %v5880 = vsel %vm5843, %v5823, 0.0
      %5881 = vadd.xlane.f32.xlu0 %v5880
      %v5882 = vpop.xlane.xlu0 %5881
      %v5883 = vsel %vm5843, %v5824, 0.0
      %5884 = vadd.xlane.f32.xlu0 %v5883
      %v5885 = vpop.xlane.xlu0 %5884
      %v5886 = vsel %vm5843, %v5825, 0.0
      %5887 = vadd.xlane.f32.xlu0 %v5886
      %v5888 = vpop.xlane.xlu0 %5887
      %v5889 = vsel %vm5843, %v5826, 0.0
      %5890 = vadd.xlane.f32.xlu0 %v5889
      %v5891 = vpop.xlane.xlu0 %5890
      %v5892 = vsel %vm5843, %v5827, 0.0
      %5893 = vadd.xlane.f32.xlu0 %v5892
      %v5894 = vpop.xlane.xlu0 %5893
      %v5895 = vsel %vm5843, %v5828, 0.0
      %5896 = vadd.xlane.f32.xlu0 %v5895
      %v5897 = vpop.xlane.xlu0 %5896
      %v5898 = vsel %vm5843, %v5829, 0.0
      %5899 = vadd.xlane.f32.xlu0 %v5898
      %v5900 = vpop.xlane.xlu0 %5899
      %v5901 = vsel %vm5843, %v5830, 0.0
      %5902 = vadd.xlane.f32.xlu0 %v5901
      %v5903 = vpop.xlane.xlu0 %5902
      %v5904 = vsel %vm5843, %v5831, 0.0
      %5905 = vadd.xlane.f32.xlu0 %v5904
      %v5906 = vpop.xlane.xlu0 %5905
      %v5907 = vsel %vm5843, %v5832, 0.0
      %5908 = vadd.xlane.f32.xlu0 %v5907
      %v5909 = vpop.xlane.xlu0 %5908
      %v5910 = vsel %vm5843, %v5833, 0.0
      %5911 = vadd.xlane.f32.xlu0 %v5910
      %v5912 = vpop.xlane.xlu0 %5911
      %v5913 = vsel %vm5843, %v5834, 0.0
      %5914 = vadd.xlane.f32.xlu0 %v5913
      %v5915 = vpop.xlane.xlu0 %5914
      %v5916 = vsel %vm5843, %v5835, 0.0
      %5917 = vadd.xlane.f32.xlu0 %v5916
      %v5918 = vpop.xlane.xlu0 %5917
      %v5919 = vsel %vm5843, %v5836, 0.0
      %5920 = vadd.xlane.f32.xlu0 %v5919
      %v5921 = vpop.xlane.xlu0 %5920
      %v5922 = vsel %vm5843, %v5837, 0.0
      %5923 = vadd.xlane.f32.xlu0 %v5922
      %v5924 = vpop.xlane.xlu0 %5923
      %v5925 = vsel %vm5843, %v5838, 0.0
      %5926 = vadd.xlane.f32.xlu0 %v5925
      %v5927 = vpop.xlane.xlu0 %5926
      %v5928 = vsel %vm5843, %v5839, 0.0
      %5929 = vadd.xlane.f32.xlu0 %v5928
      %v5930 = vpop.xlane.xlu0 %5929
      %v5931 = vsel %vm5843, %v5840, 0.0
      %5932 = vadd.xlane.f32.xlu0 %v5931
      %v5933 = vpop.xlane.xlu0 %5932
      %v5934 = vsel %vm5843, %v5841, 0.0
      %5935 = vadd.xlane.f32.xlu0 %v5934
      %v5936 = vpop.xlane.xlu0 %5935
      %v5937 = vsel %vm5843, %v5842, 0.0
      %5938 = vadd.xlane.f32.xlu0 %v5937
      %v5939 = vpop.xlane.xlu0 %5938
      %v5940 = vld [vmem:[#allocation2] sm:$0x1]
      %v5942 = vlaneseq
      %v5943 = vshrl.u32 %v5942, 7
      %v5944 = vsub.s32 0, %v5943
      %v5945 = vrot.slane %v5940, %v5944
      %v5947 = vadd.f32 %v5846, %v5945
      %v5948 = vadd.f32 %v5849, %v5945
      %v5949 = vadd.f32 %v5852, %v5945
      %v5950 = vadd.f32 %v5855, %v5945
      %v5951 = vadd.f32 %v5858, %v5945
      %v5952 = vadd.f32 %v5861, %v5945
      %v5953 = vadd.f32 %v5864, %v5945
      %v5954 = vadd.f32 %v5867, %v5945
      %v5955 = vadd.f32 %v5870, %v5945
      %v5956 = vadd.f32 %v5873, %v5945
      %v5957 = vadd.f32 %v5876, %v5945
      %v5958 = vadd.f32 %v5879, %v5945
      %v5959 = vadd.f32 %v5882, %v5945
      %v5960 = vadd.f32 %v5885, %v5945
      %v5961 = vadd.f32 %v5888, %v5945
      %v5962 = vadd.f32 %v5891, %v5945
      %v5963 = vadd.f32 %v5894, %v5945
      %v5964 = vadd.f32 %v5897, %v5945
      %v5965 = vadd.f32 %v5900, %v5945
      %v5966 = vadd.f32 %v5903, %v5945
      %v5967 = vadd.f32 %v5906, %v5945
      %v5968 = vadd.f32 %v5909, %v5945
      %v5969 = vadd.f32 %v5912, %v5945
      %v5970 = vadd.f32 %v5915, %v5945
      %v5971 = vadd.f32 %v5918, %v5945
      %v5972 = vadd.f32 %v5921, %v5945
      %v5973 = vadd.f32 %v5924, %v5945
      %v5974 = vadd.f32 %v5927, %v5945
      %v5975 = vadd.f32 %v5930, %v5945
      %v5976 = vadd.f32 %v5933, %v5945
      %v5977 = vadd.f32 %v5936, %v5945
      %v5978 = vadd.f32 %v5939, %v5945
      %v5979 = vsub.f32 0.0, %v5947
      %v5980 = vsub.f32 0.0, %v5948
      %v5981 = vsub.f32 0.0, %v5949
      %v5982 = vsub.f32 0.0, %v5950
      %v5983 = vsub.f32 0.0, %v5951
      %v5984 = vsub.f32 0.0, %v5952
      %v5985 = vsub.f32 0.0, %v5953
      %v5986 = vsub.f32 0.0, %v5954
      %v5987 = vsub.f32 0.0, %v5955
      %v5988 = vsub.f32 0.0, %v5956
      %v5989 = vsub.f32 0.0, %v5957
      %v5990 = vsub.f32 0.0, %v5958
      %v5991 = vsub.f32 0.0, %v5959
      %v5992 = vsub.f32 0.0, %v5960
      %v5993 = vsub.f32 0.0, %v5961
      %v5994 = vsub.f32 0.0, %v5962
      %v5995 = vsub.f32 0.0, %v5963
      %v5996 = vsub.f32 0.0, %v5964
      %v5997 = vsub.f32 0.0, %v5965
      %v5998 = vsub.f32 0.0, %v5966
      %v5999 = vsub.f32 0.0, %v5967
      %v6000 = vsub.f32 0.0, %v5968
      %v6001 = vsub.f32 0.0, %v5969
      %v6002 = vsub.f32 0.0, %v5970
      %v6003 = vsub.f32 0.0, %v5971
      %v6004 = vsub.f32 0.0, %v5972
      %v6005 = vsub.f32 0.0, %v5973
      %v6006 = vsub.f32 0.0, %v5974
      %v6007 = vsub.f32 0.0, %v5975
      %v6008 = vsub.f32 0.0, %v5976
      %v6009 = vsub.f32 0.0, %v5977
      %v6010 = vsub.f32 0.0, %v5978
      %v6011 = vmul.f32 %v5979, 1.442695
      %v6012 = vpow.pop %v6011
      %v6013 = vmul.f32 %v5980, 1.442695
      %v6014 = vpow.pop %v6013
      %v6015 = vmul.f32 %v5981, 1.442695
      %v6016 = vpow.pop %v6015
      %v6017 = vmul.f32 %v5982, 1.442695
      %v6018 = vpow.pop %v6017
      %v6019 = vmul.f32 %v5983, 1.442695
      %v6020 = vpow.pop %v6019
      %v6021 = vmul.f32 %v5984, 1.442695
      %v6022 = vpow.pop %v6021
      %v6023 = vmul.f32 %v5985, 1.442695
      %v6024 = vpow.pop %v6023
      %v6025 = vmul.f32 %v5986, 1.442695
      %v6026 = vpow.pop %v6025
      %v6027 = vmul.f32 %v5987, 1.442695
      %v6028 = vpow.pop %v6027
      %v6029 = vmul.f32 %v5988, 1.442695
      %v6030 = vpow.pop %v6029
      %v6031 = vmul.f32 %v5989, 1.442695
      %v6032 = vpow.pop %v6031
      %v6033 = vmul.f32 %v5990, 1.442695
      %v6034 = vpow.pop %v6033
      %v6035 = vmul.f32 %v5991, 1.442695
      %v6036 = vpow.pop %v6035
      %v6037 = vmul.f32 %v5992, 1.442695
      %v6038 = vpow.pop %v6037
      %v6039 = vmul.f32 %v5993, 1.442695
      %v6040 = vpow.pop %v6039
      %v6041 = vmul.f32 %v5994, 1.442695
      %v6042 = vpow.pop %v6041
      %v6043 = vmul.f32 %v5995, 1.442695
      %v6044 = vpow.pop %v6043
      %v6045 = vmul.f32 %v5996, 1.442695
      %v6046 = vpow.pop %v6045
      %v6047 = vmul.f32 %v5997, 1.442695
      %v6048 = vpow.pop %v6047
      %v6049 = vmul.f32 %v5998, 1.442695
      %v6050 = vpow.pop %v6049
      %v6051 = vmul.f32 %v5999, 1.442695
      %v6052 = vpow.pop %v6051
      %v6053 = vmul.f32 %v6000, 1.442695
      %v6054 = vpow.pop %v6053
      %v6055 = vmul.f32 %v6001, 1.442695
      %v6056 = vpow.pop %v6055
      %v6057 = vmul.f32 %v6002, 1.442695
      %v6058 = vpow.pop %v6057
      %v6059 = vmul.f32 %v6003, 1.442695
      %v6060 = vpow.pop %v6059
      %v6061 = vmul.f32 %v6004, 1.442695
      %v6062 = vpow.pop %v6061
      %v6063 = vmul.f32 %v6005, 1.442695
      %v6064 = vpow.pop %v6063
      %v6065 = vmul.f32 %v6006, 1.442695
      %v6066 = vpow.pop %v6065
      %v6067 = vmul.f32 %v6007, 1.442695
      %v6068 = vpow.pop %v6067
      %v6069 = vmul.f32 %v6008, 1.442695
      %v6070 = vpow.pop %v6069
      %v6071 = vmul.f32 %v6009, 1.442695
      %v6072 = vpow.pop %v6071
      %v6073 = vmul.f32 %v6010, 1.442695
      %v6074 = vpow.pop %v6073
      %v6075 = vadd.f32 %v6012, 1.0
      %v6076 = vadd.f32 %v6014, 1.0
      %v6077 = vadd.f32 %v6016, 1.0
      %v6078 = vadd.f32 %v6018, 1.0
      %v6079 = vadd.f32 %v6020, 1.0
      %v6080 = vadd.f32 %v6022, 1.0
      %v6081 = vadd.f32 %v6024, 1.0
      %v6082 = vadd.f32 %v6026, 1.0
      %v6083 = vadd.f32 %v6028, 1.0
      %v6084 = vadd.f32 %v6030, 1.0
      %v6085 = vadd.f32 %v6032, 1.0
      %v6086 = vadd.f32 %v6034, 1.0
      %v6087 = vadd.f32 %v6036, 1.0
      %v6088 = vadd.f32 %v6038, 1.0
      %v6089 = vadd.f32 %v6040, 1.0
      %v6090 = vadd.f32 %v6042, 1.0
      %v6091 = vadd.f32 %v6044, 1.0
      %v6092 = vadd.f32 %v6046, 1.0
      %v6093 = vadd.f32 %v6048, 1.0
      %v6094 = vadd.f32 %v6050, 1.0
      %v6095 = vadd.f32 %v6052, 1.0
      %v6096 = vadd.f32 %v6054, 1.0
      %v6097 = vadd.f32 %v6056, 1.0
      %v6098 = vadd.f32 %v6058, 1.0
      %v6099 = vadd.f32 %v6060, 1.0
      %v6100 = vadd.f32 %v6062, 1.0
      %v6101 = vadd.f32 %v6064, 1.0
      %v6102 = vadd.f32 %v6066, 1.0
      %v6103 = vadd.f32 %v6068, 1.0
      %v6104 = vadd.f32 %v6070, 1.0
      %v6105 = vadd.f32 %v6072, 1.0
      %v6106 = vadd.f32 %v6074, 1.0
      %v6107 = vrcp.pop %v6075
      %v6108 = vmul.f32 1.0, %v6107
      %v6109 = vrcp.pop %v6076
      %v6110 = vmul.f32 1.0, %v6109
      %v6111 = vrcp.pop %v6077
      %v6112 = vmul.f32 1.0, %v6111
      %v6113 = vrcp.pop %v6078
      %v6114 = vmul.f32 1.0, %v6113
      %v6115 = vrcp.pop %v6079
      %v6116 = vmul.f32 1.0, %v6115
      %v6117 = vrcp.pop %v6080
      %v6118 = vmul.f32 1.0, %v6117
      %v6119 = vrcp.pop %v6081
      %v6120 = vmul.f32 1.0, %v6119
      %v6121 = vrcp.pop %v6082
      %v6122 = vmul.f32 1.0, %v6121
      %v6123 = vrcp.pop %v6083
      %v6124 = vmul.f32 1.0, %v6123
      %v6125 = vrcp.pop %v6084
      %v6126 = vmul.f32 1.0, %v6125
      %v6127 = vrcp.pop %v6085
      %v6128 = vmul.f32 1.0, %v6127
      %v6129 = vrcp.pop %v6086
      %v6130 = vmul.f32 1.0, %v6129
      %v6131 = vrcp.pop %v6087
      %v6132 = vmul.f32 1.0, %v6131
      %v6133 = vrcp.pop %v6088
      %v6134 = vmul.f32 1.0, %v6133
      %v6135 = vrcp.pop %v6089
      %v6136 = vmul.f32 1.0, %v6135
      %v6137 = vrcp.pop %v6090
      %v6138 = vmul.f32 1.0, %v6137
      %v6139 = vrcp.pop %v6091
      %v6140 = vmul.f32 1.0, %v6139
      %v6141 = vrcp.pop %v6092
      %v6142 = vmul.f32 1.0, %v6141
      %v6143 = vrcp.pop %v6093
      %v6144 = vmul.f32 1.0, %v6143
      %v6145 = vrcp.pop %v6094
      %v6146 = vmul.f32 1.0, %v6145
      %v6147 = vrcp.pop %v6095
      %v6148 = vmul.f32 1.0, %v6147
      %v6149 = vrcp.pop %v6096
      %v6150 = vmul.f32 1.0, %v6149
      %v6151 = vrcp.pop %v6097
      %v6152 = vmul.f32 1.0, %v6151
      %v6153 = vrcp.pop %v6098
      %v6154 = vmul.f32 1.0, %v6153
      %v6155 = vrcp.pop %v6099
      %v6156 = vmul.f32 1.0, %v6155
      %v6157 = vrcp.pop %v6100
      %v6158 = vmul.f32 1.0, %v6157
      %v6159 = vrcp.pop %v6101
      %v6160 = vmul.f32 1.0, %v6159
      %v6161 = vrcp.pop %v6102
      %v6162 = vmul.f32 1.0, %v6161
      %v6163 = vrcp.pop %v6103
      %v6164 = vmul.f32 1.0, %v6163
      %v6165 = vrcp.pop %v6104
      %v6166 = vmul.f32 1.0, %v6165
      %v6167 = vrcp.pop %v6105
      %v6168 = vmul.f32 1.0, %v6167
      %v6169 = vrcp.pop %v6106
      %v6170 = vmul.f32 1.0, %v6169
      %6172 = vset.pattern.permute.xlu0 0
      %6173 = vperm.xlu0 %6172, %v6108
      %v6174 = vpop.permute.xlu0 %6173
      %6177 = vset.pattern.permute.xlu0 0
      %6178 = vperm.xlu0 %6177, %v6110
      %v6179 = vpop.permute.xlu0 %6178
      %6182 = vset.pattern.permute.xlu0 0
      %6183 = vperm.xlu0 %6182, %v6112
      %v6184 = vpop.permute.xlu0 %6183
      %6187 = vset.pattern.permute.xlu0 0
      %6188 = vperm.xlu0 %6187, %v6114
      %v6189 = vpop.permute.xlu0 %6188
      %6192 = vset.pattern.permute.xlu0 0
      %6193 = vperm.xlu0 %6192, %v6116
      %v6194 = vpop.permute.xlu0 %6193
      %6197 = vset.pattern.permute.xlu0 0
      %6198 = vperm.xlu0 %6197, %v6118
      %v6199 = vpop.permute.xlu0 %6198
      %6202 = vset.pattern.permute.xlu0 0
      %6203 = vperm.xlu0 %6202, %v6120
      %v6204 = vpop.permute.xlu0 %6203
      %6207 = vset.pattern.permute.xlu0 0
      %6208 = vperm.xlu0 %6207, %v6122
      %v6209 = vpop.permute.xlu0 %6208
      %6212 = vset.pattern.permute.xlu0 0
      %6213 = vperm.xlu0 %6212, %v6124
      %v6214 = vpop.permute.xlu0 %6213
      %6217 = vset.pattern.permute.xlu0 0
      %6218 = vperm.xlu0 %6217, %v6126
      %v6219 = vpop.permute.xlu0 %6218
      %6222 = vset.pattern.permute.xlu0 0
      %6223 = vperm.xlu0 %6222, %v6128
      %v6224 = vpop.permute.xlu0 %6223
      %6227 = vset.pattern.permute.xlu0 0
      %6228 = vperm.xlu0 %6227, %v6130
      %v6229 = vpop.permute.xlu0 %6228
      %6232 = vset.pattern.permute.xlu0 0
      %6233 = vperm.xlu0 %6232, %v6132
      %v6234 = vpop.permute.xlu0 %6233
      %6237 = vset.pattern.permute.xlu0 0
      %6238 = vperm.xlu0 %6237, %v6134
      %v6239 = vpop.permute.xlu0 %6238
      %6242 = vset.pattern.permute.xlu0 0
      %6243 = vperm.xlu0 %6242, %v6136
      %v6244 = vpop.permute.xlu0 %6243
      %6247 = vset.pattern.permute.xlu0 0
      %6248 = vperm.xlu0 %6247, %v6138
      %v6249 = vpop.permute.xlu0 %6248
      %6252 = vset.pattern.permute.xlu0 0
      %6253 = vperm.xlu0 %6252, %v6140
      %v6254 = vpop.permute.xlu0 %6253
      %6257 = vset.pattern.permute.xlu0 0
      %6258 = vperm.xlu0 %6257, %v6142
      %v6259 = vpop.permute.xlu0 %6258
      %6262 = vset.pattern.permute.xlu0 0
      %6263 = vperm.xlu0 %6262, %v6144
      %v6264 = vpop.permute.xlu0 %6263
      %6267 = vset.pattern.permute.xlu0 0
      %6268 = vperm.xlu0 %6267, %v6146
      %v6269 = vpop.permute.xlu0 %6268
      %6272 = vset.pattern.permute.xlu0 0
      %6273 = vperm.xlu0 %6272, %v6148
      %v6274 = vpop.permute.xlu0 %6273
      %6277 = vset.pattern.permute.xlu0 0
      %6278 = vperm.xlu0 %6277, %v6150
      %v6279 = vpop.permute.xlu0 %6278
      %6282 = vset.pattern.permute.xlu0 0
      %6283 = vperm.xlu0 %6282, %v6152
      %v6284 = vpop.permute.xlu0 %6283
      %6287 = vset.pattern.permute.xlu0 0
      %6288 = vperm.xlu0 %6287, %v6154
      %v6289 = vpop.permute.xlu0 %6288
      %6292 = vset.pattern.permute.xlu0 0
      %6293 = vperm.xlu0 %6292, %v6156
      %v6294 = vpop.permute.xlu0 %6293
      %6297 = vset.pattern.permute.xlu0 0
      %6298 = vperm.xlu0 %6297, %v6158
      %v6299 = vpop.permute.xlu0 %6298
      %6302 = vset.pattern.permute.xlu0 0
      %6303 = vperm.xlu0 %6302, %v6160
      %v6304 = vpop.permute.xlu0 %6303
      %6307 = vset.pattern.permute.xlu0 0
      %6308 = vperm.xlu0 %6307, %v6162
      %v6309 = vpop.permute.xlu0 %6308
      %6312 = vset.pattern.permute.xlu0 0
      %6313 = vperm.xlu0 %6312, %v6164
      %v6314 = vpop.permute.xlu0 %6313
      %6317 = vset.pattern.permute.xlu0 0
      %6318 = vperm.xlu0 %6317, %v6166
      %v6319 = vpop.permute.xlu0 %6318
      %6322 = vset.pattern.permute.xlu0 0
      %6323 = vperm.xlu0 %6322, %v6168
      %v6324 = vpop.permute.xlu0 %6323
      %6327 = vset.pattern.permute.xlu0 0
      %6328 = vperm.xlu0 %6327, %v6170
      %v6329 = vpop.permute.xlu0 %6328
      %v6331 = vmul.f32 %v4149, %v6174
      %v6332 = vmul.f32 %v4150, %v6179
      %v6333 = vmul.f32 %v4151, %v6184
      %v6334 = vmul.f32 %v4152, %v6189
      %v6335 = vmul.f32 %v4153, %v6194
      %v6336 = vmul.f32 %v4154, %v6199
      %v6337 = vmul.f32 %v4155, %v6204
      %v6338 = vmul.f32 %v4156, %v6209
      %v6339 = vmul.f32 %v4157, %v6214
      %v6340 = vmul.f32 %v4158, %v6219
      %v6341 = vmul.f32 %v4159, %v6224
      %v6342 = vmul.f32 %v4160, %v6229
      %v6343 = vmul.f32 %v4161, %v6234
      %v6344 = vmul.f32 %v4162, %v6239
      %v6345 = vmul.f32 %v4163, %v6244
      %v6346 = vmul.f32 %v4164, %v6249
      %v6347 = vmul.f32 %v4165, %v6254
      %v6348 = vmul.f32 %v4166, %v6259
      %v6349 = vmul.f32 %v4167, %v6264
      %v6350 = vmul.f32 %v4168, %v6269
      %v6351 = vmul.f32 %v4169, %v6274
      %v6352 = vmul.f32 %v4170, %v6279
      %v6353 = vmul.f32 %v4171, %v6284
      %v6354 = vmul.f32 %v4172, %v6289
      %v6355 = vmul.f32 %v4173, %v6294
      %v6356 = vmul.f32 %v4174, %v6299
      %v6357 = vmul.f32 %v4175, %v6304
      %v6358 = vmul.f32 %v4176, %v6309
      %v6359 = vmul.f32 %v4177, %v6314
      %v6360 = vmul.f32 %v4178, %v6319
      %v6361 = vmul.f32 %v4179, %v6324
      %v6362 = vmul.f32 %v4180, %v6329
      %v6363 = vld [vmem:[%s11] sm:$0x1]
      %v6365 = vlaneseq
      %v6366 = vshrl.u32 %v6365, 7
      %v6367 = vsub.s32 0, %v6366
      %v6368 = vrot.slane %v6363, %v6367
      %v6370 = vmul.f32 %v6331, %v6368
      %v6371 = vmul.f32 %v6332, %v6368
      %v6372 = vmul.f32 %v6333, %v6368
      %v6373 = vmul.f32 %v6334, %v6368
      %v6374 = vmul.f32 %v6335, %v6368
      %v6375 = vmul.f32 %v6336, %v6368
      %v6376 = vmul.f32 %v6337, %v6368
      %v6377 = vmul.f32 %v6338, %v6368
      %v6378 = vmul.f32 %v6339, %v6368
      %v6379 = vmul.f32 %v6340, %v6368
      %v6380 = vmul.f32 %v6341, %v6368
      %v6381 = vmul.f32 %v6342, %v6368
      %v6382 = vmul.f32 %v6343, %v6368
      %v6383 = vmul.f32 %v6344, %v6368
      %v6384 = vmul.f32 %v6345, %v6368
      %v6385 = vmul.f32 %v6346, %v6368
      %v6386 = vmul.f32 %v6347, %v6368
      %v6387 = vmul.f32 %v6348, %v6368
      %v6388 = vmul.f32 %v6349, %v6368
      %v6389 = vmul.f32 %v6350, %v6368
      %v6390 = vmul.f32 %v6351, %v6368
      %v6391 = vmul.f32 %v6352, %v6368
      %v6392 = vmul.f32 %v6353, %v6368
      %v6393 = vmul.f32 %v6354, %v6368
      %v6394 = vmul.f32 %v6355, %v6368
      %v6395 = vmul.f32 %v6356, %v6368
      %v6396 = vmul.f32 %v6357, %v6368
      %v6397 = vmul.f32 %v6358, %v6368
      %v6398 = vmul.f32 %v6359, %v6368
      %v6399 = vmul.f32 %v6360, %v6368
      %v6400 = vmul.f32 %v6361, %v6368
      %v6401 = vmul.f32 %v6362, %v6368
      %v6402 = vld [vmem:[%s12] sm:$0x1]
      %v6404 = vlaneseq
      %v6405 = vshrl.u32 %v6404, 7
      %v6406 = vsub.s32 0, %v6405
      %v6407 = vrot.slane %v6402, %v6406
      %v6409 = vadd.f32 %v6370, %v6407
      %v6410 = vadd.f32 %v6371, %v6407
      %v6411 = vadd.f32 %v6372, %v6407
      %v6412 = vadd.f32 %v6373, %v6407
      %v6413 = vadd.f32 %v6374, %v6407
      %v6414 = vadd.f32 %v6375, %v6407
      %v6415 = vadd.f32 %v6376, %v6407
      %v6416 = vadd.f32 %v6377, %v6407
      %v6417 = vadd.f32 %v6378, %v6407
      %v6418 = vadd.f32 %v6379, %v6407
      %v6419 = vadd.f32 %v6380, %v6407
      %v6420 = vadd.f32 %v6381, %v6407
      %v6421 = vadd.f32 %v6382, %v6407
      %v6422 = vadd.f32 %v6383, %v6407
      %v6423 = vadd.f32 %v6384, %v6407
      %v6424 = vadd.f32 %v6385, %v6407
      %v6425 = vadd.f32 %v6386, %v6407
      %v6426 = vadd.f32 %v6387, %v6407
      %v6427 = vadd.f32 %v6388, %v6407
      %v6428 = vadd.f32 %v6389, %v6407
      %v6429 = vadd.f32 %v6390, %v6407
      %v6430 = vadd.f32 %v6391, %v6407
      %v6431 = vadd.f32 %v6392, %v6407
      %v6432 = vadd.f32 %v6393, %v6407
      %v6433 = vadd.f32 %v6394, %v6407
      %v6434 = vadd.f32 %v6395, %v6407
      %v6435 = vadd.f32 %v6396, %v6407
      %v6436 = vadd.f32 %v6397, %v6407
      %v6437 = vadd.f32 %v6398, %v6407
      %v6438 = vadd.f32 %v6399, %v6407
      %v6439 = vadd.f32 %v6400, %v6407
      %v6440 = vadd.f32 %v6401, %v6407
      %v6441 = vmax.f32 %v6409, 0.0
      %v6442 = vmax.f32 %v6410, 0.0
      %v6443 = vmax.f32 %v6411, 0.0
      %v6444 = vmax.f32 %v6412, 0.0
      %v6445 = vmax.f32 %v6413, 0.0
      %v6446 = vmax.f32 %v6414, 0.0
      %v6447 = vmax.f32 %v6415, 0.0
      %v6448 = vmax.f32 %v6416, 0.0
      %v6449 = vmax.f32 %v6417, 0.0
      %v6450 = vmax.f32 %v6418, 0.0
      %v6451 = vmax.f32 %v6419, 0.0
      %v6452 = vmax.f32 %v6420, 0.0
      %v6453 = vmax.f32 %v6421, 0.0
      %v6454 = vmax.f32 %v6422, 0.0
      %v6455 = vmax.f32 %v6423, 0.0
      %v6456 = vmax.f32 %v6424, 0.0
      %v6457 = vmax.f32 %v6425, 0.0
      %v6458 = vmax.f32 %v6426, 0.0
      %v6459 = vmax.f32 %v6427, 0.0
      %v6460 = vmax.f32 %v6428, 0.0
      %v6461 = vmax.f32 %v6429, 0.0
      %v6462 = vmax.f32 %v6430, 0.0
      %v6463 = vmax.f32 %v6431, 0.0
      %v6464 = vmax.f32 %v6432, 0.0
      %v6465 = vmax.f32 %v6433, 0.0
      %v6466 = vmax.f32 %v6434, 0.0
      %v6467 = vmax.f32 %v6435, 0.0
      %v6468 = vmax.f32 %v6436, 0.0
      %v6469 = vmax.f32 %v6437, 0.0
      %v6470 = vmax.f32 %v6438, 0.0
      %v6471 = vmax.f32 %v6439, 0.0
      %v6472 = vmax.f32 %v6440, 0.0
      %6473 = vst.msk [vmem:[%s442] sm:$0xff] %vm1341, %v6441
      %6474 = vst.msk [vmem:[%s442 + $0x8] sm:$0xff] %vm1341, %v6442
      %6475 = vst.msk [vmem:[%s442 + $0x10] sm:$0xff] %vm1341, %v6443
      %6476 = vst.msk [vmem:[%s442 + $0x18] sm:$0xff] %vm1341, %v6444
      %6477 = vst.msk [vmem:[%s442 + $0x20] sm:$0xff] %vm1341, %v6445
      %6478 = vst.msk [vmem:[%s442 + $0x28] sm:$0xff] %vm1341, %v6446
      %6479 = vst.msk [vmem:[%s442 + $0x30] sm:$0xff] %vm1341, %v6447
      %6480 = vst.msk [vmem:[%s442 + $0x38] sm:$0xff] %vm1341, %v6448
      %6481 = vst.msk [vmem:[%s442 + $0x40] sm:$0xff] %vm1341, %v6449
      %6482 = vst.msk [vmem:[%s442 + $0x48] sm:$0xff] %vm1341, %v6450
      %6483 = vst.msk [vmem:[%s442 + $0x50] sm:$0xff] %vm1341, %v6451
      %6484 = vst.msk [vmem:[%s442 + $0x58] sm:$0xff] %vm1341, %v6452
      %6485 = vst.msk [vmem:[%s442 + $0x60] sm:$0xff] %vm1341, %v6453
      %6486 = vst.msk [vmem:[%s442 + $0x68] sm:$0xff] %vm1341, %v6454
      %6487 = vst.msk [vmem:[%s442 + $0x70] sm:$0xff] %vm1341, %v6455
      %6488 = vst.msk [vmem:[%s442 + $0x78] sm:$0xff] %vm1341, %v6456
      %6489 = vst.msk [vmem:[%s442 + $0x80] sm:$0xff] %vm1341, %v6457
      %6490 = vst.msk [vmem:[%s442 + $0x88] sm:$0xff] %vm1341, %v6458
      %6491 = vst.msk [vmem:[%s442 + $0x90] sm:$0xff] %vm1341, %v6459
      %6492 = vst.msk [vmem:[%s442 + $0x98] sm:$0xff] %vm1341, %v6460
      %6493 = vst.msk [vmem:[%s442 + $0xa0] sm:$0xff] %vm1341, %v6461
      %6494 = vst.msk [vmem:[%s442 + $0xa8] sm:$0xff] %vm1341, %v6462
      %6495 = vst.msk [vmem:[%s442 + $0xb0] sm:$0xff] %vm1341, %v6463
      %6496 = vst.msk [vmem:[%s442 + $0xb8] sm:$0xff] %vm1341, %v6464
      %6497 = vst.msk [vmem:[%s442 + $0xc0] sm:$0xff] %vm1341, %v6465
      %6498 = vst.msk [vmem:[%s442 + $0xc8] sm:$0xff] %vm1341, %v6466
      %6499 = vst.msk [vmem:[%s442 + $0xd0] sm:$0xff] %vm1341, %v6467
      %6500 = vst.msk [vmem:[%s442 + $0xd8] sm:$0xff] %vm1341, %v6468
      %6501 = vst.msk [vmem:[%s442 + $0xe0] sm:$0xff] %vm1341, %v6469
      %6502 = vst.msk [vmem:[%s442 + $0xe8] sm:$0xff] %vm1341, %v6470
      %6503 = vst.msk [vmem:[%s442 + $0xf0] sm:$0xff] %vm1341, %v6471
      %6504 = vst.msk [vmem:[%s442 + $0xf8] sm:$0xff] %vm1341, %v6472
      %p6505 = scmp.lt.s32.totalorder %s26, 1
      %s6506 = scalar_select %p6505, %s26, 1
      %s6507 = smul.addr %s6506, 32
      %s6508 = smul.addr %s6507, 8
      %s6509 = scalar_lea.vmem %s13, %s6508
      // Predicated region
      $region73: #{tpu_custom_call.1} parent=71 // pred_check
        %p6510 = pneg %p322
      $region74: #{tpu_custom_call.1} parent=71 // pred_check_branch
        %6512 = sbr.rel (%p6510) target = $region76
      $region75: #{tpu_custom_call.1} parent=71 // pred_region
        _
      $region76: #{tpu_custom_call.1} parent=71 // pred_fallthru
        _
    $region72: #{tpu_custom_call.1} parent=5 // pred_fallthru
      _
    %p6513 = scmp.le.s32.totalorder 2, %s21
    // Predicated region
    $region77: #{tpu_custom_call.1} parent=5 // pred_check
      %p6514 = pneg %p6513
    $region78: #{tpu_custom_call.1} parent=5 // pred_check_branch
      %6516 = sbr.rel (%p6514) target = $region80
    $region79: #{tpu_custom_call.1} parent=5 // pred_region
      %s6517 = ssub.s32 %s21, 2
      // Predicated region
      $region81: #{tpu_custom_call.1} parent=79 // pred_check
        %p6518 = pneg %p328
      $region82: #{tpu_custom_call.1} parent=79 // pred_check_branch
        %6520 = sbr.rel (%p6518) target = $region84
      $region83: #{tpu_custom_call.1} parent=79 // pred_region
        %p6521 = scmp.lt.s32.totalorder %s27, 1
        %s6522 = scalar_select %p6521, %s27, 1
        %s6523 = smul.addr %s6522, 32
        %s6524 = smul.addr %s6523, 8
        %s6525 = scalar_lea.vmem %s13, %s6524
      $region84: #{tpu_custom_call.1} parent=79 // pred_fallthru
        _
    $region80: #{tpu_custom_call.1} parent=5 // pred_fallthru
      _
  $region6: #{tpu_custom_call.1} parent=0 // loop_footer
    %s25 = sadd.s32 1, %s21
  $region7: #{tpu_custom_call.1} parent=0 // loop_footer_branch
    %20 = sbr.rel target = $region3
  $region8: #{tpu_custom_call.1} parent=0 // loop_exit
    _

</llo_original>
